<compile_context>
chip_gen: v7x
topology: tpu7x:2x2x1
jax: 0.10.0
libtpu: 0.0.40
codegen_flags: <defaults>
</compile_context>

<pallas_src>
import math
import functools

import jax
import jax.numpy as jnp
from jax import lax
from jax.experimental import pallas as pl
from jax.experimental.pallas import tpu as pltpu


# ---------------------------- Pallas kernels ----------------------------

def _rms_inproj_kernel(x_ref, g_ref, w_ref, b_ref, o_ref, *, eps):
    # Fused RMSNorm + [Wl | Wr] projection.  SiLU is applied only to the right half
    # (columns >= inner) via a column mask, matching enter_linear_right -> SiLU.
    x = x_ref[...]                                          # (TM, E)
    xn = x * lax.rsqrt(jnp.mean(x * x, axis=-1, keepdims=True) + eps) * g_ref[...]
    y = jnp.dot(xn, w_ref[...], preferred_element_type=jnp.float32) + b_ref[...]  # (TM, 2*inner)
    d_half = o_ref.shape[-1] // 2
    col = lax.broadcasted_iota(jnp.int32, y.shape, 1)
    o_ref[...] = jnp.where(col < d_half, y, y * jax.nn.sigmoid(y))


def _dwconv_silu_kernel(x_ref, w_ref, b_ref, o_ref):
    # Depthwise 'valid' conv over seq axis + bias + SiLU, zero-pad tail back to L.
    x = x_ref[...]                                          # (L, D)
    L, D = x.shape
    K = w_ref.shape[0]
    valid = L - K + 1
    acc = jnp.zeros((valid, D), jnp.float32) + b_ref[...]   # bias (1, D)
    for k in range(K):                                      # small static tap loop
        acc = acc + x[k:k + valid, :] * w_ref[k, :]
    acc = acc * jax.nn.sigmoid(acc)                         # SiLU (silu(0)=0 for the pad)
    o_ref[:valid, :] = acc
    if valid < L:
        o_ref[valid:, :] = jnp.zeros((L - valid, D), jnp.float32)


def _xproj_kernel(x_ref, wbc_ref, bbc_ref, wd1_ref, bd1_ref, wd2_ref, bd2_ref,
                  bc_ref, dlt_ref):
    # Fused [WB | WC] projection + delta chain (Wd1 -> Wd2 -> softplus); reads x once.
    x = x_ref[...]                                          # (TM, D)
    bc_ref[...] = jnp.dot(x, wbc_ref[...], preferred_element_type=jnp.float32) + bbc_ref[...]
    d1 = jnp.dot(x, wd1_ref[...], preferred_element_type=jnp.float32) + bd1_ref[...]
    d2 = jnp.dot(d1, wd2_ref[...], preferred_element_type=jnp.float32) + bd2_ref[...]
    # softplus matching F.softplus(beta=1, threshold=20)
    dlt_ref[...] = jnp.where(d2 > 20.0, d2, jnp.log1p(jnp.exp(jnp.minimum(d2, 20.0))))


def _ssm_scan_kernel(x_ref, delta_ref, bmat_ref, cmat_ref, a_ref, ainv_ref, dp_ref,
                     o_ref, k_ref, ahat_ref, bhat_ref, y_ref):
    # grid = (batch, seq_chunk); recurrent state k_ref persists across seq chunks.
    @pl.when(pl.program_id(1) == 0)
    def _init():
        k_ref[...] = jnp.zeros_like(k_ref)

    a = a_ref[...]                                          # (D, N)
    ainv = ainv_ref[...]                                    # (D, D) = inv(A), precomputed
    d_dim, n_dim = a.shape
    tl = x_ref.shape[0]

    eye = (lax.broadcasted_iota(jnp.int32, (d_dim, n_dim), 0)
           == lax.broadcasted_iota(jnp.int32, (d_dim, n_dim), 1)).astype(jnp.float32)

    x = x_ref[...]                                          # (TL, D)
    delta = delta_ref[...]                                  # (TL, D)
    bmat = bmat_ref[...]                                    # (TL, N)

    # ---- hoisted, state-independent per-timestep math (batched over the chunk) ----
    d3 = delta[:, :, None]                                  # (TL, D, 1)
    a_hat = jnp.exp(d3 * a[None, :, :])                     # (TL, D, N)   streamed EUP exp
    d_safe = jnp.maximum(d3, 1e-20)                         # guard softplus underflow -> /0
    m = (a_hat - eye[None, :, :]) / d_safe                  # (TL, D, N)
    # Minner[t] = inv(A) @ ((A_hat[t]-I)/delta[t]) == torch.inverse(deltaA) @ (A_hat - I),
    # since deltaA = diag(delta) @ A and A is the fixed HiPPO matrix.
    ainv_b = jnp.broadcast_to(ainv[None, :, :], (tl, d_dim, d_dim))
    minner = lax.dot_general(ainv_b, m,
                             dimension_numbers=(((2,), (1,)), ((0,), (0,))),
                             preferred_element_type=jnp.float32)          # (TL, D, N)
    b_hat = minner * (d3 * bmat[:, None, :]) * x[:, :, None]              # (TL, D, N)

    ahat_ref[...] = a_hat
    bhat_ref[...] = b_hat

    # ---- serial elementwise recurrence only ----
    def step(t, k):
        k_new = ahat_ref[t] * k + bhat_ref[t]               # (D, N) elementwise FMA
        c_t = cmat_ref[t]                                   # (N,)
        y_t = jnp.sum(k_new * c_t[None, :], axis=-1)        # (D,)
        y_ref[pl.ds(t, 1), :] = y_t[None, :]
        return k_new

    k_final = lax.fori_loop(0, tl, step, k_ref[...], unroll=True)
    k_ref[...] = k_final

    # single dense block store per chunk
    o_ref[...] = y_ref[...] + x * dp_ref[...]


def _gate_out_kernel(y_ref, r_ref, w_ref, b_ref, res_ref, o_ref):
    # (ssm_out * silu_gate) @ W_out + b_out + residual
    g = y_ref[...] * r_ref[...]
    o_ref[...] = (jnp.dot(g, w_ref[...], preferred_element_type=jnp.float32)
                  + b_ref[...] + res_ref[...])


def _rms_linear_kernel(x_ref, g_ref, w_ref, b_ref, o_ref, *, eps):
    # Fused final RMSNorm + LM head projection.
    x = x_ref[...]
    xn = x * lax.rsqrt(jnp.mean(x * x, axis=-1, keepdims=True) + eps) * g_ref[...]
    o_ref[...] = jnp.dot(xn, w_ref[...], preferred_element_type=jnp.float32) + b_ref[...]


# ---------------------------- pallas_call wrappers ----------------------------

def _pick_row_tile(m, requested):
    t = min(requested, m)
    if t == m:
        return m
    t = max(8, (t // 8) * 8)
    while t > 0 and m % t != 0:
        t -= 8
    return t if t > 0 else m


_PARALLEL_1D = pltpu.CompilerParams(dimension_semantics=("parallel",))


def rms_inproj(x2, g, w, b, *, eps=1e-5, row_tile=256):
    M, E = x2.shape
    Dout = w.shape[1]
    TM = _pick_row_tile(M, row_tile)
    return pl.pallas_call(
        functools.partial(_rms_inproj_kernel, eps=eps),
        out_shape=jax.ShapeDtypeStruct((M, Dout), jnp.float32),
        grid=(M // TM,),
        in_specs=[pl.BlockSpec((TM, E), lambda i: (i, 0)),
                  pl.BlockSpec((1, E), lambda i: (0, 0)),
                  pl.BlockSpec((E, Dout), lambda i: (0, 0)),
                  pl.BlockSpec((1, Dout), lambda i: (0, 0))],
        out_specs=pl.BlockSpec((TM, Dout), lambda i: (i, 0)),
        compiler_params=_PARALLEL_1D,
    )(x2, g.reshape(1, E), w, b.reshape(1, Dout))


def dwconv_silu(x3, w, b):
    B, L, D = x3.shape
    K = w.shape[0]
    return pl.pallas_call(
        _dwconv_silu_kernel,
        out_shape=jax.ShapeDtypeStruct((B, L, D), jnp.float32),
        grid=(B,),
        in_specs=[pl.BlockSpec((None, L, D), lambda bi: (bi, 0, 0)),
                  pl.BlockSpec((K, D), lambda bi: (0, 0)),
                  pl.BlockSpec((1, D), lambda bi: (0, 0))],
        out_specs=pl.BlockSpec((None, L, D), lambda bi: (bi, 0, 0)),
        compiler_params=_PARALLEL_1D,
    )(x3, w, b.reshape(1, D))


def xproj(x2, wbc, bbc, wd1, bd1, wd2, bd2, *, row_tile=256):
    M, D = x2.shape
    N2 = wbc.shape[1]
    R = wd1.shape[1]
    TM = _pick_row_tile(M, row_tile)
    return pl.pallas_call(
        _xproj_kernel,
        out_shape=(jax.ShapeDtypeStruct((M, N2), jnp.float32),
                   jax.ShapeDtypeStruct((M, D), jnp.float32)),
        grid=(M // TM,),
        in_specs=[pl.BlockSpec((TM, D), lambda i: (i, 0)),
                  pl.BlockSpec((D, N2), lambda i: (0, 0)),
                  pl.BlockSpec((1, N2), lambda i: (0, 0)),
                  pl.BlockSpec((D, R), lambda i: (0, 0)),
                  pl.BlockSpec((1, R), lambda i: (0, 0)),
                  pl.BlockSpec((R, D), lambda i: (0, 0)),
                  pl.BlockSpec((1, D), lambda i: (0, 0))],
        out_specs=(pl.BlockSpec((TM, N2), lambda i: (i, 0)),
                   pl.BlockSpec((TM, D), lambda i: (i, 0))),
        compiler_params=_PARALLEL_1D,
    )(x2, wbc, bbc.reshape(1, N2), wd1, bd1.reshape(1, R), wd2, bd2.reshape(1, D))


def ssm_scan(x3, delta3, B3, C3, A, Ainv, Dp, *, seq_tile=None):
    Bn, L, D = x3.shape
    N = A.shape[1]
    TL = seq_tile or L
    if L % TL != 0:
        TL = L
    NC = L // TL
    return pl.pallas_call(
        _ssm_scan_kernel,
        out_shape=jax.ShapeDtypeStruct((Bn, L, D), jnp.float32),
        grid=(Bn, NC),
        in_specs=[
            pl.BlockSpec((None, TL, D), lambda bi, lc: (bi, lc, 0)),   # x (post-conv, post-silu)
            pl.BlockSpec((None, TL, D), lambda bi, lc: (bi, lc, 0)),   # delta
            pl.BlockSpec((None, TL, N), lambda bi, lc: (bi, lc, 0)),   # B
            pl.BlockSpec((None, TL, N), lambda bi, lc: (bi, lc, 0)),   # C
            pl.BlockSpec((D, N), lambda bi, lc: (0, 0)),               # A
            pl.BlockSpec((D, D), lambda bi, lc: (0, 0)),               # inv(A)
            pl.BlockSpec((1, D), lambda bi, lc: (0, 0)),               # D param
        ],
        out_specs=pl.BlockSpec((None, TL, D), lambda bi, lc: (bi, lc, 0)),
        scratch_shapes=[
            pltpu.VMEM((D, N), jnp.float32),      # recurrent state, persists across seq chunks
            pltpu.VMEM((TL, D, N), jnp.float32),  # A_hat (chunk)
            pltpu.VMEM((TL, D, N), jnp.float32),  # B_hat (chunk)
            pltpu.VMEM((TL, D), jnp.float32),     # y rows (chunk)
        ],
        compiler_params=pltpu.CompilerParams(
            dimension_semantics=("parallel", "arbitrary")),
    )(x3, delta3, B3, C3, A, Ainv, Dp.reshape(1, D))


def gate_out_residual(y2, r2, w, b, res2, *, row_tile=256):
    M, Din = y2.shape
    Dout = w.shape[1]
    TM = _pick_row_tile(M, row_tile)
    return pl.pallas_call(
        _gate_out_kernel,
        out_shape=jax.ShapeDtypeStruct((M, Dout), jnp.float32),
        grid=(M // TM,),
        in_specs=[pl.BlockSpec((TM, Din), lambda i: (i, 0)),
                  pl.BlockSpec((TM, Din), lambda i: (i, 0)),
                  pl.BlockSpec((Din, Dout), lambda i: (0, 0)),
                  pl.BlockSpec((1, Dout), lambda i: (0, 0)),
                  pl.BlockSpec((TM, Dout), lambda i: (i, 0))],
        out_specs=pl.BlockSpec((TM, Dout), lambda i: (i, 0)),
        compiler_params=_PARALLEL_1D,
    )(y2, r2, w, b.reshape(1, Dout), res2)


def rms_linear(x2, g, w, b, *, eps=1e-5, row_tile=256):
    M, E = x2.shape
    Dout = w.shape[1]
    TM = _pick_row_tile(M, row_tile)
    return pl.pallas_call(
        functools.partial(_rms_linear_kernel, eps=eps),
        out_shape=jax.ShapeDtypeStruct((M, Dout), jnp.float32),
        grid=(M // TM,),
        in_specs=[pl.BlockSpec((TM, E), lambda i: (i, 0)),
                  pl.BlockSpec((1, E), lambda i: (0, 0)),
                  pl.BlockSpec((E, Dout), lambda i: (0, 0)),
                  pl.BlockSpec((1, Dout), lambda i: (0, 0))],
        out_specs=pl.BlockSpec((TM, Dout), lambda i: (i, 0)),
        compiler_params=_PARALLEL_1D,
    )(x2, g.reshape(1, E), w, b.reshape(1, Dout))


# ---------------------------- parameters (deterministic, in-script) ----------------------------

def make_hippo(N):
    P = jnp.sqrt(1.0 + 2.0 * jnp.arange(N, dtype=jnp.float32))
    A = P[:, None] * P[None, :]
    A = jnp.tril(A) - jnp.diag(jnp.arange(N, dtype=jnp.float32))
    return -A


def init_linear_params(key, din, dout):
    kw, kb = jax.random.split(key)
    bound = 1.0 / math.sqrt(din)
    w = jax.random.uniform(kw, (din, dout), jnp.float32, -bound, bound)
    b = jax.random.uniform(kb, (dout,), jnp.float32, -bound, bound)
    return w, b


def init_params(key, vocab, emb, inner, d_conv, n_layers):
    dt_rank = math.ceil(inner / 16)
    keys = jax.random.split(key, 2 + n_layers)
    params = {
        "emb": jax.random.normal(keys[0], (vocab, emb), jnp.float32),
        "final_rms_w": jnp.ones((emb,), jnp.float32),
        "layers": [],
    }
    params["head_w"], params["head_b"] = init_linear_params(keys[1], emb, vocab)

    # A_log = log(-make_HiPPO(N)); upper triangle is log(0) = -inf (exp(-inf)=0 in fwd).
    A0 = -make_hippo(inner)
    A_log = jnp.where(A0 > 0, jnp.log(jnp.where(A0 > 0, A0, 1.0)), -jnp.inf)
    A = -jnp.exp(A_log)                      # forward-path A (== make_HiPPO(inner))
    Ainv = jnp.linalg.inv(A)                 # precomputed ONCE (perf feedback), not per forward

    for li in range(n_layers):
        lk = jax.random.split(keys[2 + li], 8)
        Wl, bl = init_linear_params(lk[0], emb, inner)
        Wr, br = init_linear_params(lk[1], emb, inner)
        cbound = 1.0 / math.sqrt(d_conv)
        conv_w = jax.random.uniform(lk[2], (d_conv, inner), jnp.float32, -cbound, cbound)
        conv_b = jax.random.uniform(lk[3], (inner,), jnp.float32, -cbound, cbound)
        WB, bB = init_linear_params(lk[4], inner, inner)
        WC, bC = init_linear_params(lk[5], inner, inner)
        Wd1, bd1 = init_linear_params(lk[6], inner, dt_rank)
        Wd2, bd2 = init_linear_params(lk[7], dt_rank, inner)
        Wo, bo = init_linear_params(jax.random.fold_in(lk[0], 7), inner, emb)
        params["layers"].append({
            "rms_w": jnp.ones((emb,), jnp.float32),
            "Wlr": jnp.concatenate([Wl, Wr], axis=1),        # fused [Wl | Wr]
            "blr": jnp.concatenate([bl, br], axis=0),
            "conv_w": conv_w, "conv_b": conv_b,
            "Wbc": jnp.concatenate([WB, WC], axis=1),        # fused [WB | WC]
            "bbc": jnp.concatenate([bB, bC], axis=0),
            "Wd1": Wd1, "bd1": bd1, "Wd2": Wd2, "bd2": bd2,
            "A": A, "Ainv": Ainv, "Dp": jnp.ones((inner,), jnp.float32),
            "Wo": Wo, "bo": bo,
        })
    return params


# ---------------------------- model forward (glue around Pallas kernels) ----------------------------

def mamba_block(x, p, *, row_tile, seq_tile):
    b, l, e = x.shape
    d = p["conv_w"].shape[1]
    x2 = x.reshape(b * l, e)

    # fused RMSNorm + [Wl|Wr] projection (SiLU already applied to the right half)
    lr = rms_inproj(x2, p["rms_w"], p["Wlr"], p["blr"], row_tile=row_tile)
    x_left = lr[:, :d]
    x_right = lr[:, d:]

    xl3 = dwconv_silu(x_left.reshape(b, l, d), p["conv_w"], p["conv_b"])
    xl2 = xl3.reshape(b * l, d)

    # fused [WB|WC] + delta-chain projection
    bc, dlt = xproj(xl2, p["Wbc"], p["bbc"], p["Wd1"], p["bd1"], p["Wd2"], p["bd2"],
                    row_tile=row_tile)
    Bp = bc[:, :d].reshape(b, l, d)
    Cp = bc[:, d:].reshape(b, l, d)
    dlt3 = dlt.reshape(b, l, d)

    y = ssm_scan(xl3, dlt3, Bp, Cp, p["A"], p["Ainv"], p["Dp"], seq_tile=seq_tile)
    out = gate_out_residual(y.reshape(b * l, d), x_right, p["Wo"], p["bo"], x2,
                            row_tile=row_tile)
    return out.reshape(b, l, e)


def mamba_forward(tokens, params, *, row_tile=256, seq_tile=None):
    # TODO(synk): embedding gather done in plain JAX (data-dependent gather, no clean BlockSpec form).
    x = jnp.take(params["emb"], tokens, axis=0)              # (b, l, emb)
    for p in params["layers"]:
        x = mamba_block(x, p, row_tile=row_tile, seq_tile=seq_tile)
    b, l, e = x.shape
    logits = rms_linear(x.reshape(b * l, e), params["final_rms_w"],
                        params["head_w"], params["head_b"], row_tile=row_tile)
    return logits.reshape(b, l, -1)


# ---------------------------- main ----------------------------

if __name__ == "__main__":
    vocab_size, emb_dim, inner_dim, d_conv, num_layers = 64, 32, 32, 3, 2
    batch, seq = 2, 16

    key = jax.random.PRNGKey(0)
    params = init_params(key, vocab_size, emb_dim, inner_dim, d_conv, num_layers)
    tokens = jax.random.randint(jax.random.fold_in(key, 999), (batch, seq), 0, vocab_size)

    # small tiles to exercise the row-tiled grids (grid=(2,)) and the 2-chunk seq scan
    fwd = jax.jit(functools.partial(mamba_forward, row_tile=16, seq_tile=8))
    logits = fwd(tokens, params)
    logits = jax.block_until_ready(logits)
    assert logits.shape == (batch, seq, vocab_size)
    assert bool(jnp.all(jnp.isfinite(logits)))
    print("KERNEL_OK")
</pallas_src>

<mosaic_0001>
module attributes {stable_mosaic.version = 11 : i64} {
  func.func @_ssm_scan_kernel(%arg0: i32, %arg1: i32, %arg2: memref<1x8x32xf32, #tpu.memory_space<vmem>>, %arg3: memref<1x8x32xf32, #tpu.memory_space<vmem>>, %arg4: memref<1x8x32xf32, #tpu.memory_space<vmem>>, %arg5: memref<1x8x32xf32, #tpu.memory_space<vmem>>, %arg6: memref<32x32xf32, #tpu.memory_space<vmem>>, %arg7: memref<32x32xf32, #tpu.memory_space<vmem>>, %arg8: memref<1x32xf32, #tpu.memory_space<vmem>>, %arg9: memref<1x8x32xf32, #tpu.memory_space<vmem>>, %arg10: memref<32x32xf32, #tpu.memory_space<vmem>>, %arg11: memref<8x32x32xf32, #tpu.memory_space<vmem>>, %arg12: memref<8x32x32xf32, #tpu.memory_space<vmem>>, %arg13: memref<8x32xf32, #tpu.memory_space<vmem>>) attributes {dimension_semantics = [#tpu.dimension_semantics<parallel>, #tpu.dimension_semantics<arbitrary>], iteration_bounds = array<i64: 2, 2>, scalar_prefetch = 0 : i64, scratch_operands = 4 : i64, tpu.core_type = #tpu.core_type<tc>, window_params = [{transform_indices = @transform_0, window_bounds = array<i64: 1, 8, 32>}, {transform_indices = @transform_1, window_bounds = array<i64: 1, 8, 32>}, {transform_indices = @transform_2, window_bounds = array<i64: 1, 8, 32>}, {transform_indices = @transform_3, window_bounds = array<i64: 1, 8, 32>}, {pipeline_mode = #tpu.pipeline_mode<synchronous>, transform_indices = @transform_4, window_bounds = array<i64: 32, 32>}, {pipeline_mode = #tpu.pipeline_mode<synchronous>, transform_indices = @transform_5, window_bounds = array<i64: 32, 32>}, {pipeline_mode = #tpu.pipeline_mode<synchronous>, transform_indices = @transform_6, window_bounds = array<i64: 1, 32>}, {transform_indices = @transform_7, window_bounds = array<i64: 1, 8, 32>}]} {
    %c0_i32 = arith.constant 0 : i32
    %0 = arith.cmpi eq, %arg1, %c0_i32 : i32
    %1 = arith.extui %0 : i1 to i32
    %c0_i32_0 = arith.constant 0 : i32
    %2 = arith.cmpi ne, %1, %c0_i32_0 : i32
    scf.if %2 {
      %cst_96 = arith.constant 0.000000e+00 : f32
      %197 = vector.broadcast %cst_96 : f32 to vector<32x32xf32>
      %c0_97 = arith.constant 0 : index
      %c0_98 = arith.constant 0 : index
      %198 = vector.load %arg10[%c0_97, %c0_98] : memref<32x32xf32, #tpu.memory_space<vmem>>, vector<32x32xf32>
      tpu.vector_store %arg10[%c0_97, %c0_98], %197 {strides = array<i32>} : memref<32x32xf32, #tpu.memory_space<vmem>>, vector<32x32xf32>,
    } else {
    }
    %c0 = arith.constant 0 : index
    %c0_1 = arith.constant 0 : index
    %3 = vector.load %arg6[%c0, %c0_1] : memref<32x32xf32, #tpu.memory_space<vmem>>, vector<32x32xf32>
    %c0_2 = arith.constant 0 : index
    %c0_3 = arith.constant 0 : index
    %4 = vector.load %arg7[%c0_2, %c0_3] : memref<32x32xf32, #tpu.memory_space<vmem>>, vector<32x32xf32>
    %5 = tpu.iota {dimensions = array<i32: 0>} : vector<32x32xi32>
    %6 = tpu.iota {dimensions = array<i32: 1>} : vector<32x32xi32>
    %7 = arith.cmpi eq, %5, %6 : vector<32x32xi32>
    %8 = arith.extui %7 : vector<32x32xi1> to vector<32x32xi32>
    %9 = arith.sitofp %8 : vector<32x32xi32> to vector<32x32xf32>
    %c0_4 = arith.constant 0 : index
    %c0_5 = arith.constant 0 : index
    %c0_6 = arith.constant 0 : index
    %10 = vector.load %arg2[%c0_4, %c0_5, %c0_6] : memref<1x8x32xf32, #tpu.memory_space<vmem>>, vector<1x8x32xf32>
    %11 = vector.shape_cast %10 : vector<1x8x32xf32> to vector<8x32xf32>
    %c0_7 = arith.constant 0 : index
    %c0_8 = arith.constant 0 : index
    %c0_9 = arith.constant 0 : index
    %12 = vector.load %arg3[%c0_7, %c0_8, %c0_9] : memref<1x8x32xf32, #tpu.memory_space<vmem>>, vector<1x8x32xf32>
    %13 = vector.shape_cast %12 : vector<1x8x32xf32> to vector<8x32xf32>
    %c0_10 = arith.constant 0 : index
    %c0_11 = arith.constant 0 : index
    %c0_12 = arith.constant 0 : index
    %14 = vector.load %arg4[%c0_10, %c0_11, %c0_12] : memref<1x8x32xf32, #tpu.memory_space<vmem>>, vector<1x8x32xf32>
    %15 = vector.shape_cast %14 : vector<1x8x32xf32> to vector<8x32xf32>
    %16 = vector.shape_cast %13 : vector<8x32xf32> to vector<8x32x1xf32>
    %17 = vector.shape_cast %3 : vector<32x32xf32> to vector<1x32x32xf32>
    %18 = vector.broadcast %16 : vector<8x32x1xf32> to vector<8x32x32xf32>
    %19 = vector.broadcast %17 : vector<1x32x32xf32> to vector<8x32x32xf32>
    %20 = arith.mulf %18, %19 : vector<8x32x32xf32>
    %21 = math.exp %20 : vector<8x32x32xf32>
    %cst = arith.constant 9.99999968E-21 : f32
    %22 = vector.broadcast %cst : f32 to vector<8x32x1xf32>
    %23 = arith.maximumf %16, %22 : vector<8x32x1xf32>
    %24 = vector.shape_cast %9 : vector<32x32xf32> to vector<1x32x32xf32>
    %25 = vector.broadcast %24 : vector<1x32x32xf32> to vector<8x32x32xf32>
    %26 = arith.subf %21, %25 : vector<8x32x32xf32>
    %27 = vector.broadcast %23 : vector<8x32x1xf32> to vector<8x32x32xf32>
    %28 = arith.divf %26, %27 : vector<8x32x32xf32>
    %29 = vector.shape_cast %4 : vector<32x32xf32> to vector<1x32x32xf32>
    %30 = vector.shape_cast %29 : vector<1x32x32xf32> to vector<1x32x32xf32>
    %31 = vector.broadcast %30 : vector<1x32x32xf32> to vector<8x32x32xf32>
    %cst_13 = arith.constant dense<0.000000e+00> : vector<8x32x32xf32>
    %32 = tpu.matmul %31, %28, %cst_13 {dimension_numbers = #tpu.dot_dimension_numbers<[2], [1], [1], [2], [0, 0, 0, 1, 1, 2], [0], [0]>} : vector<8x32x32xf32>, vector<8x32x32xf32>, vector<8x32x32xf32> -> vector<8x32x32xf32>
    %33 = vector.shape_cast %15 : vector<8x32xf32> to vector<8x1x32xf32>
    %34 = vector.broadcast %16 : vector<8x32x1xf32> to vector<8x32x32xf32>
    %35 = vector.broadcast %33 : vector<8x1x32xf32> to vector<8x32x32xf32>
    %36 = arith.mulf %34, %35 : vector<8x32x32xf32>
    %37 = arith.mulf %32, %36 : vector<8x32x32xf32>
    %38 = vector.shape_cast %11 : vector<8x32xf32> to vector<8x32x1xf32>
    %39 = vector.broadcast %38 : vector<8x32x1xf32> to vector<8x32x32xf32>
    %40 = arith.mulf %37, %39 : vector<8x32x32xf32>
    %c0_14 = arith.constant 0 : index
    %c0_15 = arith.constant 0 : index
    %c0_16 = arith.constant 0 : index
    %41 = vector.load %arg11[%c0_14, %c0_15, %c0_16] : memref<8x32x32xf32, #tpu.memory_space<vmem>>, vector<8x32x32xf32>
    tpu.vector_store %arg11[%c0_14, %c0_15, %c0_16], %21 {strides = array<i32>} : memref<8x32x32xf32, #tpu.memory_space<vmem>>, vector<8x32x32xf32>,
    %c0_17 = arith.constant 0 : index
    %c0_18 = arith.constant 0 : index
    %c0_19 = arith.constant 0 : index
    %42 = vector.load %arg12[%c0_17, %c0_18, %c0_19] : memref<8x32x32xf32, #tpu.memory_space<vmem>>, vector<8x32x32xf32>
    tpu.vector_store %arg12[%c0_17, %c0_18, %c0_19], %40 {strides = array<i32>} : memref<8x32x32xf32, #tpu.memory_space<vmem>>, vector<8x32x32xf32>,
    %c0_20 = arith.constant 0 : index
    %c0_21 = arith.constant 0 : index
    %43 = vector.load %arg10[%c0_20, %c0_21] : memref<32x32xf32, #tpu.memory_space<vmem>>, vector<32x32xf32>
    %c0_i32_22 = arith.constant 0 : i32
    %44 = arith.index_cast %c0_i32_22 : i32 to index
    %c0_23 = arith.constant 0 : index
    %c0_24 = arith.constant 0 : index
    %45 = vector.load %arg11[%44, %c0_23, %c0_24] : memref<8x32x32xf32, #tpu.memory_space<vmem>>, vector<1x32x32xf32>
    %46 = vector.shape_cast %45 : vector<1x32x32xf32> to vector<32x32xf32>
    %47 = arith.mulf %46, %43 : vector<32x32xf32>
    %48 = arith.index_cast %c0_i32_22 : i32 to index
    %c0_25 = arith.constant 0 : index
    %c0_26 = arith.constant 0 : index
    %49 = vector.load %arg12[%48, %c0_25, %c0_26] : memref<8x32x32xf32, #tpu.memory_space<vmem>>, vector<1x32x32xf32>
    %50 = vector.shape_cast %49 : vector<1x32x32xf32> to vector<32x32xf32>
    %51 = arith.addf %47, %50 : vector<32x32xf32>
    %c0_27 = arith.constant 0 : index
    %52 = arith.index_cast %c0_i32_22 : i32 to index
    %c0_28 = arith.constant 0 : index
    %53 = vector.load %arg5[%c0_27, %52, %c0_28] : memref<1x8x32xf32, #tpu.memory_space<vmem>>, vector<1x1x32xf32>
    %54 = vector.shape_cast %53 : vector<1x1x32xf32> to vector<32xf32>
    %55 = vector.shape_cast %54 : vector<32xf32> to vector<1x32xf32>
    %56 = vector.broadcast %55 : vector<1x32xf32> to vector<32x32xf32>
    %57 = arith.mulf %51, %56 : vector<32x32xf32>
    %cst_29 = arith.constant dense<0.000000e+00> : vector<32xf32>
    %58 = vector.multi_reduction <add>, %57, %cst_29 [1] : vector<32x32xf32> to vector<32xf32>
    %59 = vector.shape_cast %58 : vector<32xf32> to vector<1x32xf32>
    %60 = arith.index_cast %c0_i32_22 : i32 to index
    %c0_30 = arith.constant 0 : index
    %61 = vector.load %arg13[%60, %c0_30] : memref<8x32xf32, #tpu.memory_space<vmem>>, vector<1x32xf32>
    tpu.vector_store %arg13[%60, %c0_30], %59 {strides = array<i32>} : memref<8x32xf32, #tpu.memory_space<vmem>>, vector<1x32xf32>,
    %c1_i32 = arith.constant 1 : i32
    %62 = arith.index_cast %c1_i32 : i32 to index
    %c0_31 = arith.constant 0 : index
    %c0_32 = arith.constant 0 : index
    %63 = vector.load %arg11[%62, %c0_31, %c0_32] : memref<8x32x32xf32, #tpu.memory_space<vmem>>, vector<1x32x32xf32>
    %64 = vector.shape_cast %63 : vector<1x32x32xf32> to vector<32x32xf32>
    %65 = arith.mulf %64, %51 : vector<32x32xf32>
    %66 = arith.index_cast %c1_i32 : i32 to index
    %c0_33 = arith.constant 0 : index
    %c0_34 = arith.constant 0 : index
    %67 = vector.load %arg12[%66, %c0_33, %c0_34] : memref<8x32x32xf32, #tpu.memory_space<vmem>>, vector<1x32x32xf32>
    %68 = vector.shape_cast %67 : vector<1x32x32xf32> to vector<32x32xf32>
    %69 = arith.addf %65, %68 : vector<32x32xf32>
    %c0_35 = arith.constant 0 : index
    %70 = arith.index_cast %c1_i32 : i32 to index
    %c0_36 = arith.constant 0 : index
    %71 = vector.load %arg5[%c0_35, %70, %c0_36] : memref<1x8x32xf32, #tpu.memory_space<vmem>>, vector<1x1x32xf32>
    %72 = vector.shape_cast %71 : vector<1x1x32xf32> to vector<32xf32>
    %73 = vector.shape_cast %72 : vector<32xf32> to vector<1x32xf32>
    %74 = vector.broadcast %73 : vector<1x32xf32> to vector<32x32xf32>
    %75 = arith.mulf %69, %74 : vector<32x32xf32>
    %cst_37 = arith.constant dense<0.000000e+00> : vector<32xf32>
    %76 = vector.multi_reduction <add>, %75, %cst_37 [1] : vector<32x32xf32> to vector<32xf32>
    %77 = vector.shape_cast %76 : vector<32xf32> to vector<1x32xf32>
    %78 = arith.index_cast %c1_i32 : i32 to index
    %c0_38 = arith.constant 0 : index
    %79 = vector.load %arg13[%78, %c0_38] : memref<8x32xf32, #tpu.memory_space<vmem>>, vector<1x32xf32>
    tpu.vector_store %arg13[%78, %c0_38], %77 {strides = array<i32>} : memref<8x32xf32, #tpu.memory_space<vmem>>, vector<1x32xf32>,
    %c2_i32 = arith.constant 2 : i32
    %80 = arith.index_cast %c2_i32 : i32 to index
    %c0_39 = arith.constant 0 : index
    %c0_40 = arith.constant 0 : index
    %81 = vector.load %arg11[%80, %c0_39, %c0_40] : memref<8x32x32xf32, #tpu.memory_space<vmem>>, vector<1x32x32xf32>
    %82 = vector.shape_cast %81 : vector<1x32x32xf32> to vector<32x32xf32>
    %83 = arith.mulf %82, %69 : vector<32x32xf32>
    %84 = arith.index_cast %c2_i32 : i32 to index
    %c0_41 = arith.constant 0 : index
    %c0_42 = arith.constant 0 : index
    %85 = vector.load %arg12[%84, %c0_41, %c0_42] : memref<8x32x32xf32, #tpu.memory_space<vmem>>, vector<1x32x32xf32>
    %86 = vector.shape_cast %85 : vector<1x32x32xf32> to vector<32x32xf32>
    %87 = arith.addf %83, %86 : vector<32x32xf32>
    %c0_43 = arith.constant 0 : index
    %88 = arith.index_cast %c2_i32 : i32 to index
    %c0_44 = arith.constant 0 : index
    %89 = vector.load %arg5[%c0_43, %88, %c0_44] : memref<1x8x32xf32, #tpu.memory_space<vmem>>, vector<1x1x32xf32>
    %90 = vector.shape_cast %89 : vector<1x1x32xf32> to vector<32xf32>
    %91 = vector.shape_cast %90 : vector<32xf32> to vector<1x32xf32>
    %92 = vector.broadcast %91 : vector<1x32xf32> to vector<32x32xf32>
    %93 = arith.mulf %87, %92 : vector<32x32xf32>
    %cst_45 = arith.constant dense<0.000000e+00> : vector<32xf32>
    %94 = vector.multi_reduction <add>, %93, %cst_45 [1] : vector<32x32xf32> to vector<32xf32>
    %95 = vector.shape_cast %94 : vector<32xf32> to vector<1x32xf32>
    %96 = arith.index_cast %c2_i32 : i32 to index
    %c0_46 = arith.constant 0 : index
    %97 = vector.load %arg13[%96, %c0_46] : memref<8x32xf32, #tpu.memory_space<vmem>>, vector<1x32xf32>
    tpu.vector_store %arg13[%96, %c0_46], %95 {strides = array<i32>} : memref<8x32xf32, #tpu.memory_space<vmem>>, vector<1x32xf32>,
    %c3_i32 = arith.constant 3 : i32
    %98 = arith.index_cast %c3_i32 : i32 to index
    %c0_47 = arith.constant 0 : index
    %c0_48 = arith.constant 0 : index
    %99 = vector.load %arg11[%98, %c0_47, %c0_48] : memref<8x32x32xf32, #tpu.memory_space<vmem>>, vector<1x32x32xf32>
    %100 = vector.shape_cast %99 : vector<1x32x32xf32> to vector<32x32xf32>
    %101 = arith.mulf %100, %87 : vector<32x32xf32>
    %102 = arith.index_cast %c3_i32 : i32 to index
    %c0_49 = arith.constant 0 : index
    %c0_50 = arith.constant 0 : index
    %103 = vector.load %arg12[%102, %c0_49, %c0_50] : memref<8x32x32xf32, #tpu.memory_space<vmem>>, vector<1x32x32xf32>
    %104 = vector.shape_cast %103 : vector<1x32x32xf32> to vector<32x32xf32>
    %105 = arith.addf %101, %104 : vector<32x32xf32>
    %c0_51 = arith.constant 0 : index
    %106 = arith.index_cast %c3_i32 : i32 to index
    %c0_52 = arith.constant 0 : index
    %107 = vector.load %arg5[%c0_51, %106, %c0_52] : memref<1x8x32xf32, #tpu.memory_space<vmem>>, vector<1x1x32xf32>
    %108 = vector.shape_cast %107 : vector<1x1x32xf32> to vector<32xf32>
    %109 = vector.shape_cast %108 : vector<32xf32> to vector<1x32xf32>
    %110 = vector.broadcast %109 : vector<1x32xf32> to vector<32x32xf32>
    %111 = arith.mulf %105, %110 : vector<32x32xf32>
    %cst_53 = arith.constant dense<0.000000e+00> : vector<32xf32>
    %112 = vector.multi_reduction <add>, %111, %cst_53 [1] : vector<32x32xf32> to vector<32xf32>
    %113 = vector.shape_cast %112 : vector<32xf32> to vector<1x32xf32>
    %114 = arith.index_cast %c3_i32 : i32 to index
    %c0_54 = arith.constant 0 : index
    %115 = vector.load %arg13[%114, %c0_54] : memref<8x32xf32, #tpu.memory_space<vmem>>, vector<1x32xf32>
    tpu.vector_store %arg13[%114, %c0_54], %113 {strides = array<i32>} : memref<8x32xf32, #tpu.memory_space<vmem>>, vector<1x32xf32>,
    %c4_i32 = arith.constant 4 : i32
    %116 = arith.index_cast %c4_i32 : i32 to index
    %c0_55 = arith.constant 0 : index
    %c0_56 = arith.constant 0 : index
    %117 = vector.load %arg11[%116, %c0_55, %c0_56] : memref<8x32x32xf32, #tpu.memory_space<vmem>>, vector<1x32x32xf32>
    %118 = vector.shape_cast %117 : vector<1x32x32xf32> to vector<32x32xf32>
    %119 = arith.mulf %118, %105 : vector<32x32xf32>
    %120 = arith.index_cast %c4_i32 : i32 to index
    %c0_57 = arith.constant 0 : index
    %c0_58 = arith.constant 0 : index
    %121 = vector.load %arg12[%120, %c0_57, %c0_58] : memref<8x32x32xf32, #tpu.memory_space<vmem>>, vector<1x32x32xf32>
    %122 = vector.shape_cast %121 : vector<1x32x32xf32> to vector<32x32xf32>
    %123 = arith.addf %119, %122 : vector<32x32xf32>
    %c0_59 = arith.constant 0 : index
    %124 = arith.index_cast %c4_i32 : i32 to index
    %c0_60 = arith.constant 0 : index
    %125 = vector.load %arg5[%c0_59, %124, %c0_60] : memref<1x8x32xf32, #tpu.memory_space<vmem>>, vector<1x1x32xf32>
    %126 = vector.shape_cast %125 : vector<1x1x32xf32> to vector<32xf32>
    %127 = vector.shape_cast %126 : vector<32xf32> to vector<1x32xf32>
    %128 = vector.broadcast %127 : vector<1x32xf32> to vector<32x32xf32>
    %129 = arith.mulf %123, %128 : vector<32x32xf32>
    %cst_61 = arith.constant dense<0.000000e+00> : vector<32xf32>
    %130 = vector.multi_reduction <add>, %129, %cst_61 [1] : vector<32x32xf32> to vector<32xf32>
    %131 = vector.shape_cast %130 : vector<32xf32> to vector<1x32xf32>
    %132 = arith.index_cast %c4_i32 : i32 to index
    %c0_62 = arith.constant 0 : index
    %133 = vector.load %arg13[%132, %c0_62] : memref<8x32xf32, #tpu.memory_space<vmem>>, vector<1x32xf32>
    tpu.vector_store %arg13[%132, %c0_62], %131 {strides = array<i32>} : memref<8x32xf32, #tpu.memory_space<vmem>>, vector<1x32xf32>,
    %c5_i32 = arith.constant 5 : i32
    %134 = arith.index_cast %c5_i32 : i32 to index
    %c0_63 = arith.constant 0 : index
    %c0_64 = arith.constant 0 : index
    %135 = vector.load %arg11[%134, %c0_63, %c0_64] : memref<8x32x32xf32, #tpu.memory_space<vmem>>, vector<1x32x32xf32>
    %136 = vector.shape_cast %135 : vector<1x32x32xf32> to vector<32x32xf32>
    %137 = arith.mulf %136, %123 : vector<32x32xf32>
    %138 = arith.index_cast %c5_i32 : i32 to index
    %c0_65 = arith.constant 0 : index
    %c0_66 = arith.constant 0 : index
    %139 = vector.load %arg12[%138, %c0_65, %c0_66] : memref<8x32x32xf32, #tpu.memory_space<vmem>>, vector<1x32x32xf32>
    %140 = vector.shape_cast %139 : vector<1x32x32xf32> to vector<32x32xf32>
    %141 = arith.addf %137, %140 : vector<32x32xf32>
    %c0_67 = arith.constant 0 : index
    %142 = arith.index_cast %c5_i32 : i32 to index
    %c0_68 = arith.constant 0 : index
    %143 = vector.load %arg5[%c0_67, %142, %c0_68] : memref<1x8x32xf32, #tpu.memory_space<vmem>>, vector<1x1x32xf32>
    %144 = vector.shape_cast %143 : vector<1x1x32xf32> to vector<32xf32>
    %145 = vector.shape_cast %144 : vector<32xf32> to vector<1x32xf32>
    %146 = vector.broadcast %145 : vector<1x32xf32> to vector<32x32xf32>
    %147 = arith.mulf %141, %146 : vector<32x32xf32>
    %cst_69 = arith.constant dense<0.000000e+00> : vector<32xf32>
    %148 = vector.multi_reduction <add>, %147, %cst_69 [1] : vector<32x32xf32> to vector<32xf32>
    %149 = vector.shape_cast %148 : vector<32xf32> to vector<1x32xf32>
    %150 = arith.index_cast %c5_i32 : i32 to index
    %c0_70 = arith.constant 0 : index
    %151 = vector.load %arg13[%150, %c0_70] : memref<8x32xf32, #tpu.memory_space<vmem>>, vector<1x32xf32>
    tpu.vector_store %arg13[%150, %c0_70], %149 {strides = array<i32>} : memref<8x32xf32, #tpu.memory_space<vmem>>, vector<1x32xf32>,
    %c6_i32 = arith.constant 6 : i32
    %152 = arith.index_cast %c6_i32 : i32 to index
    %c0_71 = arith.constant 0 : index
    %c0_72 = arith.constant 0 : index
    %153 = vector.load %arg11[%152, %c0_71, %c0_72] : memref<8x32x32xf32, #tpu.memory_space<vmem>>, vector<1x32x32xf32>
    %154 = vector.shape_cast %153 : vector<1x32x32xf32> to vector<32x32xf32>
    %155 = arith.mulf %154, %141 : vector<32x32xf32>
    %156 = arith.index_cast %c6_i32 : i32 to index
    %c0_73 = arith.constant 0 : index
    %c0_74 = arith.constant 0 : index
    %157 = vector.load %arg12[%156, %c0_73, %c0_74] : memref<8x32x32xf32, #tpu.memory_space<vmem>>, vector<1x32x32xf32>
    %158 = vector.shape_cast %157 : vector<1x32x32xf32> to vector<32x32xf32>
    %159 = arith.addf %155, %158 : vector<32x32xf32>
    %c0_75 = arith.constant 0 : index
    %160 = arith.index_cast %c6_i32 : i32 to index
    %c0_76 = arith.constant 0 : index
    %161 = vector.load %arg5[%c0_75, %160, %c0_76] : memref<1x8x32xf32, #tpu.memory_space<vmem>>, vector<1x1x32xf32>
    %162 = vector.shape_cast %161 : vector<1x1x32xf32> to vector<32xf32>
    %163 = vector.shape_cast %162 : vector<32xf32> to vector<1x32xf32>
    %164 = vector.broadcast %163 : vector<1x32xf32> to vector<32x32xf32>
    %165 = arith.mulf %159, %164 : vector<32x32xf32>
    %cst_77 = arith.constant dense<0.000000e+00> : vector<32xf32>
    %166 = vector.multi_reduction <add>, %165, %cst_77 [1] : vector<32x32xf32> to vector<32xf32>
    %167 = vector.shape_cast %166 : vector<32xf32> to vector<1x32xf32>
    %168 = arith.index_cast %c6_i32 : i32 to index
    %c0_78 = arith.constant 0 : index
    %169 = vector.load %arg13[%168, %c0_78] : memref<8x32xf32, #tpu.memory_space<vmem>>, vector<1x32xf32>
    tpu.vector_store %arg13[%168, %c0_78], %167 {strides = array<i32>} : memref<8x32xf32, #tpu.memory_space<vmem>>, vector<1x32xf32>,
    %c7_i32 = arith.constant 7 : i32
    %170 = arith.index_cast %c7_i32 : i32 to index
    %c0_79 = arith.constant 0 : index
    %c0_80 = arith.constant 0 : index
    %171 = vector.load %arg11[%170, %c0_79, %c0_80] : memref<8x32x32xf32, #tpu.memory_space<vmem>>, vector<1x32x32xf32>
    %172 = vector.shape_cast %171 : vector<1x32x32xf32> to vector<32x32xf32>
    %173 = arith.mulf %172, %159 : vector<32x32xf32>
    %174 = arith.index_cast %c7_i32 : i32 to index
    %c0_81 = arith.constant 0 : index
    %c0_82 = arith.constant 0 : index
    %175 = vector.load %arg12[%174, %c0_81, %c0_82] : memref<8x32x32xf32, #tpu.memory_space<vmem>>, vector<1x32x32xf32>
    %176 = vector.shape_cast %175 : vector<1x32x32xf32> to vector<32x32xf32>
    %177 = arith.addf %173, %176 : vector<32x32xf32>
    %c0_83 = arith.constant 0 : index
    %178 = arith.index_cast %c7_i32 : i32 to index
    %c0_84 = arith.constant 0 : index
    %179 = vector.load %arg5[%c0_83, %178, %c0_84] : memref<1x8x32xf32, #tpu.memory_space<vmem>>, vector<1x1x32xf32>
    %180 = vector.shape_cast %179 : vector<1x1x32xf32> to vector<32xf32>
    %181 = vector.shape_cast %180 : vector<32xf32> to vector<1x32xf32>
    %182 = vector.broadcast %181 : vector<1x32xf32> to vector<32x32xf32>
    %183 = arith.mulf %177, %182 : vector<32x32xf32>
    %cst_85 = arith.constant dense<0.000000e+00> : vector<32xf32>
    %184 = vector.multi_reduction <add>, %183, %cst_85 [1] : vector<32x32xf32> to vector<32xf32>
    %185 = vector.shape_cast %184 : vector<32xf32> to vector<1x32xf32>
    %186 = arith.index_cast %c7_i32 : i32 to index
    %c0_86 = arith.constant 0 : index
    %187 = vector.load %arg13[%186, %c0_86] : memref<8x32xf32, #tpu.memory_space<vmem>>, vector<1x32xf32>
    tpu.vector_store %arg13[%186, %c0_86], %185 {strides = array<i32>} : memref<8x32xf32, #tpu.memory_space<vmem>>, vector<1x32xf32>,
    %c8_i32 = arith.constant 8 : i32
    %c0_87 = arith.constant 0 : index
    %c0_88 = arith.constant 0 : index
    %188 = vector.load %arg10[%c0_87, %c0_88] : memref<32x32xf32, #tpu.memory_space<vmem>>, vector<32x32xf32>
    tpu.vector_store %arg10[%c0_87, %c0_88], %177 {strides = array<i32>} : memref<32x32xf32, #tpu.memory_space<vmem>>, vector<32x32xf32>,
    %c0_89 = arith.constant 0 : index
    %c0_90 = arith.constant 0 : index
    %189 = vector.load %arg13[%c0_89, %c0_90] : memref<8x32xf32, #tpu.memory_space<vmem>>, vector<8x32xf32>
    %c0_91 = arith.constant 0 : index
    %c0_92 = arith.constant 0 : index
    %190 = vector.load %arg8[%c0_91, %c0_92] : memref<1x32xf32, #tpu.memory_space<vmem>>, vector<1x32xf32>
    %191 = vector.broadcast %190 : vector<1x32xf32> to vector<8x32xf32>
    %192 = arith.mulf %11, %191 : vector<8x32xf32>
    %193 = arith.addf %189, %192 : vector<8x32xf32>
    %c0_93 = arith.constant 0 : index
    %c0_94 = arith.constant 0 : index
    %c0_95 = arith.constant 0 : index
    %194 = vector.load %arg9[%c0_93, %c0_94, %c0_95] : memref<1x8x32xf32, #tpu.memory_space<vmem>>, vector<1x8x32xf32>
    %195 = vector.shape_cast %194 : vector<1x8x32xf32> to vector<8x32xf32>
    %196 = vector.shape_cast %193 : vector<8x32xf32> to vector<1x8x32xf32>
    tpu.vector_store %arg9[%c0_93, %c0_94, %c0_95], %196 {strides = array<i32>} : memref<1x8x32xf32, #tpu.memory_space<vmem>>, vector<1x8x32xf32>,
    return
  }
  func.func @transform_0(%arg0: i32, %arg1: i32) -> (i32, i32, i32) {
    %c0_i32 = arith.constant 0 : i32
    %c0_i32_0 = arith.constant 0 : i32
    return %arg0, %arg1, %c0_i32 : i32, i32, i32
  }
  func.func @transform_1(%arg0: i32, %arg1: i32) -> (i32, i32, i32) {
    %c0_i32 = arith.constant 0 : i32
    %c0_i32_0 = arith.constant 0 : i32
    return %arg0, %arg1, %c0_i32 : i32, i32, i32
  }
  func.func @transform_2(%arg0: i32, %arg1: i32) -> (i32, i32, i32) {
    %c0_i32 = arith.constant 0 : i32
    %c0_i32_0 = arith.constant 0 : i32
    return %arg0, %arg1, %c0_i32 : i32, i32, i32
  }
  func.func @transform_3(%arg0: i32, %arg1: i32) -> (i32, i32, i32) {
    %c0_i32 = arith.constant 0 : i32
    %c0_i32_0 = arith.constant 0 : i32
    return %arg0, %arg1, %c0_i32 : i32, i32, i32
  }
  func.func @transform_4(%arg0: i32, %arg1: i32) -> (i32, i32) {
    %c0_i32 = arith.constant 0 : i32
    %c0_i32_0 = arith.constant 0 : i32
    %c0_i32_1 = arith.constant 0 : i32
    return %c0_i32, %c0_i32_0 : i32, i32
  }
  func.func @transform_5(%arg0: i32, %arg1: i32) -> (i32, i32) {
    %c0_i32 = arith.constant 0 : i32
    %c0_i32_0 = arith.constant 0 : i32
    %c0_i32_1 = arith.constant 0 : i32
    return %c0_i32, %c0_i32_0 : i32, i32
  }
  func.func @transform_6(%arg0: i32, %arg1: i32) -> (i32, i32) {
    %c0_i32 = arith.constant 0 : i32
    %c0_i32_0 = arith.constant 0 : i32
    %c0_i32_1 = arith.constant 0 : i32
    return %c0_i32, %c0_i32_0 : i32, i32
  }
  func.func @transform_7(%arg0: i32, %arg1: i32) -> (i32, i32, i32) {
    %c0_i32 = arith.constant 0 : i32
    %c0_i32_0 = arith.constant 0 : i32
    return %arg0, %arg1, %c0_i32 : i32, i32, i32
  }
}

module attributes {stable_mosaic.version = 11 : i64} {
  func.func @_rms_inproj_kernel(%arg0: i32, %arg1: memref<16x32xf32, #tpu.memory_space<vmem>>, %arg2: memref<1x32xf32, #tpu.memory_space<vmem>>, %arg3: memref<32x64xf32, #tpu.memory_space<vmem>>, %arg4: memref<1x64xf32, #tpu.memory_space<vmem>>, %arg5: memref<16x64xf32, #tpu.memory_space<vmem>>) attributes {dimension_semantics = [#tpu.dimension_semantics<parallel>], iteration_bounds = array<i64: 2>, scalar_prefetch = 0 : i64, scratch_operands = 0 : i64, tpu.core_type = #tpu.core_type<tc>, window_params = [{transform_indices = @transform_0, window_bounds = array<i64: 16, 32>}, {pipeline_mode = #tpu.pipeline_mode<synchronous>, transform_indices = @transform_1, window_bounds = array<i64: 1, 32>}, {pipeline_mode = #tpu.pipeline_mode<synchronous>, transform_indices = @transform_2, window_bounds = array<i64: 32, 64>}, {pipeline_mode = #tpu.pipeline_mode<synchronous>, transform_indices = @transform_3, window_bounds = array<i64: 1, 64>}, {transform_indices = @transform_4, window_bounds = array<i64: 16, 64>}]} {
    %c0 = arith.constant 0 : index
    %c0_0 = arith.constant 0 : index
    %0 = vector.load %arg1[%c0, %c0_0] : memref<16x32xf32, #tpu.memory_space<vmem>>, vector<16x32xf32>
    %1 = arith.mulf %0, %0 : vector<16x32xf32>
    %cst = arith.constant dense<0.000000e+00> : vector<16xf32>
    %2 = vector.multi_reduction <add>, %1, %cst [1] : vector<16x32xf32> to vector<16xf32>
    %3 = vector.shape_cast %2 : vector<16xf32> to vector<16x1xf32>
    %cst_1 = arith.constant 3.200000e+01 : f32
    %4 = vector.broadcast %cst_1 : f32 to vector<16x1xf32>
    %5 = arith.divf %3, %4 : vector<16x1xf32>
    %cst_2 = arith.constant 9.99999974E-6 : f32
    %6 = vector.broadcast %cst_2 : f32 to vector<16x1xf32>
    %7 = arith.addf %5, %6 : vector<16x1xf32>
    %8 = math.rsqrt %7 : vector<16x1xf32>
    %9 = vector.broadcast %8 : vector<16x1xf32> to vector<16x32xf32>
    %10 = arith.mulf %0, %9 : vector<16x32xf32>
    %c0_3 = arith.constant 0 : index
    %c0_4 = arith.constant 0 : index
    %11 = vector.load %arg2[%c0_3, %c0_4] : memref<1x32xf32, #tpu.memory_space<vmem>>, vector<1x32xf32>
    %12 = vector.broadcast %11 : vector<1x32xf32> to vector<16x32xf32>
    %13 = arith.mulf %10, %12 : vector<16x32xf32>
    %c0_5 = arith.constant 0 : index
    %c0_6 = arith.constant 0 : index
    %14 = vector.load %arg3[%c0_5, %c0_6] : memref<32x64xf32, #tpu.memory_space<vmem>>, vector<32x64xf32>
    %cst_7 = arith.constant dense<0.000000e+00> : vector<16x64xf32>
    %15 = tpu.matmul %13, %14, %cst_7 {dimension_numbers = #tpu.dot_dimension_numbers<[1], [0], [0], [1], [0, 0, 1, 1], [], []>} : vector<16x32xf32>, vector<32x64xf32>, vector<16x64xf32> -> vector<16x64xf32>
    %c0_8 = arith.constant 0 : index
    %c0_9 = arith.constant 0 : index
    %16 = vector.load %arg4[%c0_8, %c0_9] : memref<1x64xf32, #tpu.memory_space<vmem>>, vector<1x64xf32>
    %17 = vector.broadcast %16 : vector<1x64xf32> to vector<16x64xf32>
    %18 = arith.addf %15, %17 : vector<16x64xf32>
    %19 = tpu.iota {dimensions = array<i32: 1>} : vector<16x64xi32>
    %c32_i32 = arith.constant 32 : i32
    %20 = vector.broadcast %c32_i32 : i32 to vector<16x64xi32>
    %21 = arith.cmpi slt, %19, %20 : vector<16x64xi32>
    %22 = arith.negf %18 : vector<16x64xf32>
    %23 = math.exp %22 : vector<16x64xf32>
    %cst_10 = arith.constant 1.000000e+00 : f32
    %24 = vector.broadcast %cst_10 : f32 to vector<16x64xf32>
    %25 = arith.addf %24, %23 : vector<16x64xf32>
    %26 = arith.divf %24, %25 : vector<16x64xf32>
    %27 = arith.mulf %18, %26 : vector<16x64xf32>
    %28 = arith.select %21, %18, %27 : vector<16x64xi1>, vector<16x64xf32>
    %c0_11 = arith.constant 0 : index
    %c0_12 = arith.constant 0 : index
    %29 = vector.load %arg5[%c0_11, %c0_12] : memref<16x64xf32, #tpu.memory_space<vmem>>, vector<16x64xf32>
    tpu.vector_store %arg5[%c0_11, %c0_12], %28 {strides = array<i32>} : memref<16x64xf32, #tpu.memory_space<vmem>>, vector<16x64xf32>,
    return
  }
  func.func @transform_0(%arg0: i32) -> (i32, i32) {
    %c0_i32 = arith.constant 0 : i32
    %c0_i32_0 = arith.constant 0 : i32
    return %arg0, %c0_i32 : i32, i32
  }
  func.func @transform_1(%arg0: i32) -> (i32, i32) {
    %c0_i32 = arith.constant 0 : i32
    %c0_i32_0 = arith.constant 0 : i32
    %c0_i32_1 = arith.constant 0 : i32
    return %c0_i32, %c0_i32_0 : i32, i32
  }
  func.func @transform_2(%arg0: i32) -> (i32, i32) {
    %c0_i32 = arith.constant 0 : i32
    %c0_i32_0 = arith.constant 0 : i32
    %c0_i32_1 = arith.constant 0 : i32
    return %c0_i32, %c0_i32_0 : i32, i32
  }
  func.func @transform_3(%arg0: i32) -> (i32, i32) {
    %c0_i32 = arith.constant 0 : i32
    %c0_i32_0 = arith.constant 0 : i32
    %c0_i32_1 = arith.constant 0 : i32
    return %c0_i32, %c0_i32_0 : i32, i32
  }
  func.func @transform_4(%arg0: i32) -> (i32, i32) {
    %c0_i32 = arith.constant 0 : i32
    %c0_i32_0 = arith.constant 0 : i32
    return %arg0, %c0_i32 : i32, i32
  }
}

module attributes {stable_mosaic.version = 11 : i64} {
  func.func @_dwconv_silu_kernel(%arg0: i32, %arg1: memref<1x16x32xf32, #tpu.memory_space<vmem>>, %arg2: memref<3x32xf32, #tpu.memory_space<vmem>>, %arg3: memref<1x32xf32, #tpu.memory_space<vmem>>, %arg4: memref<1x16x32xf32, #tpu.memory_space<vmem>>) attributes {dimension_semantics = [#tpu.dimension_semantics<parallel>], iteration_bounds = array<i64: 2>, scalar_prefetch = 0 : i64, scratch_operands = 0 : i64, tpu.core_type = #tpu.core_type<tc>, window_params = [{transform_indices = @transform_0, window_bounds = array<i64: 1, 16, 32>}, {pipeline_mode = #tpu.pipeline_mode<synchronous>, transform_indices = @transform_1, window_bounds = array<i64: 3, 32>}, {pipeline_mode = #tpu.pipeline_mode<synchronous>, transform_indices = @transform_2, window_bounds = array<i64: 1, 32>}, {transform_indices = @transform_3, window_bounds = array<i64: 1, 16, 32>}]} {
    %c0 = arith.constant 0 : index
    %c0_0 = arith.constant 0 : index
    %c0_1 = arith.constant 0 : index
    %0 = vector.load %arg1[%c0, %c0_0, %c0_1] : memref<1x16x32xf32, #tpu.memory_space<vmem>>, vector<1x16x32xf32>
    %1 = vector.shape_cast %0 : vector<1x16x32xf32> to vector<16x32xf32>
    %cst = arith.constant 0.000000e+00 : f32
    %2 = vector.broadcast %cst : f32 to vector<14x32xf32>
    %c0_2 = arith.constant 0 : index
    %c0_3 = arith.constant 0 : index
    %3 = vector.load %arg3[%c0_2, %c0_3] : memref<1x32xf32, #tpu.memory_space<vmem>>, vector<1x32xf32>
    %4 = vector.broadcast %3 : vector<1x32xf32> to vector<14x32xf32>
    %5 = arith.addf %2, %4 : vector<14x32xf32>
    %6 = vector.extract_strided_slice %1 {offsets = [0, 0], sizes = [14, 32], strides = [1, 1]} : vector<16x32xf32> to vector<14x32xf32>
    %c0_4 = arith.constant 0 : index
    %c0_5 = arith.constant 0 : index
    %7 = vector.load %arg2[%c0_4, %c0_5] : memref<3x32xf32, #tpu.memory_space<vmem>>, vector<1x32xf32>
    %8 = vector.shape_cast %7 : vector<1x32xf32> to vector<32xf32>
    %9 = vector.shape_cast %8 : vector<32xf32> to vector<1x32xf32>
    %10 = vector.broadcast %9 : vector<1x32xf32> to vector<14x32xf32>
    %11 = arith.mulf %6, %10 : vector<14x32xf32>
    %12 = arith.addf %5, %11 : vector<14x32xf32>
    %13 = vector.extract_strided_slice %1 {offsets = [1, 0], sizes = [14, 32], strides = [1, 1]} : vector<16x32xf32> to vector<14x32xf32>
    %c1 = arith.constant 1 : index
    %c0_6 = arith.constant 0 : index
    %14 = vector.load %arg2[%c1, %c0_6] : memref<3x32xf32, #tpu.memory_space<vmem>>, vector<1x32xf32>
    %15 = vector.shape_cast %14 : vector<1x32xf32> to vector<32xf32>
    %16 = vector.shape_cast %15 : vector<32xf32> to vector<1x32xf32>
    %17 = vector.broadcast %16 : vector<1x32xf32> to vector<14x32xf32>
    %18 = arith.mulf %13, %17 : vector<14x32xf32>
    %19 = arith.addf %12, %18 : vector<14x32xf32>
    %20 = vector.extract_strided_slice %1 {offsets = [2, 0], sizes = [14, 32], strides = [1, 1]} : vector<16x32xf32> to vector<14x32xf32>
    %c2 = arith.constant 2 : index
    %c0_7 = arith.constant 0 : index
    %21 = vector.load %arg2[%c2, %c0_7] : memref<3x32xf32, #tpu.memory_space<vmem>>, vector<1x32xf32>
    %22 = vector.shape_cast %21 : vector<1x32xf32> to vector<32xf32>
    %23 = vector.shape_cast %22 : vector<32xf32> to vector<1x32xf32>
    %24 = vector.broadcast %23 : vector<1x32xf32> to vector<14x32xf32>
    %25 = arith.mulf %20, %24 : vector<14x32xf32>
    %26 = arith.addf %19, %25 : vector<14x32xf32>
    %27 = arith.negf %26 : vector<14x32xf32>
    %28 = math.exp %27 : vector<14x32xf32>
    %cst_8 = arith.constant 1.000000e+00 : f32
    %29 = vector.broadcast %cst_8 : f32 to vector<14x32xf32>
    %30 = arith.addf %29, %28 : vector<14x32xf32>
    %31 = arith.divf %29, %30 : vector<14x32xf32>
    %32 = arith.mulf %26, %31 : vector<14x32xf32>
    %c0_9 = arith.constant 0 : index
    %c0_10 = arith.constant 0 : index
    %c0_11 = arith.constant 0 : index
    %33 = vector.load %arg4[%c0_9, %c0_10, %c0_11] : memref<1x16x32xf32, #tpu.memory_space<vmem>>, vector<1x14x32xf32>
    %34 = vector.shape_cast %33 : vector<1x14x32xf32> to vector<14x32xf32>
    %35 = vector.shape_cast %32 : vector<14x32xf32> to vector<1x14x32xf32>
    tpu.vector_store %arg4[%c0_9, %c0_10, %c0_11], %35 {strides = array<i32>} : memref<1x16x32xf32, #tpu.memory_space<vmem>>, vector<1x14x32xf32>,
    %cst_12 = arith.constant 0.000000e+00 : f32
    %36 = vector.broadcast %cst_12 : f32 to vector<2x32xf32>
    %c0_13 = arith.constant 0 : index
    %c14 = arith.constant 14 : index
    %c0_14 = arith.constant 0 : index
    %37 = vector.load %arg4[%c0_13, %c14, %c0_14] : memref<1x16x32xf32, #tpu.memory_space<vmem>>, vector<1x2x32xf32>
    %38 = vector.shape_cast %37 : vector<1x2x32xf32> to vector<2x32xf32>
    %39 = vector.shape_cast %36 : vector<2x32xf32> to vector<1x2x32xf32>
    tpu.vector_store %arg4[%c0_13, %c14, %c0_14], %39 {strides = array<i32>} : memref<1x16x32xf32, #tpu.memory_space<vmem>>, vector<1x2x32xf32>,
    return
  }
  func.func @transform_0(%arg0: i32) -> (i32, i32, i32) {
    %c0_i32 = arith.constant 0 : i32
    %c0_i32_0 = arith.constant 0 : i32
    %c0_i32_1 = arith.constant 0 : i32
    return %arg0, %c0_i32, %c0_i32_0 : i32, i32, i32
  }
  func.func @transform_1(%arg0: i32) -> (i32, i32) {
    %c0_i32 = arith.constant 0 : i32
    %c0_i32_0 = arith.constant 0 : i32
    %c0_i32_1 = arith.constant 0 : i32
    return %c0_i32, %c0_i32_0 : i32, i32
  }
  func.func @transform_2(%arg0: i32) -> (i32, i32) {
    %c0_i32 = arith.constant 0 : i32
    %c0_i32_0 = arith.constant 0 : i32
    %c0_i32_1 = arith.constant 0 : i32
    return %c0_i32, %c0_i32_0 : i32, i32
  }
  func.func @transform_3(%arg0: i32) -> (i32, i32, i32) {
    %c0_i32 = arith.constant 0 : i32
    %c0_i32_0 = arith.constant 0 : i32
    %c0_i32_1 = arith.constant 0 : i32
    return %arg0, %c0_i32, %c0_i32_0 : i32, i32, i32
  }
}

module attributes {stable_mosaic.version = 11 : i64} {
  func.func @_xproj_kernel(%arg0: i32, %arg1: memref<16x32xf32, #tpu.memory_space<vmem>>, %arg2: memref<32x64xf32, #tpu.memory_space<vmem>>, %arg3: memref<1x64xf32, #tpu.memory_space<vmem>>, %arg4: memref<32x2xf32, #tpu.memory_space<vmem>>, %arg5: memref<1x2xf32, #tpu.memory_space<vmem>>, %arg6: memref<2x32xf32, #tpu.memory_space<vmem>>, %arg7: memref<1x32xf32, #tpu.memory_space<vmem>>, %arg8: memref<16x64xf32, #tpu.memory_space<vmem>>, %arg9: memref<16x32xf32, #tpu.memory_space<vmem>>) attributes {dimension_semantics = [#tpu.dimension_semantics<parallel>], iteration_bounds = array<i64: 2>, scalar_prefetch = 0 : i64, scratch_operands = 0 : i64, tpu.core_type = #tpu.core_type<tc>, window_params = [{transform_indices = @transform_0, window_bounds = array<i64: 16, 32>}, {pipeline_mode = #tpu.pipeline_mode<synchronous>, transform_indices = @transform_1, window_bounds = array<i64: 32, 64>}, {pipeline_mode = #tpu.pipeline_mode<synchronous>, transform_indices = @transform_2, window_bounds = array<i64: 1, 64>}, {pipeline_mode = #tpu.pipeline_mode<synchronous>, transform_indices = @transform_3, window_bounds = array<i64: 32, 2>}, {pipeline_mode = #tpu.pipeline_mode<synchronous>, transform_indices = @transform_4, window_bounds = array<i64: 1, 2>}, {pipeline_mode = #tpu.pipeline_mode<synchronous>, transform_indices = @transform_5, window_bounds = array<i64: 2, 32>}, {pipeline_mode = #tpu.pipeline_mode<synchronous>, transform_indices = @transform_6, window_bounds = array<i64: 1, 32>}, {transform_indices = @transform_7, window_bounds = array<i64: 16, 64>}, {transform_indices = @transform_8, window_bounds = array<i64: 16, 32>}]} {
    %c0 = arith.constant 0 : index
    %c0_0 = arith.constant 0 : index
    %0 = vector.load %arg1[%c0, %c0_0] : memref<16x32xf32, #tpu.memory_space<vmem>>, vector<16x32xf32>
    %c0_1 = arith.constant 0 : index
    %c0_2 = arith.constant 0 : index
    %1 = vector.load %arg2[%c0_1, %c0_2] : memref<32x64xf32, #tpu.memory_space<vmem>>, vector<32x64xf32>
    %cst = arith.constant dense<0.000000e+00> : vector<16x64xf32>
    %2 = tpu.matmul %0, %1, %cst {dimension_numbers = #tpu.dot_dimension_numbers<[1], [0], [0], [1], [0, 0, 1, 1], [], []>} : vector<16x32xf32>, vector<32x64xf32>, vector<16x64xf32> -> vector<16x64xf32>
    %c0_3 = arith.constant 0 : index
    %c0_4 = arith.constant 0 : index
    %3 = vector.load %arg3[%c0_3, %c0_4] : memref<1x64xf32, #tpu.memory_space<vmem>>, vector<1x64xf32>
    %4 = vector.broadcast %3 : vector<1x64xf32> to vector<16x64xf32>
    %5 = arith.addf %2, %4 : vector<16x64xf32>
    %c0_5 = arith.constant 0 : index
    %c0_6 = arith.constant 0 : index
    %6 = vector.load %arg8[%c0_5, %c0_6] : memref<16x64xf32, #tpu.memory_space<vmem>>, vector<16x64xf32>
    tpu.vector_store %arg8[%c0_5, %c0_6], %5 {strides = array<i32>} : memref<16x64xf32, #tpu.memory_space<vmem>>, vector<16x64xf32>,
    %c0_7 = arith.constant 0 : index
    %c0_8 = arith.constant 0 : index
    %7 = vector.load %arg4[%c0_7, %c0_8] : memref<32x2xf32, #tpu.memory_space<vmem>>, vector<32x2xf32>
    %cst_9 = arith.constant dense<0.000000e+00> : vector<16x2xf32>
    %8 = tpu.matmul %0, %7, %cst_9 {dimension_numbers = #tpu.dot_dimension_numbers<[1], [0], [0], [1], [0, 0, 1, 1], [], []>} : vector<16x32xf32>, vector<32x2xf32>, vector<16x2xf32> -> vector<16x2xf32>
    %c0_10 = arith.constant 0 : index
    %c0_11 = arith.constant 0 : index
    %9 = vector.load %arg5[%c0_10, %c0_11] : memref<1x2xf32, #tpu.memory_space<vmem>>, vector<1x2xf32>
    %10 = vector.broadcast %9 : vector<1x2xf32> to vector<16x2xf32>
    %11 = arith.addf %8, %10 : vector<16x2xf32>
    %c0_12 = arith.constant 0 : index
    %c0_13 = arith.constant 0 : index
    %12 = vector.load %arg6[%c0_12, %c0_13] : memref<2x32xf32, #tpu.memory_space<vmem>>, vector<2x32xf32>
    %cst_14 = arith.constant dense<0.000000e+00> : vector<16x32xf32>
    %13 = tpu.matmul %11, %12, %cst_14 {dimension_numbers = #tpu.dot_dimension_numbers<[1], [0], [0], [1], [0, 0, 1, 1], [], []>} : vector<16x2xf32>, vector<2x32xf32>, vector<16x32xf32> -> vector<16x32xf32>
    %c0_15 = arith.constant 0 : index
    %c0_16 = arith.constant 0 : index
    %14 = vector.load %arg7[%c0_15, %c0_16] : memref<1x32xf32, #tpu.memory_space<vmem>>, vector<1x32xf32>
    %15 = vector.broadcast %14 : vector<1x32xf32> to vector<16x32xf32>
    %16 = arith.addf %13, %15 : vector<16x32xf32>
    %cst_17 = arith.constant 2.000000e+01 : f32
    %17 = vector.broadcast %cst_17 : f32 to vector<16x32xf32>
    %18 = arith.cmpf ogt, %16, %17 : vector<16x32xf32>
    %cst_18 = arith.constant 2.000000e+01 : f32
    %19 = vector.broadcast %cst_18 : f32 to vector<16x32xf32>
    %20 = arith.minimumf %16, %19 : vector<16x32xf32>
    %21 = math.exp %20 : vector<16x32xf32>
    %22 = math.log1p %21 : vector<16x32xf32>
    %23 = arith.select %18, %16, %22 : vector<16x32xi1>, vector<16x32xf32>
    %c0_19 = arith.constant 0 : index
    %c0_20 = arith.constant 0 : index
    %24 = vector.load %arg9[%c0_19, %c0_20] : memref<16x32xf32, #tpu.memory_space<vmem>>, vector<16x32xf32>
    tpu.vector_store %arg9[%c0_19, %c0_20], %23 {strides = array<i32>} : memref<16x32xf32, #tpu.memory_space<vmem>>, vector<16x32xf32>,
    return
  }
  func.func @transform_0(%arg0: i32) -> (i32, i32) {
    %c0_i32 = arith.constant 0 : i32
    %c0_i32_0 = arith.constant 0 : i32
    return %arg0, %c0_i32 : i32, i32
  }
  func.func @transform_1(%arg0: i32) -> (i32, i32) {
    %c0_i32 = arith.constant 0 : i32
    %c0_i32_0 = arith.constant 0 : i32
    %c0_i32_1 = arith.constant 0 : i32
    return %c0_i32, %c0_i32_0 : i32, i32
  }
  func.func @transform_2(%arg0: i32) -> (i32, i32) {
    %c0_i32 = arith.constant 0 : i32
    %c0_i32_0 = arith.constant 0 : i32
    %c0_i32_1 = arith.constant 0 : i32
    return %c0_i32, %c0_i32_0 : i32, i32
  }
  func.func @transform_3(%arg0: i32) -> (i32, i32) {
    %c0_i32 = arith.constant 0 : i32
    %c0_i32_0 = arith.constant 0 : i32
    %c0_i32_1 = arith.constant 0 : i32
    return %c0_i32, %c0_i32_0 : i32, i32
  }
  func.func @transform_4(%arg0: i32) -> (i32, i32) {
    %c0_i32 = arith.constant 0 : i32
    %c0_i32_0 = arith.constant 0 : i32
    %c0_i32_1 = arith.constant 0 : i32
    return %c0_i32, %c0_i32_0 : i32, i32
  }
  func.func @transform_5(%arg0: i32) -> (i32, i32) {
    %c0_i32 = arith.constant 0 : i32
    %c0_i32_0 = arith.constant 0 : i32
    %c0_i32_1 = arith.constant 0 : i32
    return %c0_i32, %c0_i32_0 : i32, i32
  }
  func.func @transform_6(%arg0: i32) -> (i32, i32) {
    %c0_i32 = arith.constant 0 : i32
    %c0_i32_0 = arith.constant 0 : i32
    %c0_i32_1 = arith.constant 0 : i32
    return %c0_i32, %c0_i32_0 : i32, i32
  }
  func.func @transform_7(%arg0: i32) -> (i32, i32) {
    %c0_i32 = arith.constant 0 : i32
    %c0_i32_0 = arith.constant 0 : i32
    return %arg0, %c0_i32 : i32, i32
  }
  func.func @transform_8(%arg0: i32) -> (i32, i32) {
    %c0_i32 = arith.constant 0 : i32
    %c0_i32_0 = arith.constant 0 : i32
    return %arg0, %c0_i32 : i32, i32
  }
}

module attributes {stable_mosaic.version = 11 : i64} {
  func.func @_gate_out_kernel(%arg0: i32, %arg1: memref<16x32xf32, #tpu.memory_space<vmem>>, %arg2: memref<16x32xf32, #tpu.memory_space<vmem>>, %arg3: memref<32x32xf32, #tpu.memory_space<vmem>>, %arg4: memref<1x32xf32, #tpu.memory_space<vmem>>, %arg5: memref<16x32xf32, #tpu.memory_space<vmem>>, %arg6: memref<16x32xf32, #tpu.memory_space<vmem>>) attributes {dimension_semantics = [#tpu.dimension_semantics<parallel>], iteration_bounds = array<i64: 2>, scalar_prefetch = 0 : i64, scratch_operands = 0 : i64, tpu.core_type = #tpu.core_type<tc>, window_params = [{transform_indices = @transform_0, window_bounds = array<i64: 16, 32>}, {transform_indices = @transform_1, window_bounds = array<i64: 16, 32>}, {pipeline_mode = #tpu.pipeline_mode<synchronous>, transform_indices = @transform_2, window_bounds = array<i64: 32, 32>}, {pipeline_mode = #tpu.pipeline_mode<synchronous>, transform_indices = @transform_3, window_bounds = array<i64: 1, 32>}, {transform_indices = @transform_4, window_bounds = array<i64: 16, 32>}, {transform_indices = @transform_5, window_bounds = array<i64: 16, 32>}]} {
    %c0 = arith.constant 0 : index
    %c0_0 = arith.constant 0 : index
    %0 = vector.load %arg1[%c0, %c0_0] : memref<16x32xf32, #tpu.memory_space<vmem>>, vector<16x32xf32>
    %c0_1 = arith.constant 0 : index
    %c0_2 = arith.constant 0 : index
    %1 = vector.load %arg2[%c0_1, %c0_2] : memref<16x32xf32, #tpu.memory_space<vmem>>, vector<16x32xf32>
    %2 = arith.mulf %0, %1 : vector<16x32xf32>
    %c0_3 = arith.constant 0 : index
    %c0_4 = arith.constant 0 : index
    %3 = vector.load %arg3[%c0_3, %c0_4] : memref<32x32xf32, #tpu.memory_space<vmem>>, vector<32x32xf32>
    %cst = arith.constant dense<0.000000e+00> : vector<16x32xf32>
    %4 = tpu.matmul %2, %3, %cst {dimension_numbers = #tpu.dot_dimension_numbers<[1], [0], [0], [1], [0, 0, 1, 1], [], []>} : vector<16x32xf32>, vector<32x32xf32>, vector<16x32xf32> -> vector<16x32xf32>
    %c0_5 = arith.constant 0 : index
    %c0_6 = arith.constant 0 : index
    %5 = vector.load %arg4[%c0_5, %c0_6] : memref<1x32xf32, #tpu.memory_space<vmem>>, vector<1x32xf32>
    %6 = vector.broadcast %5 : vector<1x32xf32> to vector<16x32xf32>
    %7 = arith.addf %4, %6 : vector<16x32xf32>
    %c0_7 = arith.constant 0 : index
    %c0_8 = arith.constant 0 : index
    %8 = vector.load %arg5[%c0_7, %c0_8] : memref<16x32xf32, #tpu.memory_space<vmem>>, vector<16x32xf32>
    %9 = arith.addf %7, %8 : vector<16x32xf32>
    %c0_9 = arith.constant 0 : index
    %c0_10 = arith.constant 0 : index
    %10 = vector.load %arg6[%c0_9, %c0_10] : memref<16x32xf32, #tpu.memory_space<vmem>>, vector<16x32xf32>
    tpu.vector_store %arg6[%c0_9, %c0_10], %9 {strides = array<i32>} : memref<16x32xf32, #tpu.memory_space<vmem>>, vector<16x32xf32>,
    return
  }
  func.func @transform_0(%arg0: i32) -> (i32, i32) {
    %c0_i32 = arith.constant 0 : i32
    %c0_i32_0 = arith.constant 0 : i32
    return %arg0, %c0_i32 : i32, i32
  }
  func.func @transform_1(%arg0: i32) -> (i32, i32) {
    %c0_i32 = arith.constant 0 : i32
    %c0_i32_0 = arith.constant 0 : i32
    return %arg0, %c0_i32 : i32, i32
  }
  func.func @transform_2(%arg0: i32) -> (i32, i32) {
    %c0_i32 = arith.constant 0 : i32
    %c0_i32_0 = arith.constant 0 : i32
    %c0_i32_1 = arith.constant 0 : i32
    return %c0_i32, %c0_i32_0 : i32, i32
  }
  func.func @transform_3(%arg0: i32) -> (i32, i32) {
    %c0_i32 = arith.constant 0 : i32
    %c0_i32_0 = arith.constant 0 : i32
    %c0_i32_1 = arith.constant 0 : i32
    return %c0_i32, %c0_i32_0 : i32, i32
  }
  func.func @transform_4(%arg0: i32) -> (i32, i32) {
    %c0_i32 = arith.constant 0 : i32
    %c0_i32_0 = arith.constant 0 : i32
    return %arg0, %c0_i32 : i32, i32
  }
  func.func @transform_5(%arg0: i32) -> (i32, i32) {
    %c0_i32 = arith.constant 0 : i32
    %c0_i32_0 = arith.constant 0 : i32
    return %arg0, %c0_i32 : i32, i32
  }
}

module attributes {stable_mosaic.version = 11 : i64} {
  func.func @_rms_linear_kernel(%arg0: i32, %arg1: memref<16x32xf32, #tpu.memory_space<vmem>>, %arg2: memref<1x32xf32, #tpu.memory_space<vmem>>, %arg3: memref<32x64xf32, #tpu.memory_space<vmem>>, %arg4: memref<1x64xf32, #tpu.memory_space<vmem>>, %arg5: memref<16x64xf32, #tpu.memory_space<vmem>>) attributes {dimension_semantics = [#tpu.dimension_semantics<parallel>], iteration_bounds = array<i64: 2>, scalar_prefetch = 0 : i64, scratch_operands = 0 : i64, tpu.core_type = #tpu.core_type<tc>, window_params = [{transform_indices = @transform_0, window_bounds = array<i64: 16, 32>}, {pipeline_mode = #tpu.pipeline_mode<synchronous>, transform_indices = @transform_1, window_bounds = array<i64: 1, 32>}, {pipeline_mode = #tpu.pipeline_mode<synchronous>, transform_indices = @transform_2, window_bounds = array<i64: 32, 64>}, {pipeline_mode = #tpu.pipeline_mode<synchronous>, transform_indices = @transform_3, window_bounds = array<i64: 1, 64>}, {transform_indices = @transform_4, window_bounds = array<i64: 16, 64>}]} {
    %c0 = arith.constant 0 : index
    %c0_0 = arith.constant 0 : index
    %0 = vector.load %arg1[%c0, %c0_0] : memref<16x32xf32, #tpu.memory_space<vmem>>, vector<16x32xf32>
    %1 = arith.mulf %0, %0 : vector<16x32xf32>
    %cst = arith.constant dense<0.000000e+00> : vector<16xf32>
    %2 = vector.multi_reduction <add>, %1, %cst [1] : vector<16x32xf32> to vector<16xf32>
    %3 = vector.shape_cast %2 : vector<16xf32> to vector<16x1xf32>
    %cst_1 = arith.constant 3.200000e+01 : f32
    %4 = vector.broadcast %cst_1 : f32 to vector<16x1xf32>
    %5 = arith.divf %3, %4 : vector<16x1xf32>
    %cst_2 = arith.constant 9.99999974E-6 : f32
    %6 = vector.broadcast %cst_2 : f32 to vector<16x1xf32>
    %7 = arith.addf %5, %6 : vector<16x1xf32>
    %8 = math.rsqrt %7 : vector<16x1xf32>
    %9 = vector.broadcast %8 : vector<16x1xf32> to vector<16x32xf32>
    %10 = arith.mulf %0, %9 : vector<16x32xf32>
    %c0_3 = arith.constant 0 : index
    %c0_4 = arith.constant 0 : index
    %11 = vector.load %arg2[%c0_3, %c0_4] : memref<1x32xf32, #tpu.memory_space<vmem>>, vector<1x32xf32>
    %12 = vector.broadcast %11 : vector<1x32xf32> to vector<16x32xf32>
    %13 = arith.mulf %10, %12 : vector<16x32xf32>
    %c0_5 = arith.constant 0 : index
    %c0_6 = arith.constant 0 : index
    %14 = vector.load %arg3[%c0_5, %c0_6] : memref<32x64xf32, #tpu.memory_space<vmem>>, vector<32x64xf32>
    %cst_7 = arith.constant dense<0.000000e+00> : vector<16x64xf32>
    %15 = tpu.matmul %13, %14, %cst_7 {dimension_numbers = #tpu.dot_dimension_numbers<[1], [0], [0], [1], [0, 0, 1, 1], [], []>} : vector<16x32xf32>, vector<32x64xf32>, vector<16x64xf32> -> vector<16x64xf32>
    %c0_8 = arith.constant 0 : index
    %c0_9 = arith.constant 0 : index
    %16 = vector.load %arg4[%c0_8, %c0_9] : memref<1x64xf32, #tpu.memory_space<vmem>>, vector<1x64xf32>
    %17 = vector.broadcast %16 : vector<1x64xf32> to vector<16x64xf32>
    %18 = arith.addf %15, %17 : vector<16x64xf32>
    %c0_10 = arith.constant 0 : index
    %c0_11 = arith.constant 0 : index
    %19 = vector.load %arg5[%c0_10, %c0_11] : memref<16x64xf32, #tpu.memory_space<vmem>>, vector<16x64xf32>
    tpu.vector_store %arg5[%c0_10, %c0_11], %18 {strides = array<i32>} : memref<16x64xf32, #tpu.memory_space<vmem>>, vector<16x64xf32>,
    return
  }
  func.func @transform_0(%arg0: i32) -> (i32, i32) {
    %c0_i32 = arith.constant 0 : i32
    %c0_i32_0 = arith.constant 0 : i32
    return %arg0, %c0_i32 : i32, i32
  }
  func.func @transform_1(%arg0: i32) -> (i32, i32) {
    %c0_i32 = arith.constant 0 : i32
    %c0_i32_0 = arith.constant 0 : i32
    %c0_i32_1 = arith.constant 0 : i32
    return %c0_i32, %c0_i32_0 : i32, i32
  }
  func.func @transform_2(%arg0: i32) -> (i32, i32) {
    %c0_i32 = arith.constant 0 : i32
    %c0_i32_0 = arith.constant 0 : i32
    %c0_i32_1 = arith.constant 0 : i32
    return %c0_i32, %c0_i32_0 : i32, i32
  }
  func.func @transform_3(%arg0: i32) -> (i32, i32) {
    %c0_i32 = arith.constant 0 : i32
    %c0_i32_0 = arith.constant 0 : i32
    %c0_i32_1 = arith.constant 0 : i32
    return %c0_i32, %c0_i32_0 : i32, i32
  }
  func.func @transform_4(%arg0: i32) -> (i32, i32) {
    %c0_i32 = arith.constant 0 : i32
    %c0_i32_0 = arith.constant 0 : i32
    return %arg0, %c0_i32 : i32, i32
  }
}

</mosaic_0001>

<llo_original>
// kernel: mamba_forward.12
$region0: #{mamba_forward.12}
  #allocation0 [shape = 'u32[]', space=smem, size = 0x4, offset = 0x4, fixed_abs, tag = 'smem constant byte address 0x4 - core index']
  #allocation1 [shape = 'u32[144,128]{1,0:T(1,128)}', space=vmem, size = 0x12000, scoped, tag = 'internal scratch']
  %s0 = inlined_call_operand.vmem [shape: f32[2,16,32], index: 0, kind: input, shape index: {}]
  %s1 = inlined_call_operand.vmem [shape: f32[3,32], index: 1, kind: input, shape index: {}]
  %s2 = inlined_call_operand.vmem [shape: f32[1,32], index: 2, kind: input, shape index: {}]
  %s3 = inlined_call_operand.vmem [shape: f32[2,16,32], index: 3, kind: output, shape index: {}]
  %s4 = sld [smem:[#allocation0]]
  $region45: #{mamba_forward.12} parent=0
    _
  %s6 = ssub.s32 1, %s4
  %s7 = scalar_select 0, %s6, %s4
  loop: start=0, step=1, limit=4
  $region2: #{mamba_forward.12} parent=0 // loop_pre_header
    _
  $region3: #{mamba_forward.12} parent=0 // loop_header
    %s9 = sphi 0, %s13
    %p10 = scmp.ge.s32.totalorder %s9, 4
    %s19 = sphi 0, %s21
    %s22 = sphi 0, %s19
    %s23 = sphi 0, %s22
    %s39 = sphi 0, %s23
    %s43 = sphi 0, %s43
    %s45 = sphi 0, %s43
    %s46 = sphi 0, %s45
    %s60 = sphi 0, %s46
    %s64 = sphi 0, %s64
    %s66 = sphi 0, %s64
    %s67 = sphi 0, %s66
    %s81 = sphi 0, %s67
    %s87 = sphi 0, %s89
    %s90 = sphi 0, %s87
    %s91 = sphi 0, %s90
    %s107 = sphi 0, %s91
  $region4: #{mamba_forward.12} parent=0 // loop_header_branch
    %12 = sbr.rel (%p10) target = $region8
  $region5: #{mamba_forward.12} parent=0 // loop_body
    %s14 = ssub.s32 %s9, 1
    %s15 = ssub.s32 %s9, 2
    %s16 = sadd.s32 %s9, 1
    %s17 = ssub.s32 %s9, %s16
    %p18 = scmp.eq.s32.totalorder %s17, 0
    %s20 = sadd.s32 %s19, 1
    %s21 = scalar_select %p18, %s19, %s20
    %p24 = pneg %p18
    %p25 = scmp.eq.s32.totalorder %s9, 1
    %p26 = por %p24, %p25
    %p27 = scmp.ne.s32.totalorder %s19, %s22
    %p28 = scmp.eq.s32.totalorder %s9, 0
    %p29 = por %p27, %p28
    %p30 = scmp.ne.s32.totalorder %s19, %s22
    %p31 = scmp.eq.s32.totalorder %s14, 1
    %p32 = por %p30, %p31
    %p33 = scmp.ne.s32.totalorder %s22, %s23
    %p34 = scmp.eq.s32.totalorder %s14, 0
    %p35 = por %p33, %p34
    %p36 = scmp.ne.s32.totalorder %s22, %s23
    %p37 = scmp.eq.s32.totalorder %s15, 1
    %p38 = por %p36, %p37
    %p40 = scmp.ne.s32.totalorder %s23, %s39
    %p41 = scmp.eq.s32.totalorder %s15, 0
    %p42 = por %p40, %p41
    %s44 = sadd.s32 %s43, 1
    %p47 = scmp.eq.s32.totalorder %s9, 1
    %p48 = scmp.ne.s32.totalorder %s43, %s45
    %p49 = scmp.eq.s32.totalorder %s9, 0
    %p50 = por %p48, %p49
    %p51 = scmp.ne.s32.totalorder %s43, %s45
    %p52 = scmp.eq.s32.totalorder %s14, 1
    %p53 = por %p51, %p52
    %p54 = scmp.ne.s32.totalorder %s45, %s46
    %p55 = scmp.eq.s32.totalorder %s14, 0
    %p56 = por %p54, %p55
    %p57 = scmp.ne.s32.totalorder %s45, %s46
    %p58 = scmp.eq.s32.totalorder %s15, 1
    %p59 = por %p57, %p58
    %p61 = scmp.ne.s32.totalorder %s46, %s60
    %p62 = scmp.eq.s32.totalorder %s15, 0
    %p63 = por %p61, %p62
    %s65 = sadd.s32 %s64, 1
    %p68 = scmp.eq.s32.totalorder %s9, 1
    %p69 = scmp.ne.s32.totalorder %s64, %s66
    %p70 = scmp.eq.s32.totalorder %s9, 0
    %p71 = por %p69, %p70
    %p72 = scmp.ne.s32.totalorder %s64, %s66
    %p73 = scmp.eq.s32.totalorder %s14, 1
    %p74 = por %p72, %p73
    %p75 = scmp.ne.s32.totalorder %s66, %s67
    %p76 = scmp.eq.s32.totalorder %s14, 0
    %p77 = por %p75, %p76
    %p78 = scmp.ne.s32.totalorder %s66, %s67
    %p79 = scmp.eq.s32.totalorder %s15, 1
    %p80 = por %p78, %p79
    %p82 = scmp.ne.s32.totalorder %s67, %s81
    %p83 = scmp.eq.s32.totalorder %s15, 0
    %p84 = por %p82, %p83
    %s85 = ssub.s32 %s9, %s16
    %p86 = scmp.eq.s32.totalorder %s85, 0
    %s88 = sadd.s32 %s87, 1
    %s89 = scalar_select %p86, %s87, %s88
    %p92 = pneg %p86
    %p93 = scmp.eq.s32.totalorder %s9, 1
    %p94 = por %p92, %p93
    %p95 = scmp.ne.s32.totalorder %s87, %s90
    %p96 = scmp.eq.s32.totalorder %s9, 0
    %p97 = por %p95, %p96
    %p98 = scmp.ne.s32.totalorder %s87, %s90
    %p99 = scmp.eq.s32.totalorder %s14, 1
    %p100 = por %p98, %p99
    %p101 = scmp.ne.s32.totalorder %s90, %s91
    %p102 = scmp.eq.s32.totalorder %s14, 0
    %p103 = por %p101, %p102
    %p104 = scmp.ne.s32.totalorder %s90, %s91
    %p105 = scmp.eq.s32.totalorder %s15, 1
    %p106 = por %p104, %p105
    %p108 = scmp.ne.s32.totalorder %s91, %s107
    %p109 = scmp.eq.s32.totalorder %s15, 0
    %p110 = por %p108, %p109
    %p111 = scmp.le.s32.totalorder 1, %s9
    %p112 = scmp.lt.s32.totalorder %s9, 3
    %p113 = pnand %p111, %p112
    %p114 = pneg %p113
    // Predicated region
    $region9: #{mamba_forward.12} parent=5 // pred_check
      _
    $region10: #{mamba_forward.12} parent=5 // pred_check_branch
      %116 = sbr.rel (%p113) target = $region12
    $region11: #{mamba_forward.12} parent=5 // pred_region
      %s117 = ssub.s32 %s9, 1
      // Predicated region
      $region13: #{mamba_forward.12} parent=11 // pred_check
        %p118 = pneg %p56
      $region14: #{mamba_forward.12} parent=11 // pred_check_branch
        %120 = sbr.rel (%p118) target = $region16
      $region15: #{mamba_forward.12} parent=11 // pred_region
        _
      $region16: #{mamba_forward.12} parent=11 // pred_fallthru
        _
      // Predicated region
      $region17: #{mamba_forward.12} parent=11 // pred_check
        %p121 = pneg %p77
      $region18: #{mamba_forward.12} parent=11 // pred_check_branch
        %123 = sbr.rel (%p121) target = $region20
      $region19: #{mamba_forward.12} parent=11 // pred_region
        _
      $region20: #{mamba_forward.12} parent=11 // pred_fallthru
        _
    $region12: #{mamba_forward.12} parent=5 // pred_fallthru
      _
    %p124 = scmp.lt.s32.totalorder %s9, 2
    // Predicated region
    $region21: #{mamba_forward.12} parent=5 // pred_check
      %p125 = pneg %p124
    $region22: #{mamba_forward.12} parent=5 // pred_check_branch
      %127 = sbr.rel (%p125) target = $region24
    $region23: #{mamba_forward.12} parent=5 // pred_region
      // Predicated region
      $region25: #{mamba_forward.12} parent=23 // pred_check
        %p128 = pneg %p29
      $region26: #{mamba_forward.12} parent=23 // pred_check_branch
        %130 = sbr.rel (%p128) target = $region28
      $region27: #{mamba_forward.12} parent=23 // pred_region
        %p131 = scmp.lt.s32.totalorder %s9, 1
        %s132 = scalar_select %p131, %s9, 1
        %s133 = smul.addr %s132, 2
        %s134 = smul.addr %s133, 8
        %s135 = scalar_lea.vmem %s0, %s134
      $region28: #{mamba_forward.12} parent=23 // pred_fallthru
        _
    $region24: #{mamba_forward.12} parent=5 // pred_fallthru
      _
    %p136 = scmp.le.s32.totalorder 1, %s9
    %p137 = scmp.lt.s32.totalorder %s9, 3
    %p138 = pnand %p136, %p137
    %p139 = pneg %p138
    // Predicated region
    $region29: #{mamba_forward.12} parent=5 // pred_check
      _
    $region30: #{mamba_forward.12} parent=5 // pred_check_branch
      %141 = sbr.rel (%p138) target = $region32
    $region31: #{mamba_forward.12} parent=5 // pred_region
      %s142 = ssub.s32 %s9, 1
      %p143 = scmp.lt.s32.totalorder %s14, 1
      %s144 = scalar_select %p143, %s14, 1
      %s145 = smul.addr %s144, 2
      %s146 = smul.addr %s145, 8
      %s147 = scalar_lea.vmem %s0, %s146
      %p148 = pneg %p35
      %p149 = pneg %p32
      %p150 = pneg %p56
      %p151 = pneg %p53
      %p152 = pneg %p77
      %p153 = pneg %p74
      %p154 = pneg %p103
      %p155 = pneg %p100
      %p156 = scmp.lt.s32.totalorder %s14, 1
      %s157 = scalar_select %p156, %s14, 1
      %s158 = smul.addr %s157, 2
      %s159 = smul.addr %s158, 8
      %s160 = scalar_lea.vmem %s3, %s159
      %p161 = scmp.lt.s32.totalorder %s14, 1
      %s162 = scalar_select %p161, %s14, 1
      %s163 = smul.addr %s162, 2
      %s164 = smul.addr %s163, 8
      %s165 = scalar_lea.vmem %s0, %s164
      %p166 = scmp.lt.s32.totalorder %s14, 1
      %s167 = scalar_select %p166, %s14, 1
      %s168 = smul.addr %s167, 2
      %s169 = smul.addr %s168, 8
      %s170 = scalar_lea.vmem %s3, %s169
      %v171 = vld [vmem:[%s165] sm:$0xff]
      %v172 = vld [vmem:[%s165 + $0x8] sm:$0xff]
      %v173 = vld [vmem:[%s2] sm:$0x1]
      %v175 = vlaneseq
      %v176 = vshrl.u32 %v175, 7
      %v177 = vsub.s32 0, %v176
      %v178 = vrot.slane %v173, %v177
      %v180 = vadd.f32 %v178, 0.0
      %v181 = vld [vmem:[%s1] sm:$0x1]
      %v182 = vlaneseq
      %v183 = vshrl.u32 %v182, 7
      %v184 = vsub.s32 0, %v183
      %v185 = vrot.slane %v181, %v184
      %v186 = vmul.f32 %v171, %v185
      %v187 = vmul.f32 %v172, %v185
      %v188 = vadd.f32 %v180, %v186
      %v189 = vadd.f32 %v180, %v187
      %v190 = vld [vmem:[%s1 + $0x1] sm:$0x1]
      %v191 = vlaneseq
      %v192 = vshrl.u32 %v191, 7
      %v193 = vsub.s32 0, %v192
      %v194 = vrot.slane %v190, %v193
      %v195 = vmul.f32 %v171, %v194
      %v196 = vmul.f32 %v172, %v194
      %vm199 = vcmask 1046528
      %v200 = vrot.slane %v195, 1
      %v201 = vrot.slane %v196, 1
      %v202 = vsel %vm199, %v200, %v201
      %v205 = vadd.f32 %v188, %v202
      %v206 = vadd.f32 %v189, %v201
      %v207 = vld [vmem:[%s1 + $0x2] sm:$0x1]
      %v208 = vlaneseq
      %v209 = vshrl.u32 %v208, 7
      %v210 = vsub.s32 0, %v209
      %v211 = vrot.slane %v207, %v210
      %v212 = vmul.f32 %v171, %v211
      %v213 = vmul.f32 %v172, %v211
      %vm216 = vcmask 1045504
      %v217 = vrot.slane %v212, 2
      %v218 = vrot.slane %v213, 2
      %v219 = vsel %vm216, %v217, %v218
      %v222 = vadd.f32 %v205, %v219
      %v223 = vadd.f32 %v206, %v218
      %v224 = vxor.u32 %v222, 2147483648
      %v225 = vxor.u32 %v223, 2147483648
      %v226 = vmul.f32 %v224, 1.442695
      %v227 = vpow.pop %v226
      %v228 = vmul.f32 %v225, 1.442695
      %v229 = vpow.pop %v228
      %v230 = vadd.f32 %v227, 1.0
      %v231 = vadd.f32 %v229, 1.0
      %v232 = vrcp.pop %v230
      %v233 = vmul.f32 1.0, %v232
      %v234 = vrcp.pop %v231
      %v235 = vmul.f32 1.0, %v234
      %v236 = vmul.f32 %v222, %v233
      %v237 = vmul.f32 %v223, %v235
      %vm238 = vcmask 261120
      %239 = vst.msk [vmem:[%s170] sm:$0xff] %vm238, %v236
      %vm240 = vcmask 259072
      %241 = vst.msk [vmem:[%s170 + $0x8] sm:$0x3f] %vm240, %v237
      %vm242 = vcmask 254976
      %243 = vst.msk [vmem:[%s170 + $0xe] sm:$0x3] %vm242, 0.0
      %p244 = scmp.lt.s32.totalorder %s14, 1
      %s245 = scalar_select %p244, %s14, 1
      %s246 = smul.addr %s245, 2
      %s247 = smul.addr %s246, 8
      %s248 = scalar_lea.vmem %s3, %s247
      // Predicated region
      $region33: #{mamba_forward.12} parent=31 // pred_check
        %p249 = pneg %p100
      $region34: #{mamba_forward.12} parent=31 // pred_check_branch
        %251 = sbr.rel (%p249) target = $region36
      $region35: #{mamba_forward.12} parent=31 // pred_region
        _
      $region36: #{mamba_forward.12} parent=31 // pred_fallthru
        _
    $region32: #{mamba_forward.12} parent=5 // pred_fallthru
      _
    %p252 = scmp.le.s32.totalorder 2, %s9
    // Predicated region
    $region37: #{mamba_forward.12} parent=5 // pred_check
      %p253 = pneg %p252
    $region38: #{mamba_forward.12} parent=5 // pred_check_branch
      %255 = sbr.rel (%p253) target = $region40
    $region39: #{mamba_forward.12} parent=5 // pred_region
      %s256 = ssub.s32 %s9, 2
      // Predicated region
      $region41: #{mamba_forward.12} parent=39 // pred_check
        %p257 = pneg %p106
      $region42: #{mamba_forward.12} parent=39 // pred_check_branch
        %259 = sbr.rel (%p257) target = $region44
      $region43: #{mamba_forward.12} parent=39 // pred_region
        %p260 = scmp.lt.s32.totalorder %s15, 1
        %s261 = scalar_select %p260, %s15, 1
        %s262 = smul.addr %s261, 2
        %s263 = smul.addr %s262, 8
        %s264 = scalar_lea.vmem %s3, %s263
      $region44: #{mamba_forward.12} parent=39 // pred_fallthru
        _
    $region40: #{mamba_forward.12} parent=5 // pred_fallthru
      _
  $region6: #{mamba_forward.12} parent=0 // loop_footer
    %s13 = sadd.s32 1, %s9
  $region7: #{mamba_forward.12} parent=0 // loop_footer_branch
    %8 = sbr.rel target = $region3
  $region8: #{mamba_forward.12} parent=0 // loop_exit
    _

// kernel: mamba_forward.11
$region0: #{mamba_forward.11}
  #allocation0 [shape = 'u32[]', space=smem, size = 0x4, offset = 0x4, fixed_abs, tag = 'smem constant byte address 0x4 - core index']
  #allocation1 [shape = 'u32[144,128]{1,0:T(1,128)}', space=vmem, size = 0x12000, scoped, tag = 'internal scratch']
  %s0 = inlined_call_operand.vmem [shape: f32[32,32], index: 0, kind: input, shape index: {}]
  %s1 = inlined_call_operand.vmem [shape: f32[1,32], index: 1, kind: input, shape index: {}]
  %s2 = inlined_call_operand.vmem [shape: f32[32,64], index: 2, kind: input, shape index: {}]
  %s3 = inlined_call_operand.vmem [shape: f32[1,64], index: 3, kind: input, shape index: {}]
  %s4 = inlined_call_operand.vmem [shape: f32[32,64], index: 4, kind: output, shape index: {}]
  %s5 = sld [smem:[#allocation0]]
  $region49: #{mamba_forward.11} parent=0
    _
  %s7 = ssub.s32 1, %s5
  %s8 = scalar_select 0, %s7, %s5
  loop: start=0, step=1, limit=4
  $region2: #{mamba_forward.11} parent=0 // loop_pre_header
    _
  $region3: #{mamba_forward.11} parent=0 // loop_header
    %s10 = sphi 0, %s14
    %p11 = scmp.ge.s32.totalorder %s10, 4
    %s20 = sphi 0, %s22
    %s23 = sphi 0, %s20
    %s24 = sphi 0, %s23
    %s40 = sphi 0, %s24
    %s44 = sphi 0, %s44
    %s46 = sphi 0, %s44
    %s47 = sphi 0, %s46
    %s61 = sphi 0, %s47
    %s65 = sphi 0, %s65
    %s67 = sphi 0, %s65
    %s68 = sphi 0, %s67
    %s82 = sphi 0, %s68
    %s86 = sphi 0, %s86
    %s88 = sphi 0, %s86
    %s89 = sphi 0, %s88
    %s103 = sphi 0, %s89
    %s109 = sphi 0, %s111
    %s112 = sphi 0, %s109
    %s113 = sphi 0, %s112
    %s129 = sphi 0, %s113
  $region4: #{mamba_forward.11} parent=0 // loop_header_branch
    %13 = sbr.rel (%p11) target = $region8
  $region5: #{mamba_forward.11} parent=0 // loop_body
    %s15 = ssub.s32 %s10, 1
    %s16 = ssub.s32 %s10, 2
    %s17 = sadd.s32 %s10, 1
    %s18 = ssub.s32 %s10, %s17
    %p19 = scmp.eq.s32.totalorder %s18, 0
    %s21 = sadd.s32 %s20, 1
    %s22 = scalar_select %p19, %s20, %s21
    %p25 = pneg %p19
    %p26 = scmp.eq.s32.totalorder %s10, 1
    %p27 = por %p25, %p26
    %p28 = scmp.ne.s32.totalorder %s20, %s23
    %p29 = scmp.eq.s32.totalorder %s10, 0
    %p30 = por %p28, %p29
    %p31 = scmp.ne.s32.totalorder %s20, %s23
    %p32 = scmp.eq.s32.totalorder %s15, 1
    %p33 = por %p31, %p32
    %p34 = scmp.ne.s32.totalorder %s23, %s24
    %p35 = scmp.eq.s32.totalorder %s15, 0
    %p36 = por %p34, %p35
    %p37 = scmp.ne.s32.totalorder %s23, %s24
    %p38 = scmp.eq.s32.totalorder %s16, 1
    %p39 = por %p37, %p38
    %p41 = scmp.ne.s32.totalorder %s24, %s40
    %p42 = scmp.eq.s32.totalorder %s16, 0
    %p43 = por %p41, %p42
    %s45 = sadd.s32 %s44, 1
    %p48 = scmp.eq.s32.totalorder %s10, 1
    %p49 = scmp.ne.s32.totalorder %s44, %s46
    %p50 = scmp.eq.s32.totalorder %s10, 0
    %p51 = por %p49, %p50
    %p52 = scmp.ne.s32.totalorder %s44, %s46
    %p53 = scmp.eq.s32.totalorder %s15, 1
    %p54 = por %p52, %p53
    %p55 = scmp.ne.s32.totalorder %s46, %s47
    %p56 = scmp.eq.s32.totalorder %s15, 0
    %p57 = por %p55, %p56
    %p58 = scmp.ne.s32.totalorder %s46, %s47
    %p59 = scmp.eq.s32.totalorder %s16, 1
    %p60 = por %p58, %p59
    %p62 = scmp.ne.s32.totalorder %s47, %s61
    %p63 = scmp.eq.s32.totalorder %s16, 0
    %p64 = por %p62, %p63
    %s66 = sadd.s32 %s65, 1
    %p69 = scmp.eq.s32.totalorder %s10, 1
    %p70 = scmp.ne.s32.totalorder %s65, %s67
    %p71 = scmp.eq.s32.totalorder %s10, 0
    %p72 = por %p70, %p71
    %p73 = scmp.ne.s32.totalorder %s65, %s67
    %p74 = scmp.eq.s32.totalorder %s15, 1
    %p75 = por %p73, %p74
    %p76 = scmp.ne.s32.totalorder %s67, %s68
    %p77 = scmp.eq.s32.totalorder %s15, 0
    %p78 = por %p76, %p77
    %p79 = scmp.ne.s32.totalorder %s67, %s68
    %p80 = scmp.eq.s32.totalorder %s16, 1
    %p81 = por %p79, %p80
    %p83 = scmp.ne.s32.totalorder %s68, %s82
    %p84 = scmp.eq.s32.totalorder %s16, 0
    %p85 = por %p83, %p84
    %s87 = sadd.s32 %s86, 1
    %p90 = scmp.eq.s32.totalorder %s10, 1
    %p91 = scmp.ne.s32.totalorder %s86, %s88
    %p92 = scmp.eq.s32.totalorder %s10, 0
    %p93 = por %p91, %p92
    %p94 = scmp.ne.s32.totalorder %s86, %s88
    %p95 = scmp.eq.s32.totalorder %s15, 1
    %p96 = por %p94, %p95
    %p97 = scmp.ne.s32.totalorder %s88, %s89
    %p98 = scmp.eq.s32.totalorder %s15, 0
    %p99 = por %p97, %p98
    %p100 = scmp.ne.s32.totalorder %s88, %s89
    %p101 = scmp.eq.s32.totalorder %s16, 1
    %p102 = por %p100, %p101
    %p104 = scmp.ne.s32.totalorder %s89, %s103
    %p105 = scmp.eq.s32.totalorder %s16, 0
    %p106 = por %p104, %p105
    %s107 = ssub.s32 %s10, %s17
    %p108 = scmp.eq.s32.totalorder %s107, 0
    %s110 = sadd.s32 %s109, 1
    %s111 = scalar_select %p108, %s109, %s110
    %p114 = pneg %p108
    %p115 = scmp.eq.s32.totalorder %s10, 1
    %p116 = por %p114, %p115
    %p117 = scmp.ne.s32.totalorder %s109, %s112
    %p118 = scmp.eq.s32.totalorder %s10, 0
    %p119 = por %p117, %p118
    %p120 = scmp.ne.s32.totalorder %s109, %s112
    %p121 = scmp.eq.s32.totalorder %s15, 1
    %p122 = por %p120, %p121
    %p123 = scmp.ne.s32.totalorder %s112, %s113
    %p124 = scmp.eq.s32.totalorder %s15, 0
    %p125 = por %p123, %p124
    %p126 = scmp.ne.s32.totalorder %s112, %s113
    %p127 = scmp.eq.s32.totalorder %s16, 1
    %p128 = por %p126, %p127
    %p130 = scmp.ne.s32.totalorder %s113, %s129
    %p131 = scmp.eq.s32.totalorder %s16, 0
    %p132 = por %p130, %p131
    %p133 = scmp.le.s32.totalorder 1, %s10
    %p134 = scmp.lt.s32.totalorder %s10, 3
    %p135 = pnand %p133, %p134
    %p136 = pneg %p135
    // Predicated region
    $region9: #{mamba_forward.11} parent=5 // pred_check
      _
    $region10: #{mamba_forward.11} parent=5 // pred_check_branch
      %138 = sbr.rel (%p135) target = $region12
    $region11: #{mamba_forward.11} parent=5 // pred_region
      %s139 = ssub.s32 %s10, 1
      // Predicated region
      $region13: #{mamba_forward.11} parent=11 // pred_check
        %p140 = pneg %p57
      $region14: #{mamba_forward.11} parent=11 // pred_check_branch
        %142 = sbr.rel (%p140) target = $region16
      $region15: #{mamba_forward.11} parent=11 // pred_region
        _
      $region16: #{mamba_forward.11} parent=11 // pred_fallthru
        _
      // Predicated region
      $region17: #{mamba_forward.11} parent=11 // pred_check
        %p143 = pneg %p78
      $region18: #{mamba_forward.11} parent=11 // pred_check_branch
        %145 = sbr.rel (%p143) target = $region20
      $region19: #{mamba_forward.11} parent=11 // pred_region
        _
      $region20: #{mamba_forward.11} parent=11 // pred_fallthru
        _
      // Predicated region
      $region21: #{mamba_forward.11} parent=11 // pred_check
        %p146 = pneg %p99
      $region22: #{mamba_forward.11} parent=11 // pred_check_branch
        %148 = sbr.rel (%p146) target = $region24
      $region23: #{mamba_forward.11} parent=11 // pred_region
        _
      $region24: #{mamba_forward.11} parent=11 // pred_fallthru
        _
    $region12: #{mamba_forward.11} parent=5 // pred_fallthru
      _
    %p149 = scmp.lt.s32.totalorder %s10, 2
    // Predicated region
    $region25: #{mamba_forward.11} parent=5 // pred_check
      %p150 = pneg %p149
    $region26: #{mamba_forward.11} parent=5 // pred_check_branch
      %152 = sbr.rel (%p150) target = $region28
    $region27: #{mamba_forward.11} parent=5 // pred_region
      // Predicated region
      $region29: #{mamba_forward.11} parent=27 // pred_check
        %p153 = pneg %p30
      $region30: #{mamba_forward.11} parent=27 // pred_check_branch
        %155 = sbr.rel (%p153) target = $region32
      $region31: #{mamba_forward.11} parent=27 // pred_region
        %s156 = smul.u32 2, %s10
        %p157 = scmp.lt.s32.totalorder %s156, 3
        %s158 = scalar_select %p157, %s156, 3
        %s159 = smul.addr %s158, 8
        %s160 = scalar_lea.vmem %s0, %s159
        %s161 = smul.u32 2, %s10
      $region32: #{mamba_forward.11} parent=27 // pred_fallthru
        _
    $region28: #{mamba_forward.11} parent=5 // pred_fallthru
      _
    %p162 = scmp.le.s32.totalorder 1, %s10
    %p163 = scmp.lt.s32.totalorder %s10, 3
    %p164 = pnand %p162, %p163
    %p165 = pneg %p164
    // Predicated region
    $region33: #{mamba_forward.11} parent=5 // pred_check
      _
    $region34: #{mamba_forward.11} parent=5 // pred_check_branch
      %167 = sbr.rel (%p164) target = $region36
    $region35: #{mamba_forward.11} parent=5 // pred_region
      %s168 = ssub.s32 %s10, 1
      %s169 = smul.u32 2, %s15
      %p170 = scmp.lt.s32.totalorder %s169, 3
      %s171 = scalar_select %p170, %s169, 3
      %s172 = smul.addr %s171, 8
      %s173 = scalar_lea.vmem %s0, %s172
      %p174 = pneg %p36
      %p175 = pneg %p33
      %p176 = pneg %p57
      %p177 = pneg %p54
      %p178 = pneg %p78
      %p179 = pneg %p75
      %p180 = pneg %p99
      %p181 = pneg %p96
      %p182 = pneg %p125
      %p183 = pneg %p122
      %s184 = smul.u32 2, %s15
      %p185 = scmp.lt.s32.totalorder %s184, 3
      %s186 = scalar_select %p185, %s184, 3
      %s187 = smul.addr %s186, 8
      %s188 = scalar_lea.vmem %s4, %s187
      %s189 = smul.u32 2, %s15
      %p190 = scmp.lt.s32.totalorder %s189, 3
      %s191 = scalar_select %p190, %s189, 3
      %s192 = smul.addr %s191, 8
      %s193 = scalar_lea.vmem %s0, %s192
      %s194 = smul.u32 2, %s15
      %s195 = smul.u32 2, %s15
      %p196 = scmp.lt.s32.totalorder %s195, 3
      %s197 = scalar_select %p196, %s195, 3
      %s198 = smul.addr %s197, 8
      %s199 = scalar_lea.vmem %s4, %s198
      %s200 = smul.u32 2, %s15
      %v201 = vld [vmem:[%s193] sm:$0xff]
      %v202 = vld [vmem:[%s193 + $0x8] sm:$0xff]
      %v203 = vmul.f32 %v201, %v201
      %v204 = vmul.f32 %v202, %v202
      %vm205 = vcmask 261120
      %v206 = vsel %vm205, %v203, 0.0
      %207 = vadd.xlane.f32.xlu0 %v206
      %v208 = vpop.xlane.xlu0 %207
      %v209 = vsel %vm205, %v204, 0.0
      %210 = vadd.xlane.f32.xlu0 %v209
      %v211 = vpop.xlane.xlu0 %210
      %v212 = vrcp.pop 32.0
      %v213 = vmul.f32 %v208, %v212
      %v214 = vmul.f32 %v211, %v212
      %v215 = vadd.f32 %v213, 1e-05
      %v216 = vadd.f32 %v214, 1e-05
      %v217 = vrsqrt.pop %v215
      %v218 = vrsqrt.pop %v216
      %v219 = vmul.f32 %v201, %v217
      %v220 = vmul.f32 %v202, %v218
      %v221 = vld [vmem:[%s1] sm:$0x1]
      %v223 = vlaneseq
      %v224 = vshrl.u32 %v223, 7
      %v225 = vsub.s32 0, %v224
      %v226 = vrot.slane %v221, %v225
      %v228 = vmul.f32 %v219, %v226
      %v229 = vmul.f32 %v220, %v226
      %v230 = vld [vmem:[%s2] sm:$0xff]
      %v231 = vld [vmem:[%s2 + $0x8] sm:$0xff]
      %v232 = vld [vmem:[%s2 + $0x10] sm:$0xff]
      %v233 = vld [vmem:[%s2 + $0x18] sm:$0xff]
      %v234 = vld [vmem:[%s3] sm:$0x1]
      %v236 = vlaneseq
      %v237 = vshrl.u32 %v236, 7
      %v238 = vsub.s32 0, %v237
      %v239 = vrot.slane %v234, %v238
      %v242 = vsel %vm205, %v228, 0
      %v245 = vsel %vm205, %v229, 0
      %247 = vmatprep.subr.mxu0 0.0
      %248 = vmatpush1.msra.mxu0 %v230
      %249 = vmatprep.subr.mxu0 0.0
      %250 = vmatpush1.msra.mxu0 %v231
      %251 = vmatprep.subr.mxu0 0.0
      %252 = vmatpush1.msra.mxu0 %v232
      %253 = vmatprep.subr.mxu0 0.0
      %254 = vmatpush1.msra.mxu0 %v233
      %255 = vmatprep.subr.mxu0 0.0
      %256 = vmatpush1.msra.mxu0 0.0
      %257 = vmatprep.subr.mxu0 0.0
      %258 = vmatpush1.msra.mxu0 0.0
      %259 = vmatprep.subr.mxu0 0.0
      %260 = vmatpush1.msra.mxu0 0.0
      %261 = vmatprep.subr.mxu0 0.0
      %262 = vmatpush1.msra.mxu0 0.0
      %263 = vmatprep.subr.mxu0 0.0
      %264 = vmatpush1.msra.mxu0 0.0
      %265 = vmatprep.subr.mxu0 0.0
      %266 = vmatpush1.msra.mxu0 0.0
      %267 = vmatprep.subr.mxu0 0.0
      %268 = vmatpush1.msra.mxu0 0.0
      %269 = vmatprep.subr.mxu0 0.0
      %270 = vmatpush1.msra.mxu0 0.0
      %271 = vmatprep.subr.mxu0 0.0
      %272 = vmatpush1.msra.mxu0 0.0
      %273 = vmatprep.subr.mxu0 0.0
      %274 = vmatpush1.msra.mxu0 0.0
      %275 = vmatprep.subr.mxu0 0.0
      %276 = vmatpush1.msra.mxu0 0.0
      %277 = vmatprep.subr.mxu0 0.0
      %278 = vmatpush1.msra.mxu0 0.0
      %279 = vmatprep.subr.mxu0 0.0
      %280 = vmatpush1.msra.mxu0 0.0
      %281 = vmatprep.subr.mxu0 0.0
      %282 = vmatpush1.msra.mxu0 0.0
      %283 = vmatprep.subr.mxu0 0.0
      %284 = vmatpush1.msra.mxu0 0.0
      %285 = vmatprep.subr.mxu0 0.0
      %286 = vmatpush1.msra.mxu0 0.0
      %287 = vmatprep.subr.mxu0 0.0
      %288 = vmatpush1.msra.mxu0 0.0
      %289 = vmatprep.subr.mxu0 0.0
      %290 = vmatpush1.msra.mxu0 0.0
      %291 = vmatprep.subr.mxu0 0.0
      %292 = vmatpush1.msra.mxu0 0.0
      %293 = vmatprep.subr.mxu0 0.0
      %294 = vmatpush1.msra.mxu0 0.0
      %295 = vmatprep.subr.mxu0 0.0
      %296 = vmatpush1.msra.mxu0 0.0
      %297 = vmatprep.subr.mxu0 0.0
      %298 = vmatpush1.msra.mxu0 0.0
      %299 = vmatprep.subr.mxu0 0.0
      %300 = vmatpush1.msra.mxu0 0.0
      %301 = vmatprep.subr.mxu0 0.0
      %302 = vmatpush1.msra.mxu0 0.0
      %303 = vmatprep.subr.mxu0 0.0
      %304 = vmatpush1.msra.mxu0 0.0
      %305 = vmatprep.subr.mxu0 0.0
      %306 = vmatpush1.msra.mxu0 0.0
      %307 = vmatprep.subr.mxu0 0.0
      %308 = vmatpush1.msra.mxu0 0.0
      %309 = vmatprep.subr.mxu0 0.0
      %310 = vmatpush1.msra.mxu0 0.0
      %311 = vmatprep.mubr.f32.mxu0 0.0
      %312 = vmatmul.mubr.f32.gmra.mrb[0].mxu0 %v242
      %v313 = vpop.f32.mrb[0].mxu0
      %v314 = vadd.f32 %v239, %v313
      %v315 = vpop.f32.mrb[0].mxu0
      %316 = vmatprep.mubr.f32.mxu0 0.0
      %317 = vmatmul.mubr.f32.gmra.mrb[0].mxu0 %v245
      %v318 = vpop.f32.mrb[0].mxu0
      %v319 = vadd.f32 %v239, %v318
      %v320 = vpop.f32.mrb[0].mxu0
      %321 = vdwg.mxu0
      %v322 = vlaneseq
      %v323 = vand.u32 %v322, 127
      %vm324 = vcmp.lt.s32.totalorder %v323, 32
      %v325 = vxor.u32 %v314, 2147483648
      %v326 = vxor.u32 %v319, 2147483648
      %v327 = vmul.f32 %v325, 1.442695
      %v328 = vpow.pop %v327
      %v329 = vmul.f32 %v326, 1.442695
      %v330 = vpow.pop %v329
      %v331 = vadd.f32 %v328, 1.0
      %v332 = vadd.f32 %v330, 1.0
      %v333 = vrcp.pop %v331
      %v334 = vmul.f32 1.0, %v333
      %v335 = vrcp.pop %v332
      %v336 = vmul.f32 1.0, %v335
      %v337 = vmul.f32 %v314, %v334
      %v338 = vmul.f32 %v319, %v336
      %v339 = vsel %vm324, %v314, %v337
      %v340 = vsel %vm324, %v319, %v338
      %vm341 = vcmask 523264
      %342 = vst.msk [vmem:[%s199] sm:$0xff] %vm341, %v339
      %343 = vst.msk [vmem:[%s199 + $0x8] sm:$0xff] %vm341, %v340
      %s344 = smul.u32 2, %s15
      %p345 = scmp.lt.s32.totalorder %s344, 3
      %s346 = scalar_select %p345, %s344, 3
      %s347 = smul.addr %s346, 8
      %s348 = scalar_lea.vmem %s4, %s347
      // Predicated region
      $region37: #{mamba_forward.11} parent=35 // pred_check
        %p349 = pneg %p122
      $region38: #{mamba_forward.11} parent=35 // pred_check_branch
        %351 = sbr.rel (%p349) target = $region40
      $region39: #{mamba_forward.11} parent=35 // pred_region
        %s352 = smul.u32 2, %s15
      $region40: #{mamba_forward.11} parent=35 // pred_fallthru
        _
    $region36: #{mamba_forward.11} parent=5 // pred_fallthru
      _
    %p353 = scmp.le.s32.totalorder 2, %s10
    // Predicated region
    $region41: #{mamba_forward.11} parent=5 // pred_check
      %p354 = pneg %p353
    $region42: #{mamba_forward.11} parent=5 // pred_check_branch
      %356 = sbr.rel (%p354) target = $region44
    $region43: #{mamba_forward.11} parent=5 // pred_region
      %s357 = ssub.s32 %s10, 2
      // Predicated region
      $region45: #{mamba_forward.11} parent=43 // pred_check
        %p358 = pneg %p128
      $region46: #{mamba_forward.11} parent=43 // pred_check_branch
        %360 = sbr.rel (%p358) target = $region48
      $region47: #{mamba_forward.11} parent=43 // pred_region
        %s361 = smul.u32 2, %s16
        %p362 = scmp.lt.s32.totalorder %s361, 3
        %s363 = scalar_select %p362, %s361, 3
        %s364 = smul.addr %s363, 8
        %s365 = scalar_lea.vmem %s4, %s364
      $region48: #{mamba_forward.11} parent=43 // pred_fallthru
        _
    $region44: #{mamba_forward.11} parent=5 // pred_fallthru
      _
  $region6: #{mamba_forward.11} parent=0 // loop_footer
    %s14 = sadd.s32 1, %s10
  $region7: #{mamba_forward.11} parent=0 // loop_footer_branch
    %9 = sbr.rel target = $region3
  $region8: #{mamba_forward.11} parent=0 // loop_exit
    _

// kernel: mamba_forward.13
$region0: #{mamba_forward.13}
  #allocation0 [shape = 'u32[]', space=smem, size = 0x4, offset = 0x4, fixed_abs, tag = 'smem constant byte address 0x4 - core index']
  #allocation1 [shape = 'u32[144,128]{1,0:T(1,128)}', space=vmem, size = 0x12000, scoped, tag = 'internal scratch']
  %s0 = inlined_call_operand.vmem [shape: f32[32,32], index: 0, kind: input, shape index: {}]
  %s1 = inlined_call_operand.vmem [shape: f32[32,64], index: 1, kind: input, shape index: {}]
  %s2 = inlined_call_operand.vmem [shape: f32[1,64], index: 2, kind: input, shape index: {}]
  %s3 = inlined_call_operand.vmem [shape: f32[32,2], index: 3, kind: input, shape index: {}]
  %s4 = inlined_call_operand.vmem [shape: f32[1,2], index: 4, kind: input, shape index: {}]
  %s5 = inlined_call_operand.vmem [shape: f32[2,32], index: 5, kind: input, shape index: {}]
  %s6 = inlined_call_operand.vmem [shape: f32[1,32], index: 6, kind: input, shape index: {}]
  %s7 = inlined_call_operand.vmem [shape: f32[32,64], index: 7, kind: output, shape index: {0}]
  %s8 = inlined_call_operand.vmem [shape: f32[32,32], index: 8, kind: output, shape index: {1}]
  %9 = xla_tuple %s7, %s8
  %s10 = sld [smem:[#allocation0]]
  $region69: #{mamba_forward.13} parent=0
    _
  %s12 = ssub.s32 1, %s10
  %s13 = scalar_select 0, %s12, %s10
  loop: start=0, step=1, limit=4
  $region2: #{mamba_forward.13} parent=0 // loop_pre_header
    _
  $region3: #{mamba_forward.13} parent=0 // loop_header
    %s15 = sphi 0, %s19
    %p16 = scmp.ge.s32.totalorder %s15, 4
    %s25 = sphi 0, %s27
    %s28 = sphi 0, %s25
    %s29 = sphi 0, %s28
    %s45 = sphi 0, %s29
    %s49 = sphi 0, %s49
    %s51 = sphi 0, %s49
    %s52 = sphi 0, %s51
    %s66 = sphi 0, %s52
    %s70 = sphi 0, %s70
    %s72 = sphi 0, %s70
    %s73 = sphi 0, %s72
    %s87 = sphi 0, %s73
    %s91 = sphi 0, %s91
    %s93 = sphi 0, %s91
    %s94 = sphi 0, %s93
    %s108 = sphi 0, %s94
    %s112 = sphi 0, %s112
    %s114 = sphi 0, %s112
    %s115 = sphi 0, %s114
    %s129 = sphi 0, %s115
    %s133 = sphi 0, %s133
    %s135 = sphi 0, %s133
    %s136 = sphi 0, %s135
    %s150 = sphi 0, %s136
    %s154 = sphi 0, %s154
    %s156 = sphi 0, %s154
    %s157 = sphi 0, %s156
    %s171 = sphi 0, %s157
    %s177 = sphi 0, %s179
    %s180 = sphi 0, %s177
    %s181 = sphi 0, %s180
    %s197 = sphi 0, %s181
    %s203 = sphi 0, %s205
    %s206 = sphi 0, %s203
    %s207 = sphi 0, %s206
    %s223 = sphi 0, %s207
  $region4: #{mamba_forward.13} parent=0 // loop_header_branch
    %18 = sbr.rel (%p16) target = $region8
  $region5: #{mamba_forward.13} parent=0 // loop_body
    %s20 = ssub.s32 %s15, 1
    %s21 = ssub.s32 %s15, 2
    %s22 = sadd.s32 %s15, 1
    %s23 = ssub.s32 %s15, %s22
    %p24 = scmp.eq.s32.totalorder %s23, 0
    %s26 = sadd.s32 %s25, 1
    %s27 = scalar_select %p24, %s25, %s26
    %p30 = pneg %p24
    %p31 = scmp.eq.s32.totalorder %s15, 1
    %p32 = por %p30, %p31
    %p33 = scmp.ne.s32.totalorder %s25, %s28
    %p34 = scmp.eq.s32.totalorder %s15, 0
    %p35 = por %p33, %p34
    %p36 = scmp.ne.s32.totalorder %s25, %s28
    %p37 = scmp.eq.s32.totalorder %s20, 1
    %p38 = por %p36, %p37
    %p39 = scmp.ne.s32.totalorder %s28, %s29
    %p40 = scmp.eq.s32.totalorder %s20, 0
    %p41 = por %p39, %p40
    %p42 = scmp.ne.s32.totalorder %s28, %s29
    %p43 = scmp.eq.s32.totalorder %s21, 1
    %p44 = por %p42, %p43
    %p46 = scmp.ne.s32.totalorder %s29, %s45
    %p47 = scmp.eq.s32.totalorder %s21, 0
    %p48 = por %p46, %p47
    %s50 = sadd.s32 %s49, 1
    %p53 = scmp.eq.s32.totalorder %s15, 1
    %p54 = scmp.ne.s32.totalorder %s49, %s51
    %p55 = scmp.eq.s32.totalorder %s15, 0
    %p56 = por %p54, %p55
    %p57 = scmp.ne.s32.totalorder %s49, %s51
    %p58 = scmp.eq.s32.totalorder %s20, 1
    %p59 = por %p57, %p58
    %p60 = scmp.ne.s32.totalorder %s51, %s52
    %p61 = scmp.eq.s32.totalorder %s20, 0
    %p62 = por %p60, %p61
    %p63 = scmp.ne.s32.totalorder %s51, %s52
    %p64 = scmp.eq.s32.totalorder %s21, 1
    %p65 = por %p63, %p64
    %p67 = scmp.ne.s32.totalorder %s52, %s66
    %p68 = scmp.eq.s32.totalorder %s21, 0
    %p69 = por %p67, %p68
    %s71 = sadd.s32 %s70, 1
    %p74 = scmp.eq.s32.totalorder %s15, 1
    %p75 = scmp.ne.s32.totalorder %s70, %s72
    %p76 = scmp.eq.s32.totalorder %s15, 0
    %p77 = por %p75, %p76
    %p78 = scmp.ne.s32.totalorder %s70, %s72
    %p79 = scmp.eq.s32.totalorder %s20, 1
    %p80 = por %p78, %p79
    %p81 = scmp.ne.s32.totalorder %s72, %s73
    %p82 = scmp.eq.s32.totalorder %s20, 0
    %p83 = por %p81, %p82
    %p84 = scmp.ne.s32.totalorder %s72, %s73
    %p85 = scmp.eq.s32.totalorder %s21, 1
    %p86 = por %p84, %p85
    %p88 = scmp.ne.s32.totalorder %s73, %s87
    %p89 = scmp.eq.s32.totalorder %s21, 0
    %p90 = por %p88, %p89
    %s92 = sadd.s32 %s91, 1
    %p95 = scmp.eq.s32.totalorder %s15, 1
    %p96 = scmp.ne.s32.totalorder %s91, %s93
    %p97 = scmp.eq.s32.totalorder %s15, 0
    %p98 = por %p96, %p97
    %p99 = scmp.ne.s32.totalorder %s91, %s93
    %p100 = scmp.eq.s32.totalorder %s20, 1
    %p101 = por %p99, %p100
    %p102 = scmp.ne.s32.totalorder %s93, %s94
    %p103 = scmp.eq.s32.totalorder %s20, 0
    %p104 = por %p102, %p103
    %p105 = scmp.ne.s32.totalorder %s93, %s94
    %p106 = scmp.eq.s32.totalorder %s21, 1
    %p107 = por %p105, %p106
    %p109 = scmp.ne.s32.totalorder %s94, %s108
    %p110 = scmp.eq.s32.totalorder %s21, 0
    %p111 = por %p109, %p110
    %s113 = sadd.s32 %s112, 1
    %p116 = scmp.eq.s32.totalorder %s15, 1
    %p117 = scmp.ne.s32.totalorder %s112, %s114
    %p118 = scmp.eq.s32.totalorder %s15, 0
    %p119 = por %p117, %p118
    %p120 = scmp.ne.s32.totalorder %s112, %s114
    %p121 = scmp.eq.s32.totalorder %s20, 1
    %p122 = por %p120, %p121
    %p123 = scmp.ne.s32.totalorder %s114, %s115
    %p124 = scmp.eq.s32.totalorder %s20, 0
    %p125 = por %p123, %p124
    %p126 = scmp.ne.s32.totalorder %s114, %s115
    %p127 = scmp.eq.s32.totalorder %s21, 1
    %p128 = por %p126, %p127
    %p130 = scmp.ne.s32.totalorder %s115, %s129
    %p131 = scmp.eq.s32.totalorder %s21, 0
    %p132 = por %p130, %p131
    %s134 = sadd.s32 %s133, 1
    %p137 = scmp.eq.s32.totalorder %s15, 1
    %p138 = scmp.ne.s32.totalorder %s133, %s135
    %p139 = scmp.eq.s32.totalorder %s15, 0
    %p140 = por %p138, %p139
    %p141 = scmp.ne.s32.totalorder %s133, %s135
    %p142 = scmp.eq.s32.totalorder %s20, 1
    %p143 = por %p141, %p142
    %p144 = scmp.ne.s32.totalorder %s135, %s136
    %p145 = scmp.eq.s32.totalorder %s20, 0
    %p146 = por %p144, %p145
    %p147 = scmp.ne.s32.totalorder %s135, %s136
    %p148 = scmp.eq.s32.totalorder %s21, 1
    %p149 = por %p147, %p148
    %p151 = scmp.ne.s32.totalorder %s136, %s150
    %p152 = scmp.eq.s32.totalorder %s21, 0
    %p153 = por %p151, %p152
    %s155 = sadd.s32 %s154, 1
    %p158 = scmp.eq.s32.totalorder %s15, 1
    %p159 = scmp.ne.s32.totalorder %s154, %s156
    %p160 = scmp.eq.s32.totalorder %s15, 0
    %p161 = por %p159, %p160
    %p162 = scmp.ne.s32.totalorder %s154, %s156
    %p163 = scmp.eq.s32.totalorder %s20, 1
    %p164 = por %p162, %p163
    %p165 = scmp.ne.s32.totalorder %s156, %s157
    %p166 = scmp.eq.s32.totalorder %s20, 0
    %p167 = por %p165, %p166
    %p168 = scmp.ne.s32.totalorder %s156, %s157
    %p169 = scmp.eq.s32.totalorder %s21, 1
    %p170 = por %p168, %p169
    %p172 = scmp.ne.s32.totalorder %s157, %s171
    %p173 = scmp.eq.s32.totalorder %s21, 0
    %p174 = por %p172, %p173
    %s175 = ssub.s32 %s15, %s22
    %p176 = scmp.eq.s32.totalorder %s175, 0
    %s178 = sadd.s32 %s177, 1
    %s179 = scalar_select %p176, %s177, %s178
    %p182 = pneg %p176
    %p183 = scmp.eq.s32.totalorder %s15, 1
    %p184 = por %p182, %p183
    %p185 = scmp.ne.s32.totalorder %s177, %s180
    %p186 = scmp.eq.s32.totalorder %s15, 0
    %p187 = por %p185, %p186
    %p188 = scmp.ne.s32.totalorder %s177, %s180
    %p189 = scmp.eq.s32.totalorder %s20, 1
    %p190 = por %p188, %p189
    %p191 = scmp.ne.s32.totalorder %s180, %s181
    %p192 = scmp.eq.s32.totalorder %s20, 0
    %p193 = por %p191, %p192
    %p194 = scmp.ne.s32.totalorder %s180, %s181
    %p195 = scmp.eq.s32.totalorder %s21, 1
    %p196 = por %p194, %p195
    %p198 = scmp.ne.s32.totalorder %s181, %s197
    %p199 = scmp.eq.s32.totalorder %s21, 0
    %p200 = por %p198, %p199
    %s201 = ssub.s32 %s15, %s22
    %p202 = scmp.eq.s32.totalorder %s201, 0
    %s204 = sadd.s32 %s203, 1
    %s205 = scalar_select %p202, %s203, %s204
    %p208 = pneg %p202
    %p209 = scmp.eq.s32.totalorder %s15, 1
    %p210 = por %p208, %p209
    %p211 = scmp.ne.s32.totalorder %s203, %s206
    %p212 = scmp.eq.s32.totalorder %s15, 0
    %p213 = por %p211, %p212
    %p214 = scmp.ne.s32.totalorder %s203, %s206
    %p215 = scmp.eq.s32.totalorder %s20, 1
    %p216 = por %p214, %p215
    %p217 = scmp.ne.s32.totalorder %s206, %s207
    %p218 = scmp.eq.s32.totalorder %s20, 0
    %p219 = por %p217, %p218
    %p220 = scmp.ne.s32.totalorder %s206, %s207
    %p221 = scmp.eq.s32.totalorder %s21, 1
    %p222 = por %p220, %p221
    %p224 = scmp.ne.s32.totalorder %s207, %s223
    %p225 = scmp.eq.s32.totalorder %s21, 0
    %p226 = por %p224, %p225
    %p227 = scmp.le.s32.totalorder 1, %s15
    %p228 = scmp.lt.s32.totalorder %s15, 3
    %p229 = pnand %p227, %p228
    %p230 = pneg %p229
    // Predicated region
    $region9: #{mamba_forward.13} parent=5 // pred_check
      _
    $region10: #{mamba_forward.13} parent=5 // pred_check_branch
      %232 = sbr.rel (%p229) target = $region12
    $region11: #{mamba_forward.13} parent=5 // pred_region
      %s233 = ssub.s32 %s15, 1
      // Predicated region
      $region13: #{mamba_forward.13} parent=11 // pred_check
        %p234 = pneg %p62
      $region14: #{mamba_forward.13} parent=11 // pred_check_branch
        %236 = sbr.rel (%p234) target = $region16
      $region15: #{mamba_forward.13} parent=11 // pred_region
        _
      $region16: #{mamba_forward.13} parent=11 // pred_fallthru
        _
      // Predicated region
      $region17: #{mamba_forward.13} parent=11 // pred_check
        %p237 = pneg %p83
      $region18: #{mamba_forward.13} parent=11 // pred_check_branch
        %239 = sbr.rel (%p237) target = $region20
      $region19: #{mamba_forward.13} parent=11 // pred_region
        _
      $region20: #{mamba_forward.13} parent=11 // pred_fallthru
        _
      // Predicated region
      $region21: #{mamba_forward.13} parent=11 // pred_check
        %p240 = pneg %p104
      $region22: #{mamba_forward.13} parent=11 // pred_check_branch
        %242 = sbr.rel (%p240) target = $region24
      $region23: #{mamba_forward.13} parent=11 // pred_region
        _
      $region24: #{mamba_forward.13} parent=11 // pred_fallthru
        _
      // Predicated region
      $region25: #{mamba_forward.13} parent=11 // pred_check
        %p243 = pneg %p125
      $region26: #{mamba_forward.13} parent=11 // pred_check_branch
        %245 = sbr.rel (%p243) target = $region28
      $region27: #{mamba_forward.13} parent=11 // pred_region
        _
      $region28: #{mamba_forward.13} parent=11 // pred_fallthru
        _
      // Predicated region
      $region29: #{mamba_forward.13} parent=11 // pred_check
        %p246 = pneg %p146
      $region30: #{mamba_forward.13} parent=11 // pred_check_branch
        %248 = sbr.rel (%p246) target = $region32
      $region31: #{mamba_forward.13} parent=11 // pred_region
        _
      $region32: #{mamba_forward.13} parent=11 // pred_fallthru
        _
      // Predicated region
      $region33: #{mamba_forward.13} parent=11 // pred_check
        %p249 = pneg %p167
      $region34: #{mamba_forward.13} parent=11 // pred_check_branch
        %251 = sbr.rel (%p249) target = $region36
      $region35: #{mamba_forward.13} parent=11 // pred_region
        _
      $region36: #{mamba_forward.13} parent=11 // pred_fallthru
        _
    $region12: #{mamba_forward.13} parent=5 // pred_fallthru
      _
    %p252 = scmp.lt.s32.totalorder %s15, 2
    // Predicated region
    $region37: #{mamba_forward.13} parent=5 // pred_check
      %p253 = pneg %p252
    $region38: #{mamba_forward.13} parent=5 // pred_check_branch
      %255 = sbr.rel (%p253) target = $region40
    $region39: #{mamba_forward.13} parent=5 // pred_region
      // Predicated region
      $region41: #{mamba_forward.13} parent=39 // pred_check
        %p256 = pneg %p35
      $region42: #{mamba_forward.13} parent=39 // pred_check_branch
        %258 = sbr.rel (%p256) target = $region44
      $region43: #{mamba_forward.13} parent=39 // pred_region
        %s259 = smul.u32 2, %s15
        %p260 = scmp.lt.s32.totalorder %s259, 3
        %s261 = scalar_select %p260, %s259, 3
        %s262 = smul.addr %s261, 8
        %s263 = scalar_lea.vmem %s0, %s262
        %s264 = smul.u32 2, %s15
      $region44: #{mamba_forward.13} parent=39 // pred_fallthru
        _
    $region40: #{mamba_forward.13} parent=5 // pred_fallthru
      _
    %p265 = scmp.le.s32.totalorder 1, %s15
    %p266 = scmp.lt.s32.totalorder %s15, 3
    %p267 = pnand %p265, %p266
    %p268 = pneg %p267
    // Predicated region
    $region45: #{mamba_forward.13} parent=5 // pred_check
      _
    $region46: #{mamba_forward.13} parent=5 // pred_check_branch
      %270 = sbr.rel (%p267) target = $region48
    $region47: #{mamba_forward.13} parent=5 // pred_region
      %s271 = ssub.s32 %s15, 1
      %s272 = smul.u32 2, %s20
      %p273 = scmp.lt.s32.totalorder %s272, 3
      %s274 = scalar_select %p273, %s272, 3
      %s275 = smul.addr %s274, 8
      %s276 = scalar_lea.vmem %s0, %s275
      %p277 = pneg %p41
      %p278 = pneg %p38
      %p279 = pneg %p62
      %p280 = pneg %p59
      %p281 = pneg %p83
      %p282 = pneg %p80
      %p283 = pneg %p104
      %p284 = pneg %p101
      %p285 = pneg %p125
      %p286 = pneg %p122
      %p287 = pneg %p146
      %p288 = pneg %p143
      %p289 = pneg %p167
      %p290 = pneg %p164
      %p291 = pneg %p193
      %p292 = pneg %p190
      %s293 = smul.u32 2, %s20
      %p294 = scmp.lt.s32.totalorder %s293, 3
      %s295 = scalar_select %p294, %s293, 3
      %s296 = smul.addr %s295, 8
      %s297 = scalar_lea.vmem %s7, %s296
      %p298 = pneg %p219
      %p299 = pneg %p216
      %s300 = smul.u32 2, %s20
      %p301 = scmp.lt.s32.totalorder %s300, 3
      %s302 = scalar_select %p301, %s300, 3
      %s303 = smul.addr %s302, 8
      %s304 = scalar_lea.vmem %s8, %s303
      %s305 = smul.u32 2, %s20
      %p306 = scmp.lt.s32.totalorder %s305, 3
      %s307 = scalar_select %p306, %s305, 3
      %s308 = smul.addr %s307, 8
      %s309 = scalar_lea.vmem %s0, %s308
      %s310 = smul.u32 2, %s20
      %s311 = smul.u32 2, %s20
      %p312 = scmp.lt.s32.totalorder %s311, 3
      %s313 = scalar_select %p312, %s311, 3
      %s314 = smul.addr %s313, 8
      %s315 = scalar_lea.vmem %s7, %s314
      %s316 = smul.u32 2, %s20
      %s317 = smul.u32 2, %s20
      %p318 = scmp.lt.s32.totalorder %s317, 3
      %s319 = scalar_select %p318, %s317, 3
      %s320 = smul.addr %s319, 8
      %s321 = scalar_lea.vmem %s8, %s320
      %s322 = smul.u32 2, %s20
      %v323 = vld [vmem:[%s309] sm:$0xff]
      %v324 = vld [vmem:[%s309 + $0x8] sm:$0xff]
      %v325 = vld [vmem:[%s1] sm:$0xff]
      %v326 = vld [vmem:[%s1 + $0x8] sm:$0xff]
      %v327 = vld [vmem:[%s1 + $0x10] sm:$0xff]
      %v328 = vld [vmem:[%s1 + $0x18] sm:$0xff]
      %v329 = vld [vmem:[%s2] sm:$0x1]
      %v331 = vlaneseq
      %v332 = vshrl.u32 %v331, 7
      %v333 = vsub.s32 0, %v332
      %v334 = vrot.slane %v329, %v333
      %vm336 = vcmask 261120
      %v338 = vsel %vm336, %v323, 0
      %v341 = vsel %vm336, %v324, 0
      %343 = vmatprep.subr.mxu0 0.0
      %344 = vmatpush1.msra.mxu0 %v325
      %345 = vmatprep.subr.mxu0 0.0
      %346 = vmatpush1.msra.mxu0 %v326
      %347 = vmatprep.subr.mxu0 0.0
      %348 = vmatpush1.msra.mxu0 %v327
      %349 = vmatprep.subr.mxu0 0.0
      %350 = vmatpush1.msra.mxu0 %v328
      %351 = vmatprep.subr.mxu0 0.0
      %352 = vmatpush1.msra.mxu0 0.0
      %353 = vmatprep.subr.mxu0 0.0
      %354 = vmatpush1.msra.mxu0 0.0
      %355 = vmatprep.subr.mxu0 0.0
      %356 = vmatpush1.msra.mxu0 0.0
      %357 = vmatprep.subr.mxu0 0.0
      %358 = vmatpush1.msra.mxu0 0.0
      %359 = vmatprep.subr.mxu0 0.0
      %360 = vmatpush1.msra.mxu0 0.0
      %361 = vmatprep.subr.mxu0 0.0
      %362 = vmatpush1.msra.mxu0 0.0
      %363 = vmatprep.subr.mxu0 0.0
      %364 = vmatpush1.msra.mxu0 0.0
      %365 = vmatprep.subr.mxu0 0.0
      %366 = vmatpush1.msra.mxu0 0.0
      %367 = vmatprep.subr.mxu0 0.0
      %368 = vmatpush1.msra.mxu0 0.0
      %369 = vmatprep.subr.mxu0 0.0
      %370 = vmatpush1.msra.mxu0 0.0
      %371 = vmatprep.subr.mxu0 0.0
      %372 = vmatpush1.msra.mxu0 0.0
      %373 = vmatprep.subr.mxu0 0.0
      %374 = vmatpush1.msra.mxu0 0.0
      %375 = vmatprep.subr.mxu0 0.0
      %376 = vmatpush1.msra.mxu0 0.0
      %377 = vmatprep.subr.mxu0 0.0
      %378 = vmatpush1.msra.mxu0 0.0
      %379 = vmatprep.subr.mxu0 0.0
      %380 = vmatpush1.msra.mxu0 0.0
      %381 = vmatprep.subr.mxu0 0.0
      %382 = vmatpush1.msra.mxu0 0.0
      %383 = vmatprep.subr.mxu0 0.0
      %384 = vmatpush1.msra.mxu0 0.0
      %385 = vmatprep.subr.mxu0 0.0
      %386 = vmatpush1.msra.mxu0 0.0
      %387 = vmatprep.subr.mxu0 0.0
      %388 = vmatpush1.msra.mxu0 0.0
      %389 = vmatprep.subr.mxu0 0.0
      %390 = vmatpush1.msra.mxu0 0.0
      %391 = vmatprep.subr.mxu0 0.0
      %392 = vmatpush1.msra.mxu0 0.0
      %393 = vmatprep.subr.mxu0 0.0
      %394 = vmatpush1.msra.mxu0 0.0
      %395 = vmatprep.subr.mxu0 0.0
      %396 = vmatpush1.msra.mxu0 0.0
      %397 = vmatprep.subr.mxu0 0.0
      %398 = vmatpush1.msra.mxu0 0.0
      %399 = vmatprep.subr.mxu0 0.0
      %400 = vmatpush1.msra.mxu0 0.0
      %401 = vmatprep.subr.mxu0 0.0
      %402 = vmatpush1.msra.mxu0 0.0
      %403 = vmatprep.subr.mxu0 0.0
      %404 = vmatpush1.msra.mxu0 0.0
      %405 = vmatprep.subr.mxu0 0.0
      %406 = vmatpush1.msra.mxu0 0.0
      %407 = vmatprep.mubr.f32.mxu0 0.0
      %408 = vmatmul.mubr.f32.gmra.mrb[0].mxu0 %v338
      %v409 = vpop.f32.mrb[0].mxu0
      %v410 = vadd.f32 %v334, %v409
      %v411 = vpop.f32.mrb[0].mxu0
      %412 = vmatprep.mubr.f32.mxu0 0.0
      %413 = vmatmul.mubr.f32.gmra.mrb[0].mxu0 %v341
      %v414 = vpop.f32.mrb[0].mxu0
      %v415 = vadd.f32 %v334, %v414
      %v416 = vpop.f32.mrb[0].mxu0
      %417 = vdwg.mxu0
      %vm418 = vcmask 523264
      %419 = vst.msk [vmem:[%s315] sm:$0xff] %vm418, %v410
      %420 = vst.msk [vmem:[%s315 + $0x8] sm:$0xff] %vm418, %v415
      %v421 = vld [vmem:[%s3] sm:$0xff]
      %v422 = vld [vmem:[%s3 + $0x8] sm:$0xff]
      %v423 = vld [vmem:[%s3 + $0x10] sm:$0xff]
      %v424 = vld [vmem:[%s3 + $0x18] sm:$0xff]
      %v425 = vld [vmem:[%s4] sm:$0x1]
      %v427 = vlaneseq
      %v428 = vshrl.u32 %v427, 7
      %v429 = vsub.s32 0, %v428
      %v430 = vrot.slane %v425, %v429
      %432 = vmatprep.subr.mxu0 0.0
      %433 = vmatpush1.msra.mxu0 %v421
      %434 = vmatprep.subr.mxu0 0.0
      %435 = vmatpush1.msra.mxu0 %v422
      %436 = vmatprep.subr.mxu0 0.0
      %437 = vmatpush1.msra.mxu0 %v423
      %438 = vmatprep.subr.mxu0 0.0
      %439 = vmatpush1.msra.mxu0 %v424
      %440 = vmatprep.subr.mxu0 0.0
      %441 = vmatpush1.msra.mxu0 0.0
      %442 = vmatprep.subr.mxu0 0.0
      %443 = vmatpush1.msra.mxu0 0.0
      %444 = vmatprep.subr.mxu0 0.0
      %445 = vmatpush1.msra.mxu0 0.0
      %446 = vmatprep.subr.mxu0 0.0
      %447 = vmatpush1.msra.mxu0 0.0
      %448 = vmatprep.subr.mxu0 0.0
      %449 = vmatpush1.msra.mxu0 0.0
      %450 = vmatprep.subr.mxu0 0.0
      %451 = vmatpush1.msra.mxu0 0.0
      %452 = vmatprep.subr.mxu0 0.0
      %453 = vmatpush1.msra.mxu0 0.0
      %454 = vmatprep.subr.mxu0 0.0
      %455 = vmatpush1.msra.mxu0 0.0
      %456 = vmatprep.subr.mxu0 0.0
      %457 = vmatpush1.msra.mxu0 0.0
      %458 = vmatprep.subr.mxu0 0.0
      %459 = vmatpush1.msra.mxu0 0.0
      %460 = vmatprep.subr.mxu0 0.0
      %461 = vmatpush1.msra.mxu0 0.0
      %462 = vmatprep.subr.mxu0 0.0
      %463 = vmatpush1.msra.mxu0 0.0
      %464 = vmatprep.subr.mxu0 0.0
      %465 = vmatpush1.msra.mxu0 0.0
      %466 = vmatprep.subr.mxu0 0.0
      %467 = vmatpush1.msra.mxu0 0.0
      %468 = vmatprep.subr.mxu0 0.0
      %469 = vmatpush1.msra.mxu0 0.0
      %470 = vmatprep.subr.mxu0 0.0
      %471 = vmatpush1.msra.mxu0 0.0
      %472 = vmatprep.subr.mxu0 0.0
      %473 = vmatpush1.msra.mxu0 0.0
      %474 = vmatprep.subr.mxu0 0.0
      %475 = vmatpush1.msra.mxu0 0.0
      %476 = vmatprep.subr.mxu0 0.0
      %477 = vmatpush1.msra.mxu0 0.0
      %478 = vmatprep.subr.mxu0 0.0
      %479 = vmatpush1.msra.mxu0 0.0
      %480 = vmatprep.subr.mxu0 0.0
      %481 = vmatpush1.msra.mxu0 0.0
      %482 = vmatprep.subr.mxu0 0.0
      %483 = vmatpush1.msra.mxu0 0.0
      %484 = vmatprep.subr.mxu0 0.0
      %485 = vmatpush1.msra.mxu0 0.0
      %486 = vmatprep.subr.mxu0 0.0
      %487 = vmatpush1.msra.mxu0 0.0
      %488 = vmatprep.subr.mxu0 0.0
      %489 = vmatpush1.msra.mxu0 0.0
      %490 = vmatprep.subr.mxu0 0.0
      %491 = vmatpush1.msra.mxu0 0.0
      %492 = vmatprep.subr.mxu0 0.0
      %493 = vmatpush1.msra.mxu0 0.0
      %494 = vmatprep.subr.mxu0 0.0
      %495 = vmatpush1.msra.mxu0 0.0
      %496 = vmatprep.mubr.f32.mxu0 0.0
      %497 = vmatmul.mubr.f32.gmra.mrb[0].mxu0 %v338
      %v498 = vpop.f32.mrb[0].mxu0
      %v499 = vadd.f32 %v430, %v498
      %v500 = vpop.f32.mrb[0].mxu0
      %501 = vmatprep.mubr.f32.mxu0 0.0
      %502 = vmatmul.mubr.f32.gmra.mrb[0].mxu0 %v341
      %v503 = vpop.f32.mrb[0].mxu0
      %v504 = vadd.f32 %v430, %v503
      %v505 = vpop.f32.mrb[0].mxu0
      %506 = vdwg.mxu0
      %v507 = vld [vmem:[%s5] sm:$0x3]
      %v508 = vld [vmem:[%s6] sm:$0x1]
      %v510 = vlaneseq
      %v511 = vshrl.u32 %v510, 7
      %v512 = vsub.s32 0, %v511
      %v513 = vrot.slane %v508, %v512
      %vm515 = vcmask 15360
      %v517 = vsel %vm515, %v499, 0
      %v520 = vsel %vm515, %v504, 0
      %vm522 = vcmask 1041408
      %v524 = vsel %vm522, %v507, 0
      %526 = vmatprep.subr.mxu0 0.0
      %527 = vmatpush1.msra.mxu0 %v524
      %528 = vmatprep.subr.mxu0 0.0
      %529 = vmatpush1.msra.mxu0 0.0
      %530 = vmatprep.subr.mxu0 0.0
      %531 = vmatpush1.msra.mxu0 0.0
      %532 = vmatprep.subr.mxu0 0.0
      %533 = vmatpush1.msra.mxu0 0.0
      %534 = vmatprep.subr.mxu0 0.0
      %535 = vmatpush1.msra.mxu0 0.0
      %536 = vmatprep.subr.mxu0 0.0
      %537 = vmatpush1.msra.mxu0 0.0
      %538 = vmatprep.subr.mxu0 0.0
      %539 = vmatpush1.msra.mxu0 0.0
      %540 = vmatprep.subr.mxu0 0.0
      %541 = vmatpush1.msra.mxu0 0.0
      %542 = vmatprep.subr.mxu0 0.0
      %543 = vmatpush1.msra.mxu0 0.0
      %544 = vmatprep.subr.mxu0 0.0
      %545 = vmatpush1.msra.mxu0 0.0
      %546 = vmatprep.subr.mxu0 0.0
      %547 = vmatpush1.msra.mxu0 0.0
      %548 = vmatprep.subr.mxu0 0.0
      %549 = vmatpush1.msra.mxu0 0.0
      %550 = vmatprep.subr.mxu0 0.0
      %551 = vmatpush1.msra.mxu0 0.0
      %552 = vmatprep.subr.mxu0 0.0
      %553 = vmatpush1.msra.mxu0 0.0
      %554 = vmatprep.subr.mxu0 0.0
      %555 = vmatpush1.msra.mxu0 0.0
      %556 = vmatprep.subr.mxu0 0.0
      %557 = vmatpush1.msra.mxu0 0.0
      %558 = vmatprep.subr.mxu0 0.0
      %559 = vmatpush1.msra.mxu0 0.0
      %560 = vmatprep.subr.mxu0 0.0
      %561 = vmatpush1.msra.mxu0 0.0
      %562 = vmatprep.subr.mxu0 0.0
      %563 = vmatpush1.msra.mxu0 0.0
      %564 = vmatprep.subr.mxu0 0.0
      %565 = vmatpush1.msra.mxu0 0.0
      %566 = vmatprep.subr.mxu0 0.0
      %567 = vmatpush1.msra.mxu0 0.0
      %568 = vmatprep.subr.mxu0 0.0
      %569 = vmatpush1.msra.mxu0 0.0
      %570 = vmatprep.subr.mxu0 0.0
      %571 = vmatpush1.msra.mxu0 0.0
      %572 = vmatprep.subr.mxu0 0.0
      %573 = vmatpush1.msra.mxu0 0.0
      %574 = vmatprep.subr.mxu0 0.0
      %575 = vmatpush1.msra.mxu0 0.0
      %576 = vmatprep.subr.mxu0 0.0
      %577 = vmatpush1.msra.mxu0 0.0
      %578 = vmatprep.subr.mxu0 0.0
      %579 = vmatpush1.msra.mxu0 0.0
      %580 = vmatprep.subr.mxu0 0.0
      %581 = vmatpush1.msra.mxu0 0.0
      %582 = vmatprep.subr.mxu0 0.0
      %583 = vmatpush1.msra.mxu0 0.0
      %584 = vmatprep.subr.mxu0 0.0
      %585 = vmatpush1.msra.mxu0 0.0
      %586 = vmatprep.subr.mxu0 0.0
      %587 = vmatpush1.msra.mxu0 0.0
      %588 = vmatprep.subr.mxu0 0.0
      %589 = vmatpush1.msra.mxu0 0.0
      %590 = vmatprep.mubr.f32.mxu0 0.0
      %591 = vmatmul.mubr.f32.gmra.mrb[0].mxu0 %v517
      %v592 = vpop.f32.mrb[0].mxu0
      %v593 = vadd.f32 %v513, %v592
      %v594 = vpop.f32.mrb[0].mxu0
      %595 = vmatprep.mubr.f32.mxu0 0.0
      %596 = vmatmul.mubr.f32.gmra.mrb[0].mxu0 %v520
      %v597 = vpop.f32.mrb[0].mxu0
      %v598 = vadd.f32 %v513, %v597
      %v599 = vpop.f32.mrb[0].mxu0
      %600 = vdwg.mxu0
      %vm601 = vcmp.gt.f32.partialorder %v593, 20.0
      %vm602 = vcmp.gt.f32.partialorder %v598, 20.0
      %v603 = vmin.f32 %v593, 20.0
      %v604 = vmin.f32 %v598, 20.0
      %v605 = vmul.f32 %v603, 1.442695
      %v606 = vpow.pop %v605
      %v607 = vmul.f32 %v604, 1.442695
      %v608 = vpow.pop %v607
      %v609 = vadd.f32 %v606, 1.0
      %v610 = vlog2.pop %v609
      %v611 = vmul.f32 %v610, 0.6931472
      %v612 = vmul.f32 -0.5, %v606
      %v613 = vadd.f32 %v612, 1.0
      %v614 = vmul.f32 %v613, %v606
      %v615 = vand.u32 2147483647, %v606
      %vm616 = vcmp.lt.f32.partialorder %v615, 0.0004427343
      %v617 = vsel %vm616, %v614, %v611
      %v618 = vadd.f32 %v608, 1.0
      %v619 = vlog2.pop %v618
      %v620 = vmul.f32 %v619, 0.6931472
      %v621 = vmul.f32 -0.5, %v608
      %v622 = vadd.f32 %v621, 1.0
      %v623 = vmul.f32 %v622, %v608
      %v624 = vand.u32 2147483647, %v608
      %vm625 = vcmp.lt.f32.partialorder %v624, 0.0004427343
      %v626 = vsel %vm625, %v623, %v620
      %v627 = vsel %vm601, %v593, %v617
      %v628 = vsel %vm602, %v598, %v626
      %629 = vst.msk [vmem:[%s321] sm:$0xff] %vm336, %v627
      %630 = vst.msk [vmem:[%s321 + $0x8] sm:$0xff] %vm336, %v628
      %s631 = smul.u32 2, %s20
      %p632 = scmp.lt.s32.totalorder %s631, 3
      %s633 = scalar_select %p632, %s631, 3
      %s634 = smul.addr %s633, 8
      %s635 = scalar_lea.vmem %s7, %s634
      %s636 = smul.u32 2, %s20
      %p637 = scmp.lt.s32.totalorder %s636, 3
      %s638 = scalar_select %p637, %s636, 3
      %s639 = smul.addr %s638, 8
      %s640 = scalar_lea.vmem %s8, %s639
      // Predicated region
      $region49: #{mamba_forward.13} parent=47 // pred_check
        %p641 = pneg %p190
      $region50: #{mamba_forward.13} parent=47 // pred_check_branch
        %643 = sbr.rel (%p641) target = $region52
      $region51: #{mamba_forward.13} parent=47 // pred_region
        %s644 = smul.u32 2, %s20
      $region52: #{mamba_forward.13} parent=47 // pred_fallthru
        _
      // Predicated region
      $region53: #{mamba_forward.13} parent=47 // pred_check
        %p645 = pneg %p216
      $region54: #{mamba_forward.13} parent=47 // pred_check_branch
        %647 = sbr.rel (%p645) target = $region56
      $region55: #{mamba_forward.13} parent=47 // pred_region
        %s648 = smul.u32 2, %s20
      $region56: #{mamba_forward.13} parent=47 // pred_fallthru
        _
    $region48: #{mamba_forward.13} parent=5 // pred_fallthru
      _
    %p649 = scmp.le.s32.totalorder 2, %s15
    // Predicated region
    $region57: #{mamba_forward.13} parent=5 // pred_check
      %p650 = pneg %p649
    $region58: #{mamba_forward.13} parent=5 // pred_check_branch
      %652 = sbr.rel (%p650) target = $region60
    $region59: #{mamba_forward.13} parent=5 // pred_region
      %s653 = ssub.s32 %s15, 2
      // Predicated region
      $region61: #{mamba_forward.13} parent=59 // pred_check
        %p654 = pneg %p196
      $region62: #{mamba_forward.13} parent=59 // pred_check_branch
        %656 = sbr.rel (%p654) target = $region64
      $region63: #{mamba_forward.13} parent=59 // pred_region
        %s657 = smul.u32 2, %s21
        %p658 = scmp.lt.s32.totalorder %s657, 3
        %s659 = scalar_select %p658, %s657, 3
        %s660 = smul.addr %s659, 8
        %s661 = scalar_lea.vmem %s7, %s660
      $region64: #{mamba_forward.13} parent=59 // pred_fallthru
        _
      // Predicated region
      $region65: #{mamba_forward.13} parent=59 // pred_check
        %p662 = pneg %p222
      $region66: #{mamba_forward.13} parent=59 // pred_check_branch
        %664 = sbr.rel (%p662) target = $region68
      $region67: #{mamba_forward.13} parent=59 // pred_region
        %s665 = smul.u32 2, %s21
        %p666 = scmp.lt.s32.totalorder %s665, 3
        %s667 = scalar_select %p666, %s665, 3
        %s668 = smul.addr %s667, 8
        %s669 = scalar_lea.vmem %s8, %s668
      $region68: #{mamba_forward.13} parent=59 // pred_fallthru
        _
    $region60: #{mamba_forward.13} parent=5 // pred_fallthru
      _
  $region6: #{mamba_forward.13} parent=0 // loop_footer
    %s19 = sadd.s32 1, %s15
  $region7: #{mamba_forward.13} parent=0 // loop_footer_branch
    %14 = sbr.rel target = $region3
  $region8: #{mamba_forward.13} parent=0 // loop_exit
    _

// kernel: mamba_forward.15
$region0: #{mamba_forward.15}
  #allocation0 [shape = 'u32[]', space=smem, size = 0x4, offset = 0x4, fixed_abs, tag = 'smem constant byte address 0x4 - core index']
  #allocation1 [shape = 'u32[144,128]{1,0:T(1,128)}', space=vmem, size = 0x12000, scoped, tag = 'internal scratch']
  %s0 = inlined_call_operand.vmem [shape: f32[32,32], index: 0, kind: input, shape index: {}]
  %s1 = inlined_call_operand.vmem [shape: f32[32,32], index: 1, kind: input, shape index: {}]
  %s2 = inlined_call_operand.vmem [shape: f32[32,32], index: 2, kind: input, shape index: {}]
  %s3 = inlined_call_operand.vmem [shape: f32[1,32], index: 3, kind: input, shape index: {}]
  %s4 = inlined_call_operand.vmem [shape: f32[32,32], index: 4, kind: input, shape index: {}]
  %s5 = inlined_call_operand.vmem [shape: f32[32,32], index: 5, kind: output, shape index: {}]
  %s6 = sld [smem:[#allocation0]]
  $region53: #{mamba_forward.15} parent=0
    _
  %s8 = ssub.s32 1, %s6
  %s9 = scalar_select 0, %s8, %s6
  loop: start=0, step=1, limit=4
  $region2: #{mamba_forward.15} parent=0 // loop_pre_header
    _
  $region3: #{mamba_forward.15} parent=0 // loop_header
    %s11 = sphi 0, %s15
    %p12 = scmp.ge.s32.totalorder %s11, 4
    %s21 = sphi 0, %s23
    %s24 = sphi 0, %s21
    %s25 = sphi 0, %s24
    %s41 = sphi 0, %s25
    %s47 = sphi 0, %s49
    %s50 = sphi 0, %s47
    %s51 = sphi 0, %s50
    %s67 = sphi 0, %s51
    %s71 = sphi 0, %s71
    %s73 = sphi 0, %s71
    %s74 = sphi 0, %s73
    %s88 = sphi 0, %s74
    %s92 = sphi 0, %s92
    %s94 = sphi 0, %s92
    %s95 = sphi 0, %s94
    %s109 = sphi 0, %s95
    %s115 = sphi 0, %s117
    %s118 = sphi 0, %s115
    %s119 = sphi 0, %s118
    %s135 = sphi 0, %s119
    %s141 = sphi 0, %s143
    %s144 = sphi 0, %s141
    %s145 = sphi 0, %s144
    %s161 = sphi 0, %s145
  $region4: #{mamba_forward.15} parent=0 // loop_header_branch
    %14 = sbr.rel (%p12) target = $region8
  $region5: #{mamba_forward.15} parent=0 // loop_body
    %s16 = ssub.s32 %s11, 1
    %s17 = ssub.s32 %s11, 2
    %s18 = sadd.s32 %s11, 1
    %s19 = ssub.s32 %s11, %s18
    %p20 = scmp.eq.s32.totalorder %s19, 0
    %s22 = sadd.s32 %s21, 1
    %s23 = scalar_select %p20, %s21, %s22
    %p26 = pneg %p20
    %p27 = scmp.eq.s32.totalorder %s11, 1
    %p28 = por %p26, %p27
    %p29 = scmp.ne.s32.totalorder %s21, %s24
    %p30 = scmp.eq.s32.totalorder %s11, 0
    %p31 = por %p29, %p30
    %p32 = scmp.ne.s32.totalorder %s21, %s24
    %p33 = scmp.eq.s32.totalorder %s16, 1
    %p34 = por %p32, %p33
    %p35 = scmp.ne.s32.totalorder %s24, %s25
    %p36 = scmp.eq.s32.totalorder %s16, 0
    %p37 = por %p35, %p36
    %p38 = scmp.ne.s32.totalorder %s24, %s25
    %p39 = scmp.eq.s32.totalorder %s17, 1
    %p40 = por %p38, %p39
    %p42 = scmp.ne.s32.totalorder %s25, %s41
    %p43 = scmp.eq.s32.totalorder %s17, 0
    %p44 = por %p42, %p43
    %s45 = ssub.s32 %s11, %s18
    %p46 = scmp.eq.s32.totalorder %s45, 0
    %s48 = sadd.s32 %s47, 1
    %s49 = scalar_select %p46, %s47, %s48
    %p52 = pneg %p46
    %p53 = scmp.eq.s32.totalorder %s11, 1
    %p54 = por %p52, %p53
    %p55 = scmp.ne.s32.totalorder %s47, %s50
    %p56 = scmp.eq.s32.totalorder %s11, 0
    %p57 = por %p55, %p56
    %p58 = scmp.ne.s32.totalorder %s47, %s50
    %p59 = scmp.eq.s32.totalorder %s16, 1
    %p60 = por %p58, %p59
    %p61 = scmp.ne.s32.totalorder %s50, %s51
    %p62 = scmp.eq.s32.totalorder %s16, 0
    %p63 = por %p61, %p62
    %p64 = scmp.ne.s32.totalorder %s50, %s51
    %p65 = scmp.eq.s32.totalorder %s17, 1
    %p66 = por %p64, %p65
    %p68 = scmp.ne.s32.totalorder %s51, %s67
    %p69 = scmp.eq.s32.totalorder %s17, 0
    %p70 = por %p68, %p69
    %s72 = sadd.s32 %s71, 1
    %p75 = scmp.eq.s32.totalorder %s11, 1
    %p76 = scmp.ne.s32.totalorder %s71, %s73
    %p77 = scmp.eq.s32.totalorder %s11, 0
    %p78 = por %p76, %p77
    %p79 = scmp.ne.s32.totalorder %s71, %s73
    %p80 = scmp.eq.s32.totalorder %s16, 1
    %p81 = por %p79, %p80
    %p82 = scmp.ne.s32.totalorder %s73, %s74
    %p83 = scmp.eq.s32.totalorder %s16, 0
    %p84 = por %p82, %p83
    %p85 = scmp.ne.s32.totalorder %s73, %s74
    %p86 = scmp.eq.s32.totalorder %s17, 1
    %p87 = por %p85, %p86
    %p89 = scmp.ne.s32.totalorder %s74, %s88
    %p90 = scmp.eq.s32.totalorder %s17, 0
    %p91 = por %p89, %p90
    %s93 = sadd.s32 %s92, 1
    %p96 = scmp.eq.s32.totalorder %s11, 1
    %p97 = scmp.ne.s32.totalorder %s92, %s94
    %p98 = scmp.eq.s32.totalorder %s11, 0
    %p99 = por %p97, %p98
    %p100 = scmp.ne.s32.totalorder %s92, %s94
    %p101 = scmp.eq.s32.totalorder %s16, 1
    %p102 = por %p100, %p101
    %p103 = scmp.ne.s32.totalorder %s94, %s95
    %p104 = scmp.eq.s32.totalorder %s16, 0
    %p105 = por %p103, %p104
    %p106 = scmp.ne.s32.totalorder %s94, %s95
    %p107 = scmp.eq.s32.totalorder %s17, 1
    %p108 = por %p106, %p107
    %p110 = scmp.ne.s32.totalorder %s95, %s109
    %p111 = scmp.eq.s32.totalorder %s17, 0
    %p112 = por %p110, %p111
    %s113 = ssub.s32 %s11, %s18
    %p114 = scmp.eq.s32.totalorder %s113, 0
    %s116 = sadd.s32 %s115, 1
    %s117 = scalar_select %p114, %s115, %s116
    %p120 = pneg %p114
    %p121 = scmp.eq.s32.totalorder %s11, 1
    %p122 = por %p120, %p121
    %p123 = scmp.ne.s32.totalorder %s115, %s118
    %p124 = scmp.eq.s32.totalorder %s11, 0
    %p125 = por %p123, %p124
    %p126 = scmp.ne.s32.totalorder %s115, %s118
    %p127 = scmp.eq.s32.totalorder %s16, 1
    %p128 = por %p126, %p127
    %p129 = scmp.ne.s32.totalorder %s118, %s119
    %p130 = scmp.eq.s32.totalorder %s16, 0
    %p131 = por %p129, %p130
    %p132 = scmp.ne.s32.totalorder %s118, %s119
    %p133 = scmp.eq.s32.totalorder %s17, 1
    %p134 = por %p132, %p133
    %p136 = scmp.ne.s32.totalorder %s119, %s135
    %p137 = scmp.eq.s32.totalorder %s17, 0
    %p138 = por %p136, %p137
    %s139 = ssub.s32 %s11, %s18
    %p140 = scmp.eq.s32.totalorder %s139, 0
    %s142 = sadd.s32 %s141, 1
    %s143 = scalar_select %p140, %s141, %s142
    %p146 = pneg %p140
    %p147 = scmp.eq.s32.totalorder %s11, 1
    %p148 = por %p146, %p147
    %p149 = scmp.ne.s32.totalorder %s141, %s144
    %p150 = scmp.eq.s32.totalorder %s11, 0
    %p151 = por %p149, %p150
    %p152 = scmp.ne.s32.totalorder %s141, %s144
    %p153 = scmp.eq.s32.totalorder %s16, 1
    %p154 = por %p152, %p153
    %p155 = scmp.ne.s32.totalorder %s144, %s145
    %p156 = scmp.eq.s32.totalorder %s16, 0
    %p157 = por %p155, %p156
    %p158 = scmp.ne.s32.totalorder %s144, %s145
    %p159 = scmp.eq.s32.totalorder %s17, 1
    %p160 = por %p158, %p159
    %p162 = scmp.ne.s32.totalorder %s145, %s161
    %p163 = scmp.eq.s32.totalorder %s17, 0
    %p164 = por %p162, %p163
    %p165 = scmp.le.s32.totalorder 1, %s11
    %p166 = scmp.lt.s32.totalorder %s11, 3
    %p167 = pnand %p165, %p166
    %p168 = pneg %p167
    // Predicated region
    $region9: #{mamba_forward.15} parent=5 // pred_check
      _
    $region10: #{mamba_forward.15} parent=5 // pred_check_branch
      %170 = sbr.rel (%p167) target = $region12
    $region11: #{mamba_forward.15} parent=5 // pred_region
      %s171 = ssub.s32 %s11, 1
      // Predicated region
      $region13: #{mamba_forward.15} parent=11 // pred_check
        %p172 = pneg %p84
      $region14: #{mamba_forward.15} parent=11 // pred_check_branch
        %174 = sbr.rel (%p172) target = $region16
      $region15: #{mamba_forward.15} parent=11 // pred_region
        _
      $region16: #{mamba_forward.15} parent=11 // pred_fallthru
        _
      // Predicated region
      $region17: #{mamba_forward.15} parent=11 // pred_check
        %p175 = pneg %p105
      $region18: #{mamba_forward.15} parent=11 // pred_check_branch
        %177 = sbr.rel (%p175) target = $region20
      $region19: #{mamba_forward.15} parent=11 // pred_region
        _
      $region20: #{mamba_forward.15} parent=11 // pred_fallthru
        _
    $region12: #{mamba_forward.15} parent=5 // pred_fallthru
      _
    %p178 = scmp.lt.s32.totalorder %s11, 2
    // Predicated region
    $region21: #{mamba_forward.15} parent=5 // pred_check
      %p179 = pneg %p178
    $region22: #{mamba_forward.15} parent=5 // pred_check_branch
      %181 = sbr.rel (%p179) target = $region24
    $region23: #{mamba_forward.15} parent=5 // pred_region
      // Predicated region
      $region25: #{mamba_forward.15} parent=23 // pred_check
        %p182 = pneg %p31
      $region26: #{mamba_forward.15} parent=23 // pred_check_branch
        %184 = sbr.rel (%p182) target = $region28
      $region27: #{mamba_forward.15} parent=23 // pred_region
        %s185 = smul.u32 2, %s11
        %p186 = scmp.lt.s32.totalorder %s185, 3
        %s187 = scalar_select %p186, %s185, 3
        %s188 = smul.addr %s187, 8
        %s189 = scalar_lea.vmem %s0, %s188
        %s190 = smul.u32 2, %s11
      $region28: #{mamba_forward.15} parent=23 // pred_fallthru
        _
      // Predicated region
      $region29: #{mamba_forward.15} parent=23 // pred_check
        %p191 = pneg %p57
      $region30: #{mamba_forward.15} parent=23 // pred_check_branch
        %193 = sbr.rel (%p191) target = $region32
      $region31: #{mamba_forward.15} parent=23 // pred_region
        %s194 = smul.u32 2, %s11
        %p195 = scmp.lt.s32.totalorder %s194, 3
        %s196 = scalar_select %p195, %s194, 3
        %s197 = smul.addr %s196, 8
        %s198 = scalar_lea.vmem %s1, %s197
        %s199 = smul.u32 2, %s11
      $region32: #{mamba_forward.15} parent=23 // pred_fallthru
        _
      // Predicated region
      $region33: #{mamba_forward.15} parent=23 // pred_check
        %p200 = pneg %p125
      $region34: #{mamba_forward.15} parent=23 // pred_check_branch
        %202 = sbr.rel (%p200) target = $region36
      $region35: #{mamba_forward.15} parent=23 // pred_region
        %s203 = smul.u32 2, %s11
        %p204 = scmp.lt.s32.totalorder %s203, 3
        %s205 = scalar_select %p204, %s203, 3
        %s206 = smul.addr %s205, 8
        %s207 = scalar_lea.vmem %s4, %s206
        %s208 = smul.u32 2, %s11
      $region36: #{mamba_forward.15} parent=23 // pred_fallthru
        _
    $region24: #{mamba_forward.15} parent=5 // pred_fallthru
      _
    %p209 = scmp.le.s32.totalorder 1, %s11
    %p210 = scmp.lt.s32.totalorder %s11, 3
    %p211 = pnand %p209, %p210
    %p212 = pneg %p211
    // Predicated region
    $region37: #{mamba_forward.15} parent=5 // pred_check
      _
    $region38: #{mamba_forward.15} parent=5 // pred_check_branch
      %214 = sbr.rel (%p211) target = $region40
    $region39: #{mamba_forward.15} parent=5 // pred_region
      %s215 = ssub.s32 %s11, 1
      %s216 = smul.u32 2, %s16
      %p217 = scmp.lt.s32.totalorder %s216, 3
      %s218 = scalar_select %p217, %s216, 3
      %s219 = smul.addr %s218, 8
      %s220 = scalar_lea.vmem %s0, %s219
      %p221 = pneg %p37
      %p222 = pneg %p34
      %s223 = smul.u32 2, %s16
      %p224 = scmp.lt.s32.totalorder %s223, 3
      %s225 = scalar_select %p224, %s223, 3
      %s226 = smul.addr %s225, 8
      %s227 = scalar_lea.vmem %s1, %s226
      %p228 = pneg %p63
      %p229 = pneg %p60
      %p230 = pneg %p84
      %p231 = pneg %p81
      %p232 = pneg %p105
      %p233 = pneg %p102
      %s234 = smul.u32 2, %s16
      %p235 = scmp.lt.s32.totalorder %s234, 3
      %s236 = scalar_select %p235, %s234, 3
      %s237 = smul.addr %s236, 8
      %s238 = scalar_lea.vmem %s4, %s237
      %p239 = pneg %p131
      %p240 = pneg %p128
      %p241 = pneg %p157
      %p242 = pneg %p154
      %s243 = smul.u32 2, %s16
      %p244 = scmp.lt.s32.totalorder %s243, 3
      %s245 = scalar_select %p244, %s243, 3
      %s246 = smul.addr %s245, 8
      %s247 = scalar_lea.vmem %s5, %s246
      %s248 = smul.u32 2, %s16
      %p249 = scmp.lt.s32.totalorder %s248, 3
      %s250 = scalar_select %p249, %s248, 3
      %s251 = smul.addr %s250, 8
      %s252 = scalar_lea.vmem %s0, %s251
      %s253 = smul.u32 2, %s16
      %s254 = smul.u32 2, %s16
      %p255 = scmp.lt.s32.totalorder %s254, 3
      %s256 = scalar_select %p255, %s254, 3
      %s257 = smul.addr %s256, 8
      %s258 = scalar_lea.vmem %s1, %s257
      %s259 = smul.u32 2, %s16
      %s260 = smul.u32 2, %s16
      %p261 = scmp.lt.s32.totalorder %s260, 3
      %s262 = scalar_select %p261, %s260, 3
      %s263 = smul.addr %s262, 8
      %s264 = scalar_lea.vmem %s4, %s263
      %s265 = smul.u32 2, %s16
      %s266 = smul.u32 2, %s16
      %p267 = scmp.lt.s32.totalorder %s266, 3
      %s268 = scalar_select %p267, %s266, 3
      %s269 = smul.addr %s268, 8
      %s270 = scalar_lea.vmem %s5, %s269
      %s271 = smul.u32 2, %s16
      %v272 = vld [vmem:[%s252] sm:$0xff]
      %v273 = vld [vmem:[%s252 + $0x8] sm:$0xff]
      %v274 = vld [vmem:[%s258] sm:$0xff]
      %v275 = vld [vmem:[%s258 + $0x8] sm:$0xff]
      %v276 = vmul.f32 %v272, %v274
      %v277 = vmul.f32 %v273, %v275
      %v278 = vld [vmem:[%s2] sm:$0xff]
      %v279 = vld [vmem:[%s2 + $0x8] sm:$0xff]
      %v280 = vld [vmem:[%s2 + $0x10] sm:$0xff]
      %v281 = vld [vmem:[%s2 + $0x18] sm:$0xff]
      %v282 = vld [vmem:[%s3] sm:$0x1]
      %v284 = vlaneseq
      %v285 = vshrl.u32 %v284, 7
      %v286 = vsub.s32 0, %v285
      %v287 = vrot.slane %v282, %v286
      %vm289 = vcmask 261120
      %v291 = vsel %vm289, %v276, 0
      %v294 = vsel %vm289, %v277, 0
      %296 = vmatprep.subr.mxu0 0.0
      %297 = vmatpush1.msra.mxu0 %v278
      %298 = vmatprep.subr.mxu0 0.0
      %299 = vmatpush1.msra.mxu0 %v279
      %300 = vmatprep.subr.mxu0 0.0
      %301 = vmatpush1.msra.mxu0 %v280
      %302 = vmatprep.subr.mxu0 0.0
      %303 = vmatpush1.msra.mxu0 %v281
      %304 = vmatprep.subr.mxu0 0.0
      %305 = vmatpush1.msra.mxu0 0.0
      %306 = vmatprep.subr.mxu0 0.0
      %307 = vmatpush1.msra.mxu0 0.0
      %308 = vmatprep.subr.mxu0 0.0
      %309 = vmatpush1.msra.mxu0 0.0
      %310 = vmatprep.subr.mxu0 0.0
      %311 = vmatpush1.msra.mxu0 0.0
      %312 = vmatprep.subr.mxu0 0.0
      %313 = vmatpush1.msra.mxu0 0.0
      %314 = vmatprep.subr.mxu0 0.0
      %315 = vmatpush1.msra.mxu0 0.0
      %316 = vmatprep.subr.mxu0 0.0
      %317 = vmatpush1.msra.mxu0 0.0
      %318 = vmatprep.subr.mxu0 0.0
      %319 = vmatpush1.msra.mxu0 0.0
      %320 = vmatprep.subr.mxu0 0.0
      %321 = vmatpush1.msra.mxu0 0.0
      %322 = vmatprep.subr.mxu0 0.0
      %323 = vmatpush1.msra.mxu0 0.0
      %324 = vmatprep.subr.mxu0 0.0
      %325 = vmatpush1.msra.mxu0 0.0
      %326 = vmatprep.subr.mxu0 0.0
      %327 = vmatpush1.msra.mxu0 0.0
      %328 = vmatprep.subr.mxu0 0.0
      %329 = vmatpush1.msra.mxu0 0.0
      %330 = vmatprep.subr.mxu0 0.0
      %331 = vmatpush1.msra.mxu0 0.0
      %332 = vmatprep.subr.mxu0 0.0
      %333 = vmatpush1.msra.mxu0 0.0
      %334 = vmatprep.subr.mxu0 0.0
      %335 = vmatpush1.msra.mxu0 0.0
      %336 = vmatprep.subr.mxu0 0.0
      %337 = vmatpush1.msra.mxu0 0.0
      %338 = vmatprep.subr.mxu0 0.0
      %339 = vmatpush1.msra.mxu0 0.0
      %340 = vmatprep.subr.mxu0 0.0
      %341 = vmatpush1.msra.mxu0 0.0
      %342 = vmatprep.subr.mxu0 0.0
      %343 = vmatpush1.msra.mxu0 0.0
      %344 = vmatprep.subr.mxu0 0.0
      %345 = vmatpush1.msra.mxu0 0.0
      %346 = vmatprep.subr.mxu0 0.0
      %347 = vmatpush1.msra.mxu0 0.0
      %348 = vmatprep.subr.mxu0 0.0
      %349 = vmatpush1.msra.mxu0 0.0
      %350 = vmatprep.subr.mxu0 0.0
      %351 = vmatpush1.msra.mxu0 0.0
      %352 = vmatprep.subr.mxu0 0.0
      %353 = vmatpush1.msra.mxu0 0.0
      %354 = vmatprep.subr.mxu0 0.0
      %355 = vmatpush1.msra.mxu0 0.0
      %356 = vmatprep.subr.mxu0 0.0
      %357 = vmatpush1.msra.mxu0 0.0
      %358 = vmatprep.subr.mxu0 0.0
      %359 = vmatpush1.msra.mxu0 0.0
      %360 = vmatprep.mubr.f32.mxu0 0.0
      %361 = vmatmul.mubr.f32.gmra.mrb[0].mxu0 %v291
      %v362 = vpop.f32.mrb[0].mxu0
      %v363 = vadd.f32 %v287, %v362
      %v364 = vpop.f32.mrb[0].mxu0
      %365 = vmatprep.mubr.f32.mxu0 0.0
      %366 = vmatmul.mubr.f32.gmra.mrb[0].mxu0 %v294
      %v367 = vpop.f32.mrb[0].mxu0
      %v368 = vadd.f32 %v287, %v367
      %v369 = vpop.f32.mrb[0].mxu0
      %370 = vdwg.mxu0
      %v371 = vld [vmem:[%s264] sm:$0xff]
      %v372 = vld [vmem:[%s264 + $0x8] sm:$0xff]
      %v373 = vadd.f32 %v363, %v371
      %v374 = vadd.f32 %v368, %v372
      %375 = vst.msk [vmem:[%s270] sm:$0xff] %vm289, %v373
      %376 = vst.msk [vmem:[%s270 + $0x8] sm:$0xff] %vm289, %v374
      %s377 = smul.u32 2, %s16
      %p378 = scmp.lt.s32.totalorder %s377, 3
      %s379 = scalar_select %p378, %s377, 3
      %s380 = smul.addr %s379, 8
      %s381 = scalar_lea.vmem %s5, %s380
      // Predicated region
      $region41: #{mamba_forward.15} parent=39 // pred_check
        %p382 = pneg %p154
      $region42: #{mamba_forward.15} parent=39 // pred_check_branch
        %384 = sbr.rel (%p382) target = $region44
      $region43: #{mamba_forward.15} parent=39 // pred_region
        %s385 = smul.u32 2, %s16
      $region44: #{mamba_forward.15} parent=39 // pred_fallthru
        _
    $region40: #{mamba_forward.15} parent=5 // pred_fallthru
      _
    %p386 = scmp.le.s32.totalorder 2, %s11
    // Predicated region
    $region45: #{mamba_forward.15} parent=5 // pred_check
      %p387 = pneg %p386
    $region46: #{mamba_forward.15} parent=5 // pred_check_branch
      %389 = sbr.rel (%p387) target = $region48
    $region47: #{mamba_forward.15} parent=5 // pred_region
      %s390 = ssub.s32 %s11, 2
      // Predicated region
      $region49: #{mamba_forward.15} parent=47 // pred_check
        %p391 = pneg %p160
      $region50: #{mamba_forward.15} parent=47 // pred_check_branch
        %393 = sbr.rel (%p391) target = $region52
      $region51: #{mamba_forward.15} parent=47 // pred_region
        %s394 = smul.u32 2, %s17
        %p395 = scmp.lt.s32.totalorder %s394, 3
        %s396 = scalar_select %p395, %s394, 3
        %s397 = smul.addr %s396, 8
        %s398 = scalar_lea.vmem %s5, %s397
      $region52: #{mamba_forward.15} parent=47 // pred_fallthru
        _
    $region48: #{mamba_forward.15} parent=5 // pred_fallthru
      _
  $region6: #{mamba_forward.15} parent=0 // loop_footer
    %s15 = sadd.s32 1, %s11
  $region7: #{mamba_forward.15} parent=0 // loop_footer_branch
    %10 = sbr.rel target = $region3
  $region8: #{mamba_forward.15} parent=0 // loop_exit
    _

// kernel: mamba_forward.21
$region0: #{mamba_forward.21}
  #allocation0 [shape = 'u32[]', space=smem, size = 0x4, offset = 0x4, fixed_abs, tag = 'smem constant byte address 0x4 - core index']
  #allocation1 [shape = 'u32[144,128]{1,0:T(1,128)}', space=vmem, size = 0x12000, scoped, tag = 'internal scratch']
  %s0 = inlined_call_operand.vmem [shape: f32[32,32], index: 0, kind: input, shape index: {}]
  %s1 = inlined_call_operand.vmem [shape: f32[1,32], index: 1, kind: input, shape index: {}]
  %s2 = inlined_call_operand.vmem [shape: f32[32,64], index: 2, kind: input, shape index: {}]
  %s3 = inlined_call_operand.vmem [shape: f32[1,64], index: 3, kind: input, shape index: {}]
  %s4 = inlined_call_operand.hbm [shape: f32[32,64], index: 4, kind: output, shape index: {}]
  %s5 = sld [smem:[#allocation0]]
  $region49: #{mamba_forward.21} parent=0
    _
  %s7 = ssub.s32 1, %s5
  %s8 = scalar_select 0, %s7, %s5
  $region1: #{mamba_forward.21} parent=0
    #allocation2 [shape = 'u8[16384]{0}', space=vmem, size = 0x4000, scoped, tag = 'output window, operand 0']
    #allocation3 [shape = 's32[2]{0}', space=sflag, size = 0x8, scoped, tag = 'scoped memory for mamba_forward.21']
    %9 = vsyncpa [#allocation3], 0
    %s10 = scalar_lea.sflag [#allocation3], 1
    %11 = vsyncpa %s10, 0
    loop: start=0, step=1, limit=4
    $region2: #{mamba_forward.21} parent=1 // loop_pre_header
      _
    $region3: #{mamba_forward.21} parent=1 // loop_header
      %s13 = sphi 0, %s17
      %p14 = scmp.ge.s32.totalorder %s13, 4
      %s23 = sphi 0, %s25
      %s26 = sphi 0, %s23
      %s27 = sphi 0, %s26
      %s43 = sphi 0, %s27
      %s47 = sphi 0, %s47
      %s49 = sphi 0, %s47
      %s50 = sphi 0, %s49
      %s64 = sphi 0, %s50
      %s68 = sphi 0, %s68
      %s70 = sphi 0, %s68
      %s71 = sphi 0, %s70
      %s85 = sphi 0, %s71
      %s89 = sphi 0, %s89
      %s91 = sphi 0, %s89
      %s92 = sphi 0, %s91
      %s106 = sphi 0, %s92
      %s112 = sphi 0, %s114
      %s115 = sphi 0, %s112
      %s116 = sphi 0, %s115
      %s132 = sphi 0, %s116
    $region4: #{mamba_forward.21} parent=1 // loop_header_branch
      %16 = sbr.rel (%p14) target = $region8
    $region5: #{mamba_forward.21} parent=1 // loop_body
      %s18 = ssub.s32 %s13, 1
      %s19 = ssub.s32 %s13, 2
      %s20 = sadd.s32 %s13, 1
      %s21 = ssub.s32 %s13, %s20
      %p22 = scmp.eq.s32.totalorder %s21, 0
      %s24 = sadd.s32 %s23, 1
      %s25 = scalar_select %p22, %s23, %s24
      %p28 = pneg %p22
      %p29 = scmp.eq.s32.totalorder %s13, 1
      %p30 = por %p28, %p29
      %p31 = scmp.ne.s32.totalorder %s23, %s26
      %p32 = scmp.eq.s32.totalorder %s13, 0
      %p33 = por %p31, %p32
      %p34 = scmp.ne.s32.totalorder %s23, %s26
      %p35 = scmp.eq.s32.totalorder %s18, 1
      %p36 = por %p34, %p35
      %p37 = scmp.ne.s32.totalorder %s26, %s27
      %p38 = scmp.eq.s32.totalorder %s18, 0
      %p39 = por %p37, %p38
      %p40 = scmp.ne.s32.totalorder %s26, %s27
      %p41 = scmp.eq.s32.totalorder %s19, 1
      %p42 = por %p40, %p41
      %p44 = scmp.ne.s32.totalorder %s27, %s43
      %p45 = scmp.eq.s32.totalorder %s19, 0
      %p46 = por %p44, %p45
      %s48 = sadd.s32 %s47, 1
      %p51 = scmp.eq.s32.totalorder %s13, 1
      %p52 = scmp.ne.s32.totalorder %s47, %s49
      %p53 = scmp.eq.s32.totalorder %s13, 0
      %p54 = por %p52, %p53
      %p55 = scmp.ne.s32.totalorder %s47, %s49
      %p56 = scmp.eq.s32.totalorder %s18, 1
      %p57 = por %p55, %p56
      %p58 = scmp.ne.s32.totalorder %s49, %s50
      %p59 = scmp.eq.s32.totalorder %s18, 0
      %p60 = por %p58, %p59
      %p61 = scmp.ne.s32.totalorder %s49, %s50
      %p62 = scmp.eq.s32.totalorder %s19, 1
      %p63 = por %p61, %p62
      %p65 = scmp.ne.s32.totalorder %s50, %s64
      %p66 = scmp.eq.s32.totalorder %s19, 0
      %p67 = por %p65, %p66
      %s69 = sadd.s32 %s68, 1
      %p72 = scmp.eq.s32.totalorder %s13, 1
      %p73 = scmp.ne.s32.totalorder %s68, %s70
      %p74 = scmp.eq.s32.totalorder %s13, 0
      %p75 = por %p73, %p74
      %p76 = scmp.ne.s32.totalorder %s68, %s70
      %p77 = scmp.eq.s32.totalorder %s18, 1
      %p78 = por %p76, %p77
      %p79 = scmp.ne.s32.totalorder %s70, %s71
      %p80 = scmp.eq.s32.totalorder %s18, 0
      %p81 = por %p79, %p80
      %p82 = scmp.ne.s32.totalorder %s70, %s71
      %p83 = scmp.eq.s32.totalorder %s19, 1
      %p84 = por %p82, %p83
      %p86 = scmp.ne.s32.totalorder %s71, %s85
      %p87 = scmp.eq.s32.totalorder %s19, 0
      %p88 = por %p86, %p87
      %s90 = sadd.s32 %s89, 1
      %p93 = scmp.eq.s32.totalorder %s13, 1
      %p94 = scmp.ne.s32.totalorder %s89, %s91
      %p95 = scmp.eq.s32.totalorder %s13, 0
      %p96 = por %p94, %p95
      %p97 = scmp.ne.s32.totalorder %s89, %s91
      %p98 = scmp.eq.s32.totalorder %s18, 1
      %p99 = por %p97, %p98
      %p100 = scmp.ne.s32.totalorder %s91, %s92
      %p101 = scmp.eq.s32.totalorder %s18, 0
      %p102 = por %p100, %p101
      %p103 = scmp.ne.s32.totalorder %s91, %s92
      %p104 = scmp.eq.s32.totalorder %s19, 1
      %p105 = por %p103, %p104
      %p107 = scmp.ne.s32.totalorder %s92, %s106
      %p108 = scmp.eq.s32.totalorder %s19, 0
      %p109 = por %p107, %p108
      %s110 = ssub.s32 %s13, %s20
      %p111 = scmp.eq.s32.totalorder %s110, 0
      %s113 = sadd.s32 %s112, 1
      %s114 = scalar_select %p111, %s112, %s113
      %p117 = pneg %p111
      %p118 = scmp.eq.s32.totalorder %s13, 1
      %p119 = por %p117, %p118
      %p120 = scmp.ne.s32.totalorder %s112, %s115
      %p121 = scmp.eq.s32.totalorder %s13, 0
      %p122 = por %p120, %p121
      %p123 = scmp.ne.s32.totalorder %s112, %s115
      %p124 = scmp.eq.s32.totalorder %s18, 1
      %p125 = por %p123, %p124
      %p126 = scmp.ne.s32.totalorder %s115, %s116
      %p127 = scmp.eq.s32.totalorder %s18, 0
      %p128 = por %p126, %p127
      %p129 = scmp.ne.s32.totalorder %s115, %s116
      %p130 = scmp.eq.s32.totalorder %s19, 1
      %p131 = por %p129, %p130
      %p133 = scmp.ne.s32.totalorder %s116, %s132
      %p134 = scmp.eq.s32.totalorder %s19, 0
      %p135 = por %p133, %p134
      %p136 = scmp.le.s32.totalorder 1, %s13
      %p137 = scmp.lt.s32.totalorder %s13, 3
      %p138 = pnand %p136, %p137
      %p139 = pneg %p138
      // Predicated region
      $region9: #{mamba_forward.21} parent=5 // pred_check
        _
      $region10: #{mamba_forward.21} parent=5 // pred_check_branch
        %141 = sbr.rel (%p138) target = $region12
      $region11: #{mamba_forward.21} parent=5 // pred_region
        %s142 = ssub.s32 %s13, 1
        // Predicated region
        $region13: #{mamba_forward.21} parent=11 // pred_check
          %p143 = pneg %p60
        $region14: #{mamba_forward.21} parent=11 // pred_check_branch
          %145 = sbr.rel (%p143) target = $region16
        $region15: #{mamba_forward.21} parent=11 // pred_region
          _
        $region16: #{mamba_forward.21} parent=11 // pred_fallthru
          _
        // Predicated region
        $region17: #{mamba_forward.21} parent=11 // pred_check
          %p146 = pneg %p81
        $region18: #{mamba_forward.21} parent=11 // pred_check_branch
          %148 = sbr.rel (%p146) target = $region20
        $region19: #{mamba_forward.21} parent=11 // pred_region
          _
        $region20: #{mamba_forward.21} parent=11 // pred_fallthru
          _
        // Predicated region
        $region21: #{mamba_forward.21} parent=11 // pred_check
          %p149 = pneg %p102
        $region22: #{mamba_forward.21} parent=11 // pred_check_branch
          %151 = sbr.rel (%p149) target = $region24
        $region23: #{mamba_forward.21} parent=11 // pred_region
          _
        $region24: #{mamba_forward.21} parent=11 // pred_fallthru
          _
      $region12: #{mamba_forward.21} parent=5 // pred_fallthru
        _
      %p152 = scmp.lt.s32.totalorder %s13, 2
      // Predicated region
      $region25: #{mamba_forward.21} parent=5 // pred_check
        %p153 = pneg %p152
      $region26: #{mamba_forward.21} parent=5 // pred_check_branch
        %155 = sbr.rel (%p153) target = $region28
      $region27: #{mamba_forward.21} parent=5 // pred_region
        // Predicated region
        $region29: #{mamba_forward.21} parent=27 // pred_check
          %p156 = pneg %p33
        $region30: #{mamba_forward.21} parent=27 // pred_check_branch
          %158 = sbr.rel (%p156) target = $region32
        $region31: #{mamba_forward.21} parent=27 // pred_region
          %s159 = smul.u32 2, %s13
          %p160 = scmp.lt.s32.totalorder %s159, 3
          %s161 = scalar_select %p160, %s159, 3
          %s162 = smul.addr %s161, 8
          %s163 = scalar_lea.vmem %s0, %s162
          %s164 = smul.u32 2, %s13
        $region32: #{mamba_forward.21} parent=27 // pred_fallthru
          _
      $region28: #{mamba_forward.21} parent=5 // pred_fallthru
        _
      %p165 = scmp.le.s32.totalorder 1, %s13
      %p166 = scmp.lt.s32.totalorder %s13, 3
      %p167 = pnand %p165, %p166
      %p168 = pneg %p167
      // Predicated region
      $region33: #{mamba_forward.21} parent=5 // pred_check
        _
      $region34: #{mamba_forward.21} parent=5 // pred_check_branch
        %170 = sbr.rel (%p167) target = $region36
      $region35: #{mamba_forward.21} parent=5 // pred_region
        %s171 = ssub.s32 %s13, 1
        %s172 = smul.u32 2, %s18
        %p173 = scmp.lt.s32.totalorder %s172, 3
        %s174 = scalar_select %p173, %s172, 3
        %s175 = smul.addr %s174, 8
        %s176 = scalar_lea.vmem %s0, %s175
        %p177 = pneg %p39
        %p178 = pneg %p36
        %p179 = pneg %p60
        %p180 = pneg %p57
        %p181 = pneg %p81
        %p182 = pneg %p78
        %p183 = pneg %p102
        %p184 = pneg %p99
        %p185 = pneg %p128
        %p186 = pneg %p125
        %s187 = sand.u32 %s115, 1
        %s188 = scalar_lea.sflag [#allocation3], %s187
        %s189 = sand.u32 %s115, 1
        %s190 = smul.addr %s189, 16
        %s191 = scalar_lea.vmem [#allocation2], %s190
        %s192 = smul.u32 2, %s18
        %p193 = scmp.lt.s32.totalorder %s192, 3
        %s194 = scalar_select %p193, %s192, 3
        %s195 = smul.addr %s194, 8
        %s196 = scalar_lea.vmem %s0, %s195
        %s197 = smul.u32 2, %s18
        %s198 = smul.u32 2, %s18
        %v199 = vld [vmem:[%s196] sm:$0xff]
        %v200 = vld [vmem:[%s196 + $0x8] sm:$0xff]
        %v201 = vmul.f32 %v199, %v199
        %v202 = vmul.f32 %v200, %v200
        %vm203 = vcmask 261120
        %v204 = vsel %vm203, %v201, 0.0
        %205 = vadd.xlane.f32.xlu0 %v204
        %v206 = vpop.xlane.xlu0 %205
        %v207 = vsel %vm203, %v202, 0.0
        %208 = vadd.xlane.f32.xlu0 %v207
        %v209 = vpop.xlane.xlu0 %208
        %v210 = vrcp.pop 32.0
        %v211 = vmul.f32 %v206, %v210
        %v212 = vmul.f32 %v209, %v210
        %v213 = vadd.f32 %v211, 1e-05
        %v214 = vadd.f32 %v212, 1e-05
        %v215 = vrsqrt.pop %v213
        %v216 = vrsqrt.pop %v214
        %v217 = vmul.f32 %v199, %v215
        %v218 = vmul.f32 %v200, %v216
        %v219 = vld [vmem:[%s1] sm:$0x1]
        %v221 = vlaneseq
        %v222 = vshrl.u32 %v221, 7
        %v223 = vsub.s32 0, %v222
        %v224 = vrot.slane %v219, %v223
        %v226 = vmul.f32 %v217, %v224
        %v227 = vmul.f32 %v218, %v224
        %v228 = vld [vmem:[%s2] sm:$0xff]
        %v229 = vld [vmem:[%s2 + $0x8] sm:$0xff]
        %v230 = vld [vmem:[%s2 + $0x10] sm:$0xff]
        %v231 = vld [vmem:[%s2 + $0x18] sm:$0xff]
        %v232 = vld [vmem:[%s3] sm:$0x1]
        %v234 = vlaneseq
        %v235 = vshrl.u32 %v234, 7
        %v236 = vsub.s32 0, %v235
        %v237 = vrot.slane %v232, %v236
        %v240 = vsel %vm203, %v226, 0
        %v243 = vsel %vm203, %v227, 0
        %245 = vmatprep.subr.mxu0 0.0
        %246 = vmatpush1.msra.mxu0 %v228
        %247 = vmatprep.subr.mxu0 0.0
        %248 = vmatpush1.msra.mxu0 %v229
        %249 = vmatprep.subr.mxu0 0.0
        %250 = vmatpush1.msra.mxu0 %v230
        %251 = vmatprep.subr.mxu0 0.0
        %252 = vmatpush1.msra.mxu0 %v231
        %253 = vmatprep.subr.mxu0 0.0
        %254 = vmatpush1.msra.mxu0 0.0
        %255 = vmatprep.subr.mxu0 0.0
        %256 = vmatpush1.msra.mxu0 0.0
        %257 = vmatprep.subr.mxu0 0.0
        %258 = vmatpush1.msra.mxu0 0.0
        %259 = vmatprep.subr.mxu0 0.0
        %260 = vmatpush1.msra.mxu0 0.0
        %261 = vmatprep.subr.mxu0 0.0
        %262 = vmatpush1.msra.mxu0 0.0
        %263 = vmatprep.subr.mxu0 0.0
        %264 = vmatpush1.msra.mxu0 0.0
        %265 = vmatprep.subr.mxu0 0.0
        %266 = vmatpush1.msra.mxu0 0.0
        %267 = vmatprep.subr.mxu0 0.0
        %268 = vmatpush1.msra.mxu0 0.0
        %269 = vmatprep.subr.mxu0 0.0
        %270 = vmatpush1.msra.mxu0 0.0
        %271 = vmatprep.subr.mxu0 0.0
        %272 = vmatpush1.msra.mxu0 0.0
        %273 = vmatprep.subr.mxu0 0.0
        %274 = vmatpush1.msra.mxu0 0.0
        %275 = vmatprep.subr.mxu0 0.0
        %276 = vmatpush1.msra.mxu0 0.0
        %277 = vmatprep.subr.mxu0 0.0
        %278 = vmatpush1.msra.mxu0 0.0
        %279 = vmatprep.subr.mxu0 0.0
        %280 = vmatpush1.msra.mxu0 0.0
        %281 = vmatprep.subr.mxu0 0.0
        %282 = vmatpush1.msra.mxu0 0.0
        %283 = vmatprep.subr.mxu0 0.0
        %284 = vmatpush1.msra.mxu0 0.0
        %285 = vmatprep.subr.mxu0 0.0
        %286 = vmatpush1.msra.mxu0 0.0
        %287 = vmatprep.subr.mxu0 0.0
        %288 = vmatpush1.msra.mxu0 0.0
        %289 = vmatprep.subr.mxu0 0.0
        %290 = vmatpush1.msra.mxu0 0.0
        %291 = vmatprep.subr.mxu0 0.0
        %292 = vmatpush1.msra.mxu0 0.0
        %293 = vmatprep.subr.mxu0 0.0
        %294 = vmatpush1.msra.mxu0 0.0
        %295 = vmatprep.subr.mxu0 0.0
        %296 = vmatpush1.msra.mxu0 0.0
        %297 = vmatprep.subr.mxu0 0.0
        %298 = vmatpush1.msra.mxu0 0.0
        %299 = vmatprep.subr.mxu0 0.0
        %300 = vmatpush1.msra.mxu0 0.0
        %301 = vmatprep.subr.mxu0 0.0
        %302 = vmatpush1.msra.mxu0 0.0
        %303 = vmatprep.subr.mxu0 0.0
        %304 = vmatpush1.msra.mxu0 0.0
        %305 = vmatprep.subr.mxu0 0.0
        %306 = vmatpush1.msra.mxu0 0.0
        %307 = vmatprep.subr.mxu0 0.0
        %308 = vmatpush1.msra.mxu0 0.0
        %309 = vmatprep.mubr.f32.mxu0 0.0
        %310 = vmatmul.mubr.f32.gmra.mrb[0].mxu0 %v240
        %v311 = vpop.f32.mrb[0].mxu0
        %v312 = vadd.f32 %v237, %v311
        %v313 = vpop.f32.mrb[0].mxu0
        %314 = vmatprep.mubr.f32.mxu0 0.0
        %315 = vmatmul.mubr.f32.gmra.mrb[0].mxu0 %v243
        %v316 = vpop.f32.mrb[0].mxu0
        %v317 = vadd.f32 %v237, %v316
        %v318 = vpop.f32.mrb[0].mxu0
        %319 = vdwg.mxu0
        %vm320 = vcmask 523264
        %321 = vst.msk [vmem:[%s191] sm:$0xff] %vm320, %v312
        %322 = vst.msk [vmem:[%s191 + $0x8] sm:$0xff] %vm320, %v317
        %s323 = sand.u32 %s115, 1
        %s324 = scalar_lea.sflag [#allocation3], %s323
        %s325 = sand.u32 %s115, 1
        %s326 = smul.addr %s325, 16
        %s327 = scalar_lea.vmem [#allocation2], %s326
        // Predicated region
        $region37: #{mamba_forward.21} parent=35 // pred_check
          %p328 = pneg %p125
        $region38: #{mamba_forward.21} parent=35 // pred_check_branch
          %330 = sbr.rel (%p328) target = $region40
        $region39: #{mamba_forward.21} parent=35 // pred_region
          %s331 = smul.u32 2, %s18
          %s333 = ssub.s32 256, 256
          %334 = vsyncadd %s324, %s333
          %s335 = smul.addr %s331, 128
          %s336 = scalar_lea.hbm %s4, %s335
          %s337 = sshll.u32 %s327, 4
          %s338 = int_to_ptr.vmem [resolvable:$true] %s337
          %343 = dma.vmem_to_hbm [thread:$0]  %s338, 256, %s336, %s324, 128, 128, 8
        $region40: #{mamba_forward.21} parent=35 // pred_fallthru
          _
      $region36: #{mamba_forward.21} parent=5 // pred_fallthru
        _
      %p344 = scmp.le.s32.totalorder 2, %s13
      // Predicated region
      $region41: #{mamba_forward.21} parent=5 // pred_check
        %p345 = pneg %p344
      $region42: #{mamba_forward.21} parent=5 // pred_check_branch
        %347 = sbr.rel (%p345) target = $region44
      $region43: #{mamba_forward.21} parent=5 // pred_region
        %s348 = ssub.s32 %s13, 2
        // Predicated region
        $region45: #{mamba_forward.21} parent=43 // pred_check
          %p349 = pneg %p131
        $region46: #{mamba_forward.21} parent=43 // pred_check_branch
          %351 = sbr.rel (%p349) target = $region48
        $region47: #{mamba_forward.21} parent=43 // pred_region
          %s352 = sand.u32 %s116, 1
          %s353 = scalar_lea.sflag [#allocation3], %s352
          %s354 = sand.u32 %s116, 1
          %s355 = smul.addr %s354, 16
          %s356 = scalar_lea.vmem [#allocation2], %s355
          %357 = dma.done %s353, 256
        $region48: #{mamba_forward.21} parent=43 // pred_fallthru
          _
      $region44: #{mamba_forward.21} parent=5 // pred_fallthru
        _
    $region6: #{mamba_forward.21} parent=1 // loop_footer
      %s17 = sadd.s32 1, %s13
    $region7: #{mamba_forward.21} parent=1 // loop_footer_branch
      %12 = sbr.rel target = $region3
    $region8: #{mamba_forward.21} parent=1 // loop_exit
      _
    %358 = vsyncpa [#allocation3], 1
    %s359 = scalar_lea.sflag [#allocation3], 1
    %360 = vsyncpa %s359, 1

// kernel: mamba_forward.14
$region0: #{mamba_forward.14}
  #allocation0 [shape = 'u32[]', space=smem, size = 0x4, offset = 0x4, fixed_abs, tag = 'smem constant byte address 0x4 - core index']
  #allocation1 [shape = 'u32[144,128]{1,0:T(1,128)}', space=vmem, size = 0x12000, scoped, tag = 'internal scratch']
  #allocation2 [shape = 'f32[32,32]{1,0:T(8,128)}', space=vmem, size = 0x4000, scoped, tag = 'scratch operand']
  #allocation3 [shape = 'f32[8,32,32]{2,1,0:T(8,128)}', space=vmem, size = 0x20000, scoped, tag = 'scratch operand']
  #allocation4 [shape = 'f32[8,32,32]{2,1,0:T(8,128)}', space=vmem, size = 0x20000, scoped, tag = 'scratch operand']
  #allocation5 [shape = 'f32[8,32]{1,0:T(8,128)}', space=vmem, size = 0x1000, scoped, tag = 'scratch operand']
  %s0 = inlined_call_operand.vmem [shape: f32[2,16,32], index: 0, kind: input, shape index: {}]
  %s1 = inlined_call_operand.vmem [shape: f32[2,16,32], index: 1, kind: input, shape index: {}]
  %s2 = inlined_call_operand.vmem [shape: f32[2,16,32], index: 2, kind: input, shape index: {}]
  %s3 = inlined_call_operand.vmem [shape: f32[2,16,32], index: 3, kind: input, shape index: {}]
  %s4 = inlined_call_operand.vmem [shape: f32[32,32], index: 4, kind: input, shape index: {}]
  %s5 = inlined_call_operand.vmem [shape: f32[32,32], index: 5, kind: input, shape index: {}]
  %s6 = inlined_call_operand.vmem [shape: f32[1,32], index: 6, kind: input, shape index: {}]
  %s7 = inlined_call_operand.vmem [shape: f32[2,16,32], index: 7, kind: output, shape index: {}]
  %s8 = sld [smem:[#allocation0]]
  $region65: #{mamba_forward.14} parent=0
    _
  %s10 = ssub.s32 1, %s8
  %s11 = scalar_select 0, %s10, %s8
  loop: start=0, step=1, limit=6
  $region2: #{mamba_forward.14} parent=0 // loop_pre_header
    _
  $region3: #{mamba_forward.14} parent=0 // loop_header
    %s13 = sphi 0, %s17
    %p14 = scmp.ge.s32.totalorder %s13, 6
    %s20 = sphi 0, %s32
    %s21 = sphi 0, %s28
    %s22 = sphi 0, %s20
    %s23 = sphi 0, %s21
    %s24 = sphi 0, %s22
    %s25 = sphi 0, %s23
    %s37 = sphi 0, %s39
    %s40 = sphi 0, %s37
    %s41 = sphi 0, %s40
    %s57 = sphi 0, %s41
    %s65 = sphi 0, %s67
    %s68 = sphi 0, %s65
    %s69 = sphi 0, %s68
    %s85 = sphi 0, %s69
    %s93 = sphi 0, %s95
    %s96 = sphi 0, %s93
    %s97 = sphi 0, %s96
    %s113 = sphi 0, %s97
    %s121 = sphi 0, %s123
    %s124 = sphi 0, %s121
    %s125 = sphi 0, %s124
    %s141 = sphi 0, %s125
    %s145 = sphi 0, %s145
    %s147 = sphi 0, %s145
    %s148 = sphi 0, %s147
    %s162 = sphi 0, %s148
    %s166 = sphi 0, %s166
    %s168 = sphi 0, %s166
    %s169 = sphi 0, %s168
    %s183 = sphi 0, %s169
    %s187 = sphi 0, %s187
    %s189 = sphi 0, %s187
    %s190 = sphi 0, %s189
    %s204 = sphi 0, %s190
    %s212 = sphi 0, %s214
    %s215 = sphi 0, %s212
    %s216 = sphi 0, %s215
    %s232 = sphi 0, %s216
  $region4: #{mamba_forward.14} parent=0 // loop_header_branch
    %16 = sbr.rel (%p14) target = $region8
  $region5: #{mamba_forward.14} parent=0 // loop_body
    %s18 = ssub.s32 %s13, 1
    %s19 = ssub.s32 %s13, 2
    %s26 = sadd.s32 1, %s21
    %p27 = scmp.ge.s32.totalorder %s26, 2
    %s28 = scalar_select %p27, 0, %s26
    %s29 = sadd.s32 1, %s20
    %s30 = scalar_select %p27, %s29, %s20
    %p31 = scmp.ge.s32.totalorder %s30, 2
    %s32 = scalar_select %p31, 0, %s30
    %s33 = ssub.s32 %s20, %s32
    %s34 = ssub.s32 %s21, %s28
    %s35 = sor.u32 %s33, %s34
    %p36 = scmp.eq.s32.totalorder %s35, 0
    %s38 = sadd.s32 %s37, 1
    %s39 = scalar_select %p36, %s37, %s38
    %p42 = pneg %p36
    %p43 = scmp.eq.s32.totalorder %s13, 3
    %p44 = por %p42, %p43
    %p45 = scmp.ne.s32.totalorder %s37, %s40
    %p46 = scmp.eq.s32.totalorder %s13, 0
    %p47 = por %p45, %p46
    %p48 = scmp.ne.s32.totalorder %s37, %s40
    %p49 = scmp.eq.s32.totalorder %s18, 3
    %p50 = por %p48, %p49
    %p51 = scmp.ne.s32.totalorder %s40, %s41
    %p52 = scmp.eq.s32.totalorder %s18, 0
    %p53 = por %p51, %p52
    %p54 = scmp.ne.s32.totalorder %s40, %s41
    %p55 = scmp.eq.s32.totalorder %s19, 3
    %p56 = por %p54, %p55
    %p58 = scmp.ne.s32.totalorder %s41, %s57
    %p59 = scmp.eq.s32.totalorder %s19, 0
    %p60 = por %p58, %p59
    %s61 = ssub.s32 %s20, %s32
    %s62 = ssub.s32 %s21, %s28
    %s63 = sor.u32 %s61, %s62
    %p64 = scmp.eq.s32.totalorder %s63, 0
    %s66 = sadd.s32 %s65, 1
    %s67 = scalar_select %p64, %s65, %s66
    %p70 = pneg %p64
    %p71 = scmp.eq.s32.totalorder %s13, 3
    %p72 = por %p70, %p71
    %p73 = scmp.ne.s32.totalorder %s65, %s68
    %p74 = scmp.eq.s32.totalorder %s13, 0
    %p75 = por %p73, %p74
    %p76 = scmp.ne.s32.totalorder %s65, %s68
    %p77 = scmp.eq.s32.totalorder %s18, 3
    %p78 = por %p76, %p77
    %p79 = scmp.ne.s32.totalorder %s68, %s69
    %p80 = scmp.eq.s32.totalorder %s18, 0
    %p81 = por %p79, %p80
    %p82 = scmp.ne.s32.totalorder %s68, %s69
    %p83 = scmp.eq.s32.totalorder %s19, 3
    %p84 = por %p82, %p83
    %p86 = scmp.ne.s32.totalorder %s69, %s85
    %p87 = scmp.eq.s32.totalorder %s19, 0
    %p88 = por %p86, %p87
    %s89 = ssub.s32 %s20, %s32
    %s90 = ssub.s32 %s21, %s28
    %s91 = sor.u32 %s89, %s90
    %p92 = scmp.eq.s32.totalorder %s91, 0
    %s94 = sadd.s32 %s93, 1
    %s95 = scalar_select %p92, %s93, %s94
    %p98 = pneg %p92
    %p99 = scmp.eq.s32.totalorder %s13, 3
    %p100 = por %p98, %p99
    %p101 = scmp.ne.s32.totalorder %s93, %s96
    %p102 = scmp.eq.s32.totalorder %s13, 0
    %p103 = por %p101, %p102
    %p104 = scmp.ne.s32.totalorder %s93, %s96
    %p105 = scmp.eq.s32.totalorder %s18, 3
    %p106 = por %p104, %p105
    %p107 = scmp.ne.s32.totalorder %s96, %s97
    %p108 = scmp.eq.s32.totalorder %s18, 0
    %p109 = por %p107, %p108
    %p110 = scmp.ne.s32.totalorder %s96, %s97
    %p111 = scmp.eq.s32.totalorder %s19, 3
    %p112 = por %p110, %p111
    %p114 = scmp.ne.s32.totalorder %s97, %s113
    %p115 = scmp.eq.s32.totalorder %s19, 0
    %p116 = por %p114, %p115
    %s117 = ssub.s32 %s20, %s32
    %s118 = ssub.s32 %s21, %s28
    %s119 = sor.u32 %s117, %s118
    %p120 = scmp.eq.s32.totalorder %s119, 0
    %s122 = sadd.s32 %s121, 1
    %s123 = scalar_select %p120, %s121, %s122
    %p126 = pneg %p120
    %p127 = scmp.eq.s32.totalorder %s13, 3
    %p128 = por %p126, %p127
    %p129 = scmp.ne.s32.totalorder %s121, %s124
    %p130 = scmp.eq.s32.totalorder %s13, 0
    %p131 = por %p129, %p130
    %p132 = scmp.ne.s32.totalorder %s121, %s124
    %p133 = scmp.eq.s32.totalorder %s18, 3
    %p134 = por %p132, %p133
    %p135 = scmp.ne.s32.totalorder %s124, %s125
    %p136 = scmp.eq.s32.totalorder %s18, 0
    %p137 = por %p135, %p136
    %p138 = scmp.ne.s32.totalorder %s124, %s125
    %p139 = scmp.eq.s32.totalorder %s19, 3
    %p140 = por %p138, %p139
    %p142 = scmp.ne.s32.totalorder %s125, %s141
    %p143 = scmp.eq.s32.totalorder %s19, 0
    %p144 = por %p142, %p143
    %s146 = sadd.s32 %s145, 1
    %p149 = scmp.eq.s32.totalorder %s13, 3
    %p150 = scmp.ne.s32.totalorder %s145, %s147
    %p151 = scmp.eq.s32.totalorder %s13, 0
    %p152 = por %p150, %p151
    %p153 = scmp.ne.s32.totalorder %s145, %s147
    %p154 = scmp.eq.s32.totalorder %s18, 3
    %p155 = por %p153, %p154
    %p156 = scmp.ne.s32.totalorder %s147, %s148
    %p157 = scmp.eq.s32.totalorder %s18, 0
    %p158 = por %p156, %p157
    %p159 = scmp.ne.s32.totalorder %s147, %s148
    %p160 = scmp.eq.s32.totalorder %s19, 3
    %p161 = por %p159, %p160
    %p163 = scmp.ne.s32.totalorder %s148, %s162
    %p164 = scmp.eq.s32.totalorder %s19, 0
    %p165 = por %p163, %p164
    %s167 = sadd.s32 %s166, 1
    %p170 = scmp.eq.s32.totalorder %s13, 3
    %p171 = scmp.ne.s32.totalorder %s166, %s168
    %p172 = scmp.eq.s32.totalorder %s13, 0
    %p173 = por %p171, %p172
    %p174 = scmp.ne.s32.totalorder %s166, %s168
    %p175 = scmp.eq.s32.totalorder %s18, 3
    %p176 = por %p174, %p175
    %p177 = scmp.ne.s32.totalorder %s168, %s169
    %p178 = scmp.eq.s32.totalorder %s18, 0
    %p179 = por %p177, %p178
    %p180 = scmp.ne.s32.totalorder %s168, %s169
    %p181 = scmp.eq.s32.totalorder %s19, 3
    %p182 = por %p180, %p181
    %p184 = scmp.ne.s32.totalorder %s169, %s183
    %p185 = scmp.eq.s32.totalorder %s19, 0
    %p186 = por %p184, %p185
    %s188 = sadd.s32 %s187, 1
    %p191 = scmp.eq.s32.totalorder %s13, 3
    %p192 = scmp.ne.s32.totalorder %s187, %s189
    %p193 = scmp.eq.s32.totalorder %s13, 0
    %p194 = por %p192, %p193
    %p195 = scmp.ne.s32.totalorder %s187, %s189
    %p196 = scmp.eq.s32.totalorder %s18, 3
    %p197 = por %p195, %p196
    %p198 = scmp.ne.s32.totalorder %s189, %s190
    %p199 = scmp.eq.s32.totalorder %s18, 0
    %p200 = por %p198, %p199
    %p201 = scmp.ne.s32.totalorder %s189, %s190
    %p202 = scmp.eq.s32.totalorder %s19, 3
    %p203 = por %p201, %p202
    %p205 = scmp.ne.s32.totalorder %s190, %s204
    %p206 = scmp.eq.s32.totalorder %s19, 0
    %p207 = por %p205, %p206
    %s208 = ssub.s32 %s20, %s32
    %s209 = ssub.s32 %s21, %s28
    %s210 = sor.u32 %s208, %s209
    %p211 = scmp.eq.s32.totalorder %s210, 0
    %s213 = sadd.s32 %s212, 1
    %s214 = scalar_select %p211, %s212, %s213
    %p217 = pneg %p211
    %p218 = scmp.eq.s32.totalorder %s13, 3
    %p219 = por %p217, %p218
    %p220 = scmp.ne.s32.totalorder %s212, %s215
    %p221 = scmp.eq.s32.totalorder %s13, 0
    %p222 = por %p220, %p221
    %p223 = scmp.ne.s32.totalorder %s212, %s215
    %p224 = scmp.eq.s32.totalorder %s18, 3
    %p225 = por %p223, %p224
    %p226 = scmp.ne.s32.totalorder %s215, %s216
    %p227 = scmp.eq.s32.totalorder %s18, 0
    %p228 = por %p226, %p227
    %p229 = scmp.ne.s32.totalorder %s215, %s216
    %p230 = scmp.eq.s32.totalorder %s19, 3
    %p231 = por %p229, %p230
    %p233 = scmp.ne.s32.totalorder %s216, %s232
    %p234 = scmp.eq.s32.totalorder %s19, 0
    %p235 = por %p233, %p234
    %p236 = scmp.le.s32.totalorder 1, %s13
    %p237 = scmp.lt.s32.totalorder %s13, 5
    %p238 = pnand %p236, %p237
    %p239 = pneg %p238
    // Predicated region
    $region9: #{mamba_forward.14} parent=5 // pred_check
      _
    $region10: #{mamba_forward.14} parent=5 // pred_check_branch
      %241 = sbr.rel (%p238) target = $region12
    $region11: #{mamba_forward.14} parent=5 // pred_region
      %s242 = ssub.s32 %s13, 1
      // Predicated region
      $region13: #{mamba_forward.14} parent=11 // pred_check
        %p243 = pneg %p158
      $region14: #{mamba_forward.14} parent=11 // pred_check_branch
        %245 = sbr.rel (%p243) target = $region16
      $region15: #{mamba_forward.14} parent=11 // pred_region
        _
      $region16: #{mamba_forward.14} parent=11 // pred_fallthru
        _
      // Predicated region
      $region17: #{mamba_forward.14} parent=11 // pred_check
        %p246 = pneg %p179
      $region18: #{mamba_forward.14} parent=11 // pred_check_branch
        %248 = sbr.rel (%p246) target = $region20
      $region19: #{mamba_forward.14} parent=11 // pred_region
        _
      $region20: #{mamba_forward.14} parent=11 // pred_fallthru
        _
      // Predicated region
      $region21: #{mamba_forward.14} parent=11 // pred_check
        %p249 = pneg %p200
      $region22: #{mamba_forward.14} parent=11 // pred_check_branch
        %251 = sbr.rel (%p249) target = $region24
      $region23: #{mamba_forward.14} parent=11 // pred_region
        _
      $region24: #{mamba_forward.14} parent=11 // pred_fallthru
        _
    $region12: #{mamba_forward.14} parent=5 // pred_fallthru
      _
    %p252 = scmp.lt.s32.totalorder %s13, 4
    // Predicated region
    $region25: #{mamba_forward.14} parent=5 // pred_check
      %p253 = pneg %p252
    $region26: #{mamba_forward.14} parent=5 // pred_check_branch
      %255 = sbr.rel (%p253) target = $region28
    $region27: #{mamba_forward.14} parent=5 // pred_region
      // Predicated region
      $region29: #{mamba_forward.14} parent=27 // pred_check
        %p256 = pneg %p47
      $region30: #{mamba_forward.14} parent=27 // pred_check_branch
        %258 = sbr.rel (%p256) target = $region32
      $region31: #{mamba_forward.14} parent=27 // pred_region
        %p259 = scmp.lt.s32.totalorder %s20, 1
        %s260 = scalar_select %p259, %s20, 1
        %p261 = scmp.lt.s32.totalorder %s21, 1
        %s262 = scalar_select %p261, %s21, 1
        %s263 = smul.addr %s260, 2
        %s264 = sadd.s32 %s262, %s263
        %s265 = smul.addr %s264, 8
        %s266 = scalar_lea.vmem %s0, %s265
      $region32: #{mamba_forward.14} parent=27 // pred_fallthru
        _
      // Predicated region
      $region33: #{mamba_forward.14} parent=27 // pred_check
        %p267 = pneg %p75
      $region34: #{mamba_forward.14} parent=27 // pred_check_branch
        %269 = sbr.rel (%p267) target = $region36
      $region35: #{mamba_forward.14} parent=27 // pred_region
        %p270 = scmp.lt.s32.totalorder %s20, 1
        %s271 = scalar_select %p270, %s20, 1
        %p272 = scmp.lt.s32.totalorder %s21, 1
        %s273 = scalar_select %p272, %s21, 1
        %s274 = smul.addr %s271, 2
        %s275 = sadd.s32 %s273, %s274
        %s276 = smul.addr %s275, 8
        %s277 = scalar_lea.vmem %s1, %s276
      $region36: #{mamba_forward.14} parent=27 // pred_fallthru
        _
      // Predicated region
      $region37: #{mamba_forward.14} parent=27 // pred_check
        %p278 = pneg %p103
      $region38: #{mamba_forward.14} parent=27 // pred_check_branch
        %280 = sbr.rel (%p278) target = $region40
      $region39: #{mamba_forward.14} parent=27 // pred_region
        %p281 = scmp.lt.s32.totalorder %s20, 1
        %s282 = scalar_select %p281, %s20, 1
        %p283 = scmp.lt.s32.totalorder %s21, 1
        %s284 = scalar_select %p283, %s21, 1
        %s285 = smul.addr %s282, 2
        %s286 = sadd.s32 %s284, %s285
        %s287 = smul.addr %s286, 8
        %s288 = scalar_lea.vmem %s2, %s287
      $region40: #{mamba_forward.14} parent=27 // pred_fallthru
        _
      // Predicated region
      $region41: #{mamba_forward.14} parent=27 // pred_check
        %p289 = pneg %p131
      $region42: #{mamba_forward.14} parent=27 // pred_check_branch
        %291 = sbr.rel (%p289) target = $region44
      $region43: #{mamba_forward.14} parent=27 // pred_region
        %p292 = scmp.lt.s32.totalorder %s20, 1
        %s293 = scalar_select %p292, %s20, 1
        %p294 = scmp.lt.s32.totalorder %s21, 1
        %s295 = scalar_select %p294, %s21, 1
        %s296 = smul.addr %s293, 2
        %s297 = sadd.s32 %s295, %s296
        %s298 = smul.addr %s297, 8
        %s299 = scalar_lea.vmem %s3, %s298
      $region44: #{mamba_forward.14} parent=27 // pred_fallthru
        _
    $region28: #{mamba_forward.14} parent=5 // pred_fallthru
      _
    %p300 = scmp.le.s32.totalorder 1, %s13
    %p301 = scmp.lt.s32.totalorder %s13, 5
    %p302 = pnand %p300, %p301
    %p303 = pneg %p302
    // Predicated region
    $region45: #{mamba_forward.14} parent=5 // pred_check
      _
    $region46: #{mamba_forward.14} parent=5 // pred_check_branch
      %305 = sbr.rel (%p302) target = $region48
    $region47: #{mamba_forward.14} parent=5 // pred_region
      %s306 = ssub.s32 %s13, 1
      %p307 = scmp.lt.s32.totalorder %s22, 1
      %s308 = scalar_select %p307, %s22, 1
      %p309 = scmp.lt.s32.totalorder %s23, 1
      %s310 = scalar_select %p309, %s23, 1
      %s311 = smul.addr %s308, 2
      %s312 = sadd.s32 %s310, %s311
      %s313 = smul.addr %s312, 8
      %s314 = scalar_lea.vmem %s0, %s313
      %p315 = pneg %p53
      %p316 = pneg %p50
      %p317 = scmp.lt.s32.totalorder %s22, 1
      %s318 = scalar_select %p317, %s22, 1
      %p319 = scmp.lt.s32.totalorder %s23, 1
      %s320 = scalar_select %p319, %s23, 1
      %s321 = smul.addr %s318, 2
      %s322 = sadd.s32 %s320, %s321
      %s323 = smul.addr %s322, 8
      %s324 = scalar_lea.vmem %s1, %s323
      %p325 = pneg %p81
      %p326 = pneg %p78
      %p327 = scmp.lt.s32.totalorder %s22, 1
      %s328 = scalar_select %p327, %s22, 1
      %p329 = scmp.lt.s32.totalorder %s23, 1
      %s330 = scalar_select %p329, %s23, 1
      %s331 = smul.addr %s328, 2
      %s332 = sadd.s32 %s330, %s331
      %s333 = smul.addr %s332, 8
      %s334 = scalar_lea.vmem %s2, %s333
      %p335 = pneg %p109
      %p336 = pneg %p106
      %p337 = scmp.lt.s32.totalorder %s22, 1
      %s338 = scalar_select %p337, %s22, 1
      %p339 = scmp.lt.s32.totalorder %s23, 1
      %s340 = scalar_select %p339, %s23, 1
      %s341 = smul.addr %s338, 2
      %s342 = sadd.s32 %s340, %s341
      %s343 = smul.addr %s342, 8
      %s344 = scalar_lea.vmem %s3, %s343
      %p345 = pneg %p137
      %p346 = pneg %p134
      %p347 = pneg %p158
      %p348 = pneg %p155
      %p349 = pneg %p179
      %p350 = pneg %p176
      %p351 = pneg %p200
      %p352 = pneg %p197
      %p353 = pneg %p228
      %p354 = pneg %p225
      %p355 = scmp.lt.s32.totalorder %s22, 1
      %s356 = scalar_select %p355, %s22, 1
      %p357 = scmp.lt.s32.totalorder %s23, 1
      %s358 = scalar_select %p357, %s23, 1
      %s359 = smul.addr %s356, 2
      %s360 = sadd.s32 %s358, %s359
      %s361 = smul.addr %s360, 8
      %s362 = scalar_lea.vmem %s7, %s361
      %p363 = scmp.lt.s32.totalorder %s22, 1
      %s364 = scalar_select %p363, %s22, 1
      %p365 = scmp.lt.s32.totalorder %s23, 1
      %s366 = scalar_select %p365, %s23, 1
      %s367 = smul.addr %s364, 2
      %s368 = sadd.s32 %s366, %s367
      %s369 = smul.addr %s368, 8
      %s370 = scalar_lea.vmem %s0, %s369
      %p371 = scmp.lt.s32.totalorder %s22, 1
      %s372 = scalar_select %p371, %s22, 1
      %p373 = scmp.lt.s32.totalorder %s23, 1
      %s374 = scalar_select %p373, %s23, 1
      %s375 = smul.addr %s372, 2
      %s376 = sadd.s32 %s374, %s375
      %s377 = smul.addr %s376, 8
      %s378 = scalar_lea.vmem %s1, %s377
      %p379 = scmp.lt.s32.totalorder %s22, 1
      %s380 = scalar_select %p379, %s22, 1
      %p381 = scmp.lt.s32.totalorder %s23, 1
      %s382 = scalar_select %p381, %s23, 1
      %s383 = smul.addr %s380, 2
      %s384 = sadd.s32 %s382, %s383
      %s385 = smul.addr %s384, 8
      %s386 = scalar_lea.vmem %s2, %s385
      %p387 = scmp.lt.s32.totalorder %s22, 1
      %s388 = scalar_select %p387, %s22, 1
      %p389 = scmp.lt.s32.totalorder %s23, 1
      %s390 = scalar_select %p389, %s23, 1
      %s391 = smul.addr %s388, 2
      %s392 = sadd.s32 %s390, %s391
      %s393 = smul.addr %s392, 8
      %s394 = scalar_lea.vmem %s3, %s393
      %p395 = scmp.lt.s32.totalorder %s22, 1
      %s396 = scalar_select %p395, %s22, 1
      %p397 = scmp.lt.s32.totalorder %s23, 1
      %s398 = scalar_select %p397, %s23, 1
      %s399 = smul.addr %s396, 2
      %s400 = sadd.s32 %s398, %s399
      %s401 = smul.addr %s400, 8
      %s402 = scalar_lea.vmem %s7, %s401
      %p403 = scmp.eq.s32.totalorder %s23, 0
      // Predicated region
      $region49: #{mamba_forward.14} parent=47 // pred_check
        %p404 = pneg %p403
      $region50: #{mamba_forward.14} parent=47 // pred_check_branch
        %406 = sbr.rel (%p404) target = $region52
      $region51: #{mamba_forward.14} parent=47 // pred_region
        %vm407 = vcmask 261120
        %408 = vst.msk [vmem:[#allocation2] sm:$0xff] %vm407, 0.0
        %409 = vst.msk [vmem:[#allocation2 + $0x8] sm:$0xff] %vm407, 0.0
        %410 = vst.msk [vmem:[#allocation2 + $0x10] sm:$0xff] %vm407, 0.0
        %411 = vst.msk [vmem:[#allocation2 + $0x18] sm:$0xff] %vm407, 0.0
      $region52: #{mamba_forward.14} parent=47 // pred_fallthru
        _
      %v412 = vld [vmem:[%s4] sm:$0xff]
      %v413 = vld [vmem:[%s4 + $0x8] sm:$0xff]
      %v414 = vld [vmem:[%s4 + $0x10] sm:$0xff]
      %v415 = vld [vmem:[%s4 + $0x18] sm:$0xff]
      %v416 = vld [vmem:[%s5] sm:$0xff]
      %v417 = vld [vmem:[%s5 + $0x8] sm:$0xff]
      %v418 = vld [vmem:[%s5 + $0x10] sm:$0xff]
      %v419 = vld [vmem:[%s5 + $0x18] sm:$0xff]
      %v420 = vlaneseq
      %v421 = vshrl.u32 %v420, 7
      %v422 = vadd.s32 %v421, 8
      %v423 = vadd.s32 %v421, 16
      %v424 = vadd.s32 %v421, 24
      %v425 = vlaneseq
      %v426 = vand.u32 %v425, 127
      %vm427 = vcmp.eq.s32.totalorder %v421, %v426
      %vm428 = vcmp.eq.s32.totalorder %v422, %v426
      %vm429 = vcmp.eq.s32.totalorder %v423, %v426
      %vm430 = vcmp.eq.s32.totalorder %v424, %v426
      %v431 = vsel %vm427, 1, 0
      %v432 = vsel %vm428, 1, 0
      %v433 = vsel %vm429, 1, 0
      %v434 = vsel %vm430, 1, 0
      %v435 = vcvt.s32.f32 %v431
      %v436 = vcvt.s32.f32 %v432
      %v437 = vcvt.s32.f32 %v433
      %v438 = vcvt.s32.f32 %v434
      %v439 = vld [vmem:[%s370] sm:$0xff]
      %v440 = vld [vmem:[%s378] sm:$0xff]
      %v441 = vld [vmem:[%s386] sm:$0xff]
      %v442 = vlaneseq
      %v443 = vshrl.u32 %v442, 7
      %v444 = vsub.s32 0, %v443
      %v445 = vrot.slane %v440, %v444
      %447 = vbcast.lane.b32.xlu0 %v445, 256
      %v448 = vpop.permute.xlu0 %447
      %s450 = sor.u32 256, 8
      %451 = vbcast.lane.b32.xlu0 %v445, %s450
      %v452 = vpop.permute.xlu0 %451
      %s454 = sor.u32 256, 16
      %455 = vbcast.lane.b32.xlu0 %v445, %s454
      %v456 = vpop.permute.xlu0 %455
      %s458 = sor.u32 256, 24
      %459 = vbcast.lane.b32.xlu0 %v445, %s458
      %v460 = vpop.permute.xlu0 %459
      %v461 = vlaneseq
      %v462 = vshrl.u32 %v461, 7
      %v463 = vsub.s32 1, %v462
      %v464 = vrot.slane %v440, %v463
      %466 = vbcast.lane.b32.xlu0 %v464, 256
      %v467 = vpop.permute.xlu0 %466
      %s469 = sor.u32 256, 8
      %470 = vbcast.lane.b32.xlu0 %v464, %s469
      %v471 = vpop.permute.xlu0 %470
      %s473 = sor.u32 256, 16
      %474 = vbcast.lane.b32.xlu0 %v464, %s473
      %v475 = vpop.permute.xlu0 %474
      %s477 = sor.u32 256, 24
      %478 = vbcast.lane.b32.xlu0 %v464, %s477
      %v479 = vpop.permute.xlu0 %478
      %v480 = vlaneseq
      %v481 = vshrl.u32 %v480, 7
      %v482 = vsub.s32 2, %v481
      %v483 = vrot.slane %v440, %v482
      %485 = vbcast.lane.b32.xlu0 %v483, 256
      %v486 = vpop.permute.xlu0 %485
      %s488 = sor.u32 256, 8
      %489 = vbcast.lane.b32.xlu0 %v483, %s488
      %v490 = vpop.permute.xlu0 %489
      %s492 = sor.u32 256, 16
      %493 = vbcast.lane.b32.xlu0 %v483, %s492
      %v494 = vpop.permute.xlu0 %493
      %s496 = sor.u32 256, 24
      %497 = vbcast.lane.b32.xlu0 %v483, %s496
      %v498 = vpop.permute.xlu0 %497
      %v499 = vlaneseq
      %v500 = vshrl.u32 %v499, 7
      %v501 = vsub.s32 3, %v500
      %v502 = vrot.slane %v440, %v501
      %504 = vbcast.lane.b32.xlu0 %v502, 256
      %v505 = vpop.permute.xlu0 %504
      %s507 = sor.u32 256, 8
      %508 = vbcast.lane.b32.xlu0 %v502, %s507
      %v509 = vpop.permute.xlu0 %508
      %s511 = sor.u32 256, 16
      %512 = vbcast.lane.b32.xlu0 %v502, %s511
      %v513 = vpop.permute.xlu0 %512
      %s515 = sor.u32 256, 24
      %516 = vbcast.lane.b32.xlu0 %v502, %s515
      %v517 = vpop.permute.xlu0 %516
      %v518 = vlaneseq
      %v519 = vshrl.u32 %v518, 7
      %v520 = vsub.s32 4, %v519
      %v521 = vrot.slane %v440, %v520
      %523 = vbcast.lane.b32.xlu0 %v521, 256
      %v524 = vpop.permute.xlu0 %523
      %s526 = sor.u32 256, 8
      %527 = vbcast.lane.b32.xlu0 %v521, %s526
      %v528 = vpop.permute.xlu0 %527
      %s530 = sor.u32 256, 16
      %531 = vbcast.lane.b32.xlu0 %v521, %s530
      %v532 = vpop.permute.xlu0 %531
      %s534 = sor.u32 256, 24
      %535 = vbcast.lane.b32.xlu0 %v521, %s534
      %v536 = vpop.permute.xlu0 %535
      %v537 = vlaneseq
      %v538 = vshrl.u32 %v537, 7
      %v539 = vsub.s32 5, %v538
      %v540 = vrot.slane %v440, %v539
      %542 = vbcast.lane.b32.xlu0 %v540, 256
      %v543 = vpop.permute.xlu0 %542
      %s545 = sor.u32 256, 8
      %546 = vbcast.lane.b32.xlu0 %v540, %s545
      %v547 = vpop.permute.xlu0 %546
      %s549 = sor.u32 256, 16
      %550 = vbcast.lane.b32.xlu0 %v540, %s549
      %v551 = vpop.permute.xlu0 %550
      %s553 = sor.u32 256, 24
      %554 = vbcast.lane.b32.xlu0 %v540, %s553
      %v555 = vpop.permute.xlu0 %554
      %v556 = vlaneseq
      %v557 = vshrl.u32 %v556, 7
      %v558 = vsub.s32 6, %v557
      %v559 = vrot.slane %v440, %v558
      %561 = vbcast.lane.b32.xlu0 %v559, 256
      %v562 = vpop.permute.xlu0 %561
      %s564 = sor.u32 256, 8
      %565 = vbcast.lane.b32.xlu0 %v559, %s564
      %v566 = vpop.permute.xlu0 %565
      %s568 = sor.u32 256, 16
      %569 = vbcast.lane.b32.xlu0 %v559, %s568
      %v570 = vpop.permute.xlu0 %569
      %s572 = sor.u32 256, 24
      %573 = vbcast.lane.b32.xlu0 %v559, %s572
      %v574 = vpop.permute.xlu0 %573
      %v575 = vlaneseq
      %v576 = vshrl.u32 %v575, 7
      %v577 = vsub.s32 7, %v576
      %v578 = vrot.slane %v440, %v577
      %580 = vbcast.lane.b32.xlu0 %v578, 256
      %v581 = vpop.permute.xlu0 %580
      %s583 = sor.u32 256, 8
      %584 = vbcast.lane.b32.xlu0 %v578, %s583
      %v585 = vpop.permute.xlu0 %584
      %s587 = sor.u32 256, 16
      %588 = vbcast.lane.b32.xlu0 %v578, %s587
      %v589 = vpop.permute.xlu0 %588
      %s591 = sor.u32 256, 24
      %592 = vbcast.lane.b32.xlu0 %v578, %s591
      %v593 = vpop.permute.xlu0 %592
      %v594 = vmul.f32 %v448, %v412
      %v595 = vmul.f32 %v452, %v413
      %v596 = vmul.f32 %v456, %v414
      %v597 = vmul.f32 %v460, %v415
      %v598 = vmul.f32 %v467, %v412
      %v599 = vmul.f32 %v471, %v413
      %v600 = vmul.f32 %v475, %v414
      %v601 = vmul.f32 %v479, %v415
      %v602 = vmul.f32 %v486, %v412
      %v603 = vmul.f32 %v490, %v413
      %v604 = vmul.f32 %v494, %v414
      %v605 = vmul.f32 %v498, %v415
      %v606 = vmul.f32 %v505, %v412
      %v607 = vmul.f32 %v509, %v413
      %v608 = vmul.f32 %v513, %v414
      %v609 = vmul.f32 %v517, %v415
      %v610 = vmul.f32 %v524, %v412
      %v611 = vmul.f32 %v528, %v413
      %v612 = vmul.f32 %v532, %v414
      %v613 = vmul.f32 %v536, %v415
      %v614 = vmul.f32 %v543, %v412
      %v615 = vmul.f32 %v547, %v413
      %v616 = vmul.f32 %v551, %v414
      %v617 = vmul.f32 %v555, %v415
      %v618 = vmul.f32 %v562, %v412
      %v619 = vmul.f32 %v566, %v413
      %v620 = vmul.f32 %v570, %v414
      %v621 = vmul.f32 %v574, %v415
      %v622 = vmul.f32 %v581, %v412
      %v623 = vmul.f32 %v585, %v413
      %v624 = vmul.f32 %v589, %v414
      %v625 = vmul.f32 %v593, %v415
      %v626 = vmul.f32 %v594, 1.442695
      %v627 = vpow.pop %v626
      %v628 = vmul.f32 %v595, 1.442695
      %v629 = vpow.pop %v628
      %v630 = vmul.f32 %v596, 1.442695
      %v631 = vpow.pop %v630
      %v632 = vmul.f32 %v597, 1.442695
      %v633 = vpow.pop %v632
      %v634 = vmul.f32 %v598, 1.442695
      %v635 = vpow.pop %v634
      %v636 = vmul.f32 %v599, 1.442695
      %v637 = vpow.pop %v636
      %v638 = vmul.f32 %v600, 1.442695
      %v639 = vpow.pop %v638
      %v640 = vmul.f32 %v601, 1.442695
      %v641 = vpow.pop %v640
      %v642 = vmul.f32 %v602, 1.442695
      %v643 = vpow.pop %v642
      %v644 = vmul.f32 %v603, 1.442695
      %v645 = vpow.pop %v644
      %v646 = vmul.f32 %v604, 1.442695
      %v647 = vpow.pop %v646
      %v648 = vmul.f32 %v605, 1.442695
      %v649 = vpow.pop %v648
      %v650 = vmul.f32 %v606, 1.442695
      %v651 = vpow.pop %v650
      %v652 = vmul.f32 %v607, 1.442695
      %v653 = vpow.pop %v652
      %v654 = vmul.f32 %v608, 1.442695
      %v655 = vpow.pop %v654
      %v656 = vmul.f32 %v609, 1.442695
      %v657 = vpow.pop %v656
      %v658 = vmul.f32 %v610, 1.442695
      %v659 = vpow.pop %v658
      %v660 = vmul.f32 %v611, 1.442695
      %v661 = vpow.pop %v660
      %v662 = vmul.f32 %v612, 1.442695
      %v663 = vpow.pop %v662
      %v664 = vmul.f32 %v613, 1.442695
      %v665 = vpow.pop %v664
      %v666 = vmul.f32 %v614, 1.442695
      %v667 = vpow.pop %v666
      %v668 = vmul.f32 %v615, 1.442695
      %v669 = vpow.pop %v668
      %v670 = vmul.f32 %v616, 1.442695
      %v671 = vpow.pop %v670
      %v672 = vmul.f32 %v617, 1.442695
      %v673 = vpow.pop %v672
      %v674 = vmul.f32 %v618, 1.442695
      %v675 = vpow.pop %v674
      %v676 = vmul.f32 %v619, 1.442695
      %v677 = vpow.pop %v676
      %v678 = vmul.f32 %v620, 1.442695
      %v679 = vpow.pop %v678
      %v680 = vmul.f32 %v621, 1.442695
      %v681 = vpow.pop %v680
      %v682 = vmul.f32 %v622, 1.442695
      %v683 = vpow.pop %v682
      %v684 = vmul.f32 %v623, 1.442695
      %v685 = vpow.pop %v684
      %v686 = vmul.f32 %v624, 1.442695
      %v687 = vpow.pop %v686
      %v688 = vmul.f32 %v625, 1.442695
      %v689 = vpow.pop %v688
      %v690 = vmax.f32 %v448, 1e-20
      %v691 = vmax.f32 %v452, 1e-20
      %v692 = vmax.f32 %v456, 1e-20
      %v693 = vmax.f32 %v460, 1e-20
      %v694 = vmax.f32 %v467, 1e-20
      %v695 = vmax.f32 %v471, 1e-20
      %v696 = vmax.f32 %v475, 1e-20
      %v697 = vmax.f32 %v479, 1e-20
      %v698 = vmax.f32 %v486, 1e-20
      %v699 = vmax.f32 %v490, 1e-20
      %v700 = vmax.f32 %v494, 1e-20
      %v701 = vmax.f32 %v498, 1e-20
      %v702 = vmax.f32 %v505, 1e-20
      %v703 = vmax.f32 %v509, 1e-20
      %v704 = vmax.f32 %v513, 1e-20
      %v705 = vmax.f32 %v517, 1e-20
      %v706 = vmax.f32 %v524, 1e-20
      %v707 = vmax.f32 %v528, 1e-20
      %v708 = vmax.f32 %v532, 1e-20
      %v709 = vmax.f32 %v536, 1e-20
      %v710 = vmax.f32 %v543, 1e-20
      %v711 = vmax.f32 %v547, 1e-20
      %v712 = vmax.f32 %v551, 1e-20
      %v713 = vmax.f32 %v555, 1e-20
      %v714 = vmax.f32 %v562, 1e-20
      %v715 = vmax.f32 %v566, 1e-20
      %v716 = vmax.f32 %v570, 1e-20
      %v717 = vmax.f32 %v574, 1e-20
      %v718 = vmax.f32 %v581, 1e-20
      %v719 = vmax.f32 %v585, 1e-20
      %v720 = vmax.f32 %v589, 1e-20
      %v721 = vmax.f32 %v593, 1e-20
      %v722 = vsub.f32 %v627, %v435
      %v723 = vsub.f32 %v629, %v436
      %v724 = vsub.f32 %v631, %v437
      %v725 = vsub.f32 %v633, %v438
      %v726 = vsub.f32 %v635, %v435
      %v727 = vsub.f32 %v637, %v436
      %v728 = vsub.f32 %v639, %v437
      %v729 = vsub.f32 %v641, %v438
      %v730 = vsub.f32 %v643, %v435
      %v731 = vsub.f32 %v645, %v436
      %v732 = vsub.f32 %v647, %v437
      %v733 = vsub.f32 %v649, %v438
      %v734 = vsub.f32 %v651, %v435
      %v735 = vsub.f32 %v653, %v436
      %v736 = vsub.f32 %v655, %v437
      %v737 = vsub.f32 %v657, %v438
      %v738 = vsub.f32 %v659, %v435
      %v739 = vsub.f32 %v661, %v436
      %v740 = vsub.f32 %v663, %v437
      %v741 = vsub.f32 %v665, %v438
      %v742 = vsub.f32 %v667, %v435
      %v743 = vsub.f32 %v669, %v436
      %v744 = vsub.f32 %v671, %v437
      %v745 = vsub.f32 %v673, %v438
      %v746 = vsub.f32 %v675, %v435
      %v747 = vsub.f32 %v677, %v436
      %v748 = vsub.f32 %v679, %v437
      %v749 = vsub.f32 %v681, %v438
      %v750 = vsub.f32 %v683, %v435
      %v751 = vsub.f32 %v685, %v436
      %v752 = vsub.f32 %v687, %v437
      %v753 = vsub.f32 %v689, %v438
      %v754 = vrcp.pop %v690
      %v755 = vmul.f32 %v722, %v754
      %v756 = vrcp.pop %v691
      %v757 = vmul.f32 %v723, %v756
      %v758 = vrcp.pop %v692
      %v759 = vmul.f32 %v724, %v758
      %v760 = vrcp.pop %v693
      %v761 = vmul.f32 %v725, %v760
      %v762 = vrcp.pop %v694
      %v763 = vmul.f32 %v726, %v762
      %v764 = vrcp.pop %v695
      %v765 = vmul.f32 %v727, %v764
      %v766 = vrcp.pop %v696
      %v767 = vmul.f32 %v728, %v766
      %v768 = vrcp.pop %v697
      %v769 = vmul.f32 %v729, %v768
      %v770 = vrcp.pop %v698
      %v771 = vmul.f32 %v730, %v770
      %v772 = vrcp.pop %v699
      %v773 = vmul.f32 %v731, %v772
      %v774 = vrcp.pop %v700
      %v775 = vmul.f32 %v732, %v774
      %v776 = vrcp.pop %v701
      %v777 = vmul.f32 %v733, %v776
      %v778 = vrcp.pop %v702
      %v779 = vmul.f32 %v734, %v778
      %v780 = vrcp.pop %v703
      %v781 = vmul.f32 %v735, %v780
      %v782 = vrcp.pop %v704
      %v783 = vmul.f32 %v736, %v782
      %v784 = vrcp.pop %v705
      %v785 = vmul.f32 %v737, %v784
      %v786 = vrcp.pop %v706
      %v787 = vmul.f32 %v738, %v786
      %v788 = vrcp.pop %v707
      %v789 = vmul.f32 %v739, %v788
      %v790 = vrcp.pop %v708
      %v791 = vmul.f32 %v740, %v790
      %v792 = vrcp.pop %v709
      %v793 = vmul.f32 %v741, %v792
      %v794 = vrcp.pop %v710
      %v795 = vmul.f32 %v742, %v794
      %v796 = vrcp.pop %v711
      %v797 = vmul.f32 %v743, %v796
      %v798 = vrcp.pop %v712
      %v799 = vmul.f32 %v744, %v798
      %v800 = vrcp.pop %v713
      %v801 = vmul.f32 %v745, %v800
      %v802 = vrcp.pop %v714
      %v803 = vmul.f32 %v746, %v802
      %v804 = vrcp.pop %v715
      %v805 = vmul.f32 %v747, %v804
      %v806 = vrcp.pop %v716
      %v807 = vmul.f32 %v748, %v806
      %v808 = vrcp.pop %v717
      %v809 = vmul.f32 %v749, %v808
      %v810 = vrcp.pop %v718
      %v811 = vmul.f32 %v750, %v810
      %v812 = vrcp.pop %v719
      %v813 = vmul.f32 %v751, %v812
      %v814 = vrcp.pop %v720
      %v815 = vmul.f32 %v752, %v814
      %v816 = vrcp.pop %v721
      %v817 = vmul.f32 %v753, %v816
      %vm818 = vcmask 261120
      %v820 = vsel %vm818, %v416, 0
      %v823 = vsel %vm818, %v417, 0
      %v826 = vsel %vm818, %v418, 0
      %v829 = vsel %vm818, %v419, 0
      %831 = vmatprep.subr.mxu0 0.0
      %832 = vmatpush1.msra.mxu0 %v755
      %833 = vmatprep.subr.mxu0 0.0
      %834 = vmatpush1.msra.mxu0 %v757
      %835 = vmatprep.subr.mxu0 0.0
      %836 = vmatpush1.msra.mxu0 %v759
      %837 = vmatprep.subr.mxu0 0.0
      %838 = vmatpush1.msra.mxu0 %v761
      %839 = vmatprep.subr.mxu0 0.0
      %840 = vmatpush1.msra.mxu0 0.0
      %841 = vmatprep.subr.mxu0 0.0
      %842 = vmatpush1.msra.mxu0 0.0
      %843 = vmatprep.subr.mxu0 0.0
      %844 = vmatpush1.msra.mxu0 0.0
      %845 = vmatprep.subr.mxu0 0.0
      %846 = vmatpush1.msra.mxu0 0.0
      %847 = vmatprep.subr.mxu0 0.0
      %848 = vmatpush1.msra.mxu0 0.0
      %849 = vmatprep.subr.mxu0 0.0
      %850 = vmatpush1.msra.mxu0 0.0
      %851 = vmatprep.subr.mxu0 0.0
      %852 = vmatpush1.msra.mxu0 0.0
      %853 = vmatprep.subr.mxu0 0.0
      %854 = vmatpush1.msra.mxu0 0.0
      %855 = vmatprep.subr.mxu0 0.0
      %856 = vmatpush1.msra.mxu0 0.0
      %857 = vmatprep.subr.mxu0 0.0
      %858 = vmatpush1.msra.mxu0 0.0
      %859 = vmatprep.subr.mxu0 0.0
      %860 = vmatpush1.msra.mxu0 0.0
      %861 = vmatprep.subr.mxu0 0.0
      %862 = vmatpush1.msra.mxu0 0.0
      %863 = vmatprep.subr.mxu0 0.0
      %864 = vmatpush1.msra.mxu0 0.0
      %865 = vmatprep.subr.mxu0 0.0
      %866 = vmatpush1.msra.mxu0 0.0
      %867 = vmatprep.subr.mxu0 0.0
      %868 = vmatpush1.msra.mxu0 0.0
      %869 = vmatprep.subr.mxu0 0.0
      %870 = vmatpush1.msra.mxu0 0.0
      %871 = vmatprep.subr.mxu0 0.0
      %872 = vmatpush1.msra.mxu0 0.0
      %873 = vmatprep.subr.mxu0 0.0
      %874 = vmatpush1.msra.mxu0 0.0
      %875 = vmatprep.subr.mxu0 0.0
      %876 = vmatpush1.msra.mxu0 0.0
      %877 = vmatprep.subr.mxu0 0.0
      %878 = vmatpush1.msra.mxu0 0.0
      %879 = vmatprep.subr.mxu0 0.0
      %880 = vmatpush1.msra.mxu0 0.0
      %881 = vmatprep.subr.mxu0 0.0
      %882 = vmatpush1.msra.mxu0 0.0
      %883 = vmatprep.subr.mxu0 0.0
      %884 = vmatpush1.msra.mxu0 0.0
      %885 = vmatprep.subr.mxu0 0.0
      %886 = vmatpush1.msra.mxu0 0.0
      %887 = vmatprep.subr.mxu0 0.0
      %888 = vmatpush1.msra.mxu0 0.0
      %889 = vmatprep.subr.mxu0 0.0
      %890 = vmatpush1.msra.mxu0 0.0
      %891 = vmatprep.subr.mxu0 0.0
      %892 = vmatpush1.msra.mxu0 0.0
      %893 = vmatprep.subr.mxu0 0.0
      %894 = vmatpush1.msra.mxu0 0.0
      %895 = vmatprep.mubr.f32.mxu0 0.0
      %896 = vmatmul.mubr.f32.gmra.mrb[0].mxu0 %v820
      %v897 = vpop.f32.mrb[0].mxu0
      %v898 = vadd.f32 0.0, %v897
      %v899 = vpop.f32.mrb[0].mxu0
      %900 = vmatprep.mubr.f32.mxu0 0.0
      %901 = vmatmul.mubr.f32.gmra.mrb[0].mxu0 %v823
      %v902 = vpop.f32.mrb[0].mxu0
      %v903 = vadd.f32 0.0, %v902
      %v904 = vpop.f32.mrb[0].mxu0
      %905 = vmatprep.mubr.f32.mxu0 0.0
      %906 = vmatmul.mubr.f32.gmra.mrb[0].mxu0 %v826
      %v907 = vpop.f32.mrb[0].mxu0
      %v908 = vadd.f32 0.0, %v907
      %v909 = vpop.f32.mrb[0].mxu0
      %910 = vmatprep.mubr.f32.mxu0 0.0
      %911 = vmatmul.mubr.f32.gmra.mrb[0].mxu0 %v829
      %v912 = vpop.f32.mrb[0].mxu0
      %v913 = vadd.f32 0.0, %v912
      %v914 = vpop.f32.mrb[0].mxu0
      %915 = vdwg.mxu0
      %916 = vmatprep.subr.mxu0 0.0
      %917 = vmatpush1.msra.mxu0 %v763
      %918 = vmatprep.subr.mxu0 0.0
      %919 = vmatpush1.msra.mxu0 %v765
      %920 = vmatprep.subr.mxu0 0.0
      %921 = vmatpush1.msra.mxu0 %v767
      %922 = vmatprep.subr.mxu0 0.0
      %923 = vmatpush1.msra.mxu0 %v769
      %924 = vmatprep.subr.mxu0 0.0
      %925 = vmatpush1.msra.mxu0 0.0
      %926 = vmatprep.subr.mxu0 0.0
      %927 = vmatpush1.msra.mxu0 0.0
      %928 = vmatprep.subr.mxu0 0.0
      %929 = vmatpush1.msra.mxu0 0.0
      %930 = vmatprep.subr.mxu0 0.0
      %931 = vmatpush1.msra.mxu0 0.0
      %932 = vmatprep.subr.mxu0 0.0
      %933 = vmatpush1.msra.mxu0 0.0
      %934 = vmatprep.subr.mxu0 0.0
      %935 = vmatpush1.msra.mxu0 0.0
      %936 = vmatprep.subr.mxu0 0.0
      %937 = vmatpush1.msra.mxu0 0.0
      %938 = vmatprep.subr.mxu0 0.0
      %939 = vmatpush1.msra.mxu0 0.0
      %940 = vmatprep.subr.mxu0 0.0
      %941 = vmatpush1.msra.mxu0 0.0
      %942 = vmatprep.subr.mxu0 0.0
      %943 = vmatpush1.msra.mxu0 0.0
      %944 = vmatprep.subr.mxu0 0.0
      %945 = vmatpush1.msra.mxu0 0.0
      %946 = vmatprep.subr.mxu0 0.0
      %947 = vmatpush1.msra.mxu0 0.0
      %948 = vmatprep.subr.mxu0 0.0
      %949 = vmatpush1.msra.mxu0 0.0
      %950 = vmatprep.subr.mxu0 0.0
      %951 = vmatpush1.msra.mxu0 0.0
      %952 = vmatprep.subr.mxu0 0.0
      %953 = vmatpush1.msra.mxu0 0.0
      %954 = vmatprep.subr.mxu0 0.0
      %955 = vmatpush1.msra.mxu0 0.0
      %956 = vmatprep.subr.mxu0 0.0
      %957 = vmatpush1.msra.mxu0 0.0
      %958 = vmatprep.subr.mxu0 0.0
      %959 = vmatpush1.msra.mxu0 0.0
      %960 = vmatprep.subr.mxu0 0.0
      %961 = vmatpush1.msra.mxu0 0.0
      %962 = vmatprep.subr.mxu0 0.0
      %963 = vmatpush1.msra.mxu0 0.0
      %964 = vmatprep.subr.mxu0 0.0
      %965 = vmatpush1.msra.mxu0 0.0
      %966 = vmatprep.subr.mxu0 0.0
      %967 = vmatpush1.msra.mxu0 0.0
      %968 = vmatprep.subr.mxu0 0.0
      %969 = vmatpush1.msra.mxu0 0.0
      %970 = vmatprep.subr.mxu0 0.0
      %971 = vmatpush1.msra.mxu0 0.0
      %972 = vmatprep.subr.mxu0 0.0
      %973 = vmatpush1.msra.mxu0 0.0
      %974 = vmatprep.subr.mxu0 0.0
      %975 = vmatpush1.msra.mxu0 0.0
      %976 = vmatprep.subr.mxu0 0.0
      %977 = vmatpush1.msra.mxu0 0.0
      %978 = vmatprep.subr.mxu0 0.0
      %979 = vmatpush1.msra.mxu0 0.0
      %980 = vmatprep.mubr.f32.mxu0 0.0
      %981 = vmatmul.mubr.f32.gmra.mrb[0].mxu0 %v820
      %v982 = vpop.f32.mrb[0].mxu0
      %v983 = vadd.f32 0.0, %v982
      %v984 = vpop.f32.mrb[0].mxu0
      %985 = vmatprep.mubr.f32.mxu0 0.0
      %986 = vmatmul.mubr.f32.gmra.mrb[0].mxu0 %v823
      %v987 = vpop.f32.mrb[0].mxu0
      %v988 = vadd.f32 0.0, %v987
      %v989 = vpop.f32.mrb[0].mxu0
      %990 = vmatprep.mubr.f32.mxu0 0.0
      %991 = vmatmul.mubr.f32.gmra.mrb[0].mxu0 %v826
      %v992 = vpop.f32.mrb[0].mxu0
      %v993 = vadd.f32 0.0, %v992
      %v994 = vpop.f32.mrb[0].mxu0
      %995 = vmatprep.mubr.f32.mxu0 0.0
      %996 = vmatmul.mubr.f32.gmra.mrb[0].mxu0 %v829
      %v997 = vpop.f32.mrb[0].mxu0
      %v998 = vadd.f32 0.0, %v997
      %v999 = vpop.f32.mrb[0].mxu0
      %1000 = vdwg.mxu0
      %1001 = vmatprep.subr.mxu0 0.0
      %1002 = vmatpush1.msra.mxu0 %v771
      %1003 = vmatprep.subr.mxu0 0.0
      %1004 = vmatpush1.msra.mxu0 %v773
      %1005 = vmatprep.subr.mxu0 0.0
      %1006 = vmatpush1.msra.mxu0 %v775
      %1007 = vmatprep.subr.mxu0 0.0
      %1008 = vmatpush1.msra.mxu0 %v777
      %1009 = vmatprep.subr.mxu0 0.0
      %1010 = vmatpush1.msra.mxu0 0.0
      %1011 = vmatprep.subr.mxu0 0.0
      %1012 = vmatpush1.msra.mxu0 0.0
      %1013 = vmatprep.subr.mxu0 0.0
      %1014 = vmatpush1.msra.mxu0 0.0
      %1015 = vmatprep.subr.mxu0 0.0
      %1016 = vmatpush1.msra.mxu0 0.0
      %1017 = vmatprep.subr.mxu0 0.0
      %1018 = vmatpush1.msra.mxu0 0.0
      %1019 = vmatprep.subr.mxu0 0.0
      %1020 = vmatpush1.msra.mxu0 0.0
      %1021 = vmatprep.subr.mxu0 0.0
      %1022 = vmatpush1.msra.mxu0 0.0
      %1023 = vmatprep.subr.mxu0 0.0
      %1024 = vmatpush1.msra.mxu0 0.0
      %1025 = vmatprep.subr.mxu0 0.0
      %1026 = vmatpush1.msra.mxu0 0.0
      %1027 = vmatprep.subr.mxu0 0.0
      %1028 = vmatpush1.msra.mxu0 0.0
      %1029 = vmatprep.subr.mxu0 0.0
      %1030 = vmatpush1.msra.mxu0 0.0
      %1031 = vmatprep.subr.mxu0 0.0
      %1032 = vmatpush1.msra.mxu0 0.0
      %1033 = vmatprep.subr.mxu0 0.0
      %1034 = vmatpush1.msra.mxu0 0.0
      %1035 = vmatprep.subr.mxu0 0.0
      %1036 = vmatpush1.msra.mxu0 0.0
      %1037 = vmatprep.subr.mxu0 0.0
      %1038 = vmatpush1.msra.mxu0 0.0
      %1039 = vmatprep.subr.mxu0 0.0
      %1040 = vmatpush1.msra.mxu0 0.0
      %1041 = vmatprep.subr.mxu0 0.0
      %1042 = vmatpush1.msra.mxu0 0.0
      %1043 = vmatprep.subr.mxu0 0.0
      %1044 = vmatpush1.msra.mxu0 0.0
      %1045 = vmatprep.subr.mxu0 0.0
      %1046 = vmatpush1.msra.mxu0 0.0
      %1047 = vmatprep.subr.mxu0 0.0
      %1048 = vmatpush1.msra.mxu0 0.0
      %1049 = vmatprep.subr.mxu0 0.0
      %1050 = vmatpush1.msra.mxu0 0.0
      %1051 = vmatprep.subr.mxu0 0.0
      %1052 = vmatpush1.msra.mxu0 0.0
      %1053 = vmatprep.subr.mxu0 0.0
      %1054 = vmatpush1.msra.mxu0 0.0
      %1055 = vmatprep.subr.mxu0 0.0
      %1056 = vmatpush1.msra.mxu0 0.0
      %1057 = vmatprep.subr.mxu0 0.0
      %1058 = vmatpush1.msra.mxu0 0.0
      %1059 = vmatprep.subr.mxu0 0.0
      %1060 = vmatpush1.msra.mxu0 0.0
      %1061 = vmatprep.subr.mxu0 0.0
      %1062 = vmatpush1.msra.mxu0 0.0
      %1063 = vmatprep.subr.mxu0 0.0
      %1064 = vmatpush1.msra.mxu0 0.0
      %1065 = vmatprep.mubr.f32.mxu0 0.0
      %1066 = vmatmul.mubr.f32.gmra.mrb[0].mxu0 %v820
      %v1067 = vpop.f32.mrb[0].mxu0
      %v1068 = vadd.f32 0.0, %v1067
      %v1069 = vpop.f32.mrb[0].mxu0
      %1070 = vmatprep.mubr.f32.mxu0 0.0
      %1071 = vmatmul.mubr.f32.gmra.mrb[0].mxu0 %v823
      %v1072 = vpop.f32.mrb[0].mxu0
      %v1073 = vadd.f32 0.0, %v1072
      %v1074 = vpop.f32.mrb[0].mxu0
      %1075 = vmatprep.mubr.f32.mxu0 0.0
      %1076 = vmatmul.mubr.f32.gmra.mrb[0].mxu0 %v826
      %v1077 = vpop.f32.mrb[0].mxu0
      %v1078 = vadd.f32 0.0, %v1077
      %v1079 = vpop.f32.mrb[0].mxu0
      %1080 = vmatprep.mubr.f32.mxu0 0.0
      %1081 = vmatmul.mubr.f32.gmra.mrb[0].mxu0 %v829
      %v1082 = vpop.f32.mrb[0].mxu0
      %v1083 = vadd.f32 0.0, %v1082
      %v1084 = vpop.f32.mrb[0].mxu0
      %1085 = vdwg.mxu0
      %1086 = vmatprep.subr.mxu0 0.0
      %1087 = vmatpush1.msra.mxu0 %v779
      %1088 = vmatprep.subr.mxu0 0.0
      %1089 = vmatpush1.msra.mxu0 %v781
      %1090 = vmatprep.subr.mxu0 0.0
      %1091 = vmatpush1.msra.mxu0 %v783
      %1092 = vmatprep.subr.mxu0 0.0
      %1093 = vmatpush1.msra.mxu0 %v785
      %1094 = vmatprep.subr.mxu0 0.0
      %1095 = vmatpush1.msra.mxu0 0.0
      %1096 = vmatprep.subr.mxu0 0.0
      %1097 = vmatpush1.msra.mxu0 0.0
      %1098 = vmatprep.subr.mxu0 0.0
      %1099 = vmatpush1.msra.mxu0 0.0
      %1100 = vmatprep.subr.mxu0 0.0
      %1101 = vmatpush1.msra.mxu0 0.0
      %1102 = vmatprep.subr.mxu0 0.0
      %1103 = vmatpush1.msra.mxu0 0.0
      %1104 = vmatprep.subr.mxu0 0.0
      %1105 = vmatpush1.msra.mxu0 0.0
      %1106 = vmatprep.subr.mxu0 0.0
      %1107 = vmatpush1.msra.mxu0 0.0
      %1108 = vmatprep.subr.mxu0 0.0
      %1109 = vmatpush1.msra.mxu0 0.0
      %1110 = vmatprep.subr.mxu0 0.0
      %1111 = vmatpush1.msra.mxu0 0.0
      %1112 = vmatprep.subr.mxu0 0.0
      %1113 = vmatpush1.msra.mxu0 0.0
      %1114 = vmatprep.subr.mxu0 0.0
      %1115 = vmatpush1.msra.mxu0 0.0
      %1116 = vmatprep.subr.mxu0 0.0
      %1117 = vmatpush1.msra.mxu0 0.0
      %1118 = vmatprep.subr.mxu0 0.0
      %1119 = vmatpush1.msra.mxu0 0.0
      %1120 = vmatprep.subr.mxu0 0.0
      %1121 = vmatpush1.msra.mxu0 0.0
      %1122 = vmatprep.subr.mxu0 0.0
      %1123 = vmatpush1.msra.mxu0 0.0
      %1124 = vmatprep.subr.mxu0 0.0
      %1125 = vmatpush1.msra.mxu0 0.0
      %1126 = vmatprep.subr.mxu0 0.0
      %1127 = vmatpush1.msra.mxu0 0.0
      %1128 = vmatprep.subr.mxu0 0.0
      %1129 = vmatpush1.msra.mxu0 0.0
      %1130 = vmatprep.subr.mxu0 0.0
      %1131 = vmatpush1.msra.mxu0 0.0
      %1132 = vmatprep.subr.mxu0 0.0
      %1133 = vmatpush1.msra.mxu0 0.0
      %1134 = vmatprep.subr.mxu0 0.0
      %1135 = vmatpush1.msra.mxu0 0.0
      %1136 = vmatprep.subr.mxu0 0.0
      %1137 = vmatpush1.msra.mxu0 0.0
      %1138 = vmatprep.subr.mxu0 0.0
      %1139 = vmatpush1.msra.mxu0 0.0
      %1140 = vmatprep.subr.mxu0 0.0
      %1141 = vmatpush1.msra.mxu0 0.0
      %1142 = vmatprep.subr.mxu0 0.0
      %1143 = vmatpush1.msra.mxu0 0.0
      %1144 = vmatprep.subr.mxu0 0.0
      %1145 = vmatpush1.msra.mxu0 0.0
      %1146 = vmatprep.subr.mxu0 0.0
      %1147 = vmatpush1.msra.mxu0 0.0
      %1148 = vmatprep.subr.mxu0 0.0
      %1149 = vmatpush1.msra.mxu0 0.0
      %1150 = vmatprep.mubr.f32.mxu0 0.0
      %1151 = vmatmul.mubr.f32.gmra.mrb[0].mxu0 %v820
      %v1152 = vpop.f32.mrb[0].mxu0
      %v1153 = vadd.f32 0.0, %v1152
      %v1154 = vpop.f32.mrb[0].mxu0
      %1155 = vmatprep.mubr.f32.mxu0 0.0
      %1156 = vmatmul.mubr.f32.gmra.mrb[0].mxu0 %v823
      %v1157 = vpop.f32.mrb[0].mxu0
      %v1158 = vadd.f32 0.0, %v1157
      %v1159 = vpop.f32.mrb[0].mxu0
      %1160 = vmatprep.mubr.f32.mxu0 0.0
      %1161 = vmatmul.mubr.f32.gmra.mrb[0].mxu0 %v826
      %v1162 = vpop.f32.mrb[0].mxu0
      %v1163 = vadd.f32 0.0, %v1162
      %v1164 = vpop.f32.mrb[0].mxu0
      %1165 = vmatprep.mubr.f32.mxu0 0.0
      %1166 = vmatmul.mubr.f32.gmra.mrb[0].mxu0 %v829
      %v1167 = vpop.f32.mrb[0].mxu0
      %v1168 = vadd.f32 0.0, %v1167
      %v1169 = vpop.f32.mrb[0].mxu0
      %1170 = vdwg.mxu0
      %1171 = vmatprep.subr.mxu0 0.0
      %1172 = vmatpush1.msra.mxu0 %v787
      %1173 = vmatprep.subr.mxu0 0.0
      %1174 = vmatpush1.msra.mxu0 %v789
      %1175 = vmatprep.subr.mxu0 0.0
      %1176 = vmatpush1.msra.mxu0 %v791
      %1177 = vmatprep.subr.mxu0 0.0
      %1178 = vmatpush1.msra.mxu0 %v793
      %1179 = vmatprep.subr.mxu0 0.0
      %1180 = vmatpush1.msra.mxu0 0.0
      %1181 = vmatprep.subr.mxu0 0.0
      %1182 = vmatpush1.msra.mxu0 0.0
      %1183 = vmatprep.subr.mxu0 0.0
      %1184 = vmatpush1.msra.mxu0 0.0
      %1185 = vmatprep.subr.mxu0 0.0
      %1186 = vmatpush1.msra.mxu0 0.0
      %1187 = vmatprep.subr.mxu0 0.0
      %1188 = vmatpush1.msra.mxu0 0.0
      %1189 = vmatprep.subr.mxu0 0.0
      %1190 = vmatpush1.msra.mxu0 0.0
      %1191 = vmatprep.subr.mxu0 0.0
      %1192 = vmatpush1.msra.mxu0 0.0
      %1193 = vmatprep.subr.mxu0 0.0
      %1194 = vmatpush1.msra.mxu0 0.0
      %1195 = vmatprep.subr.mxu0 0.0
      %1196 = vmatpush1.msra.mxu0 0.0
      %1197 = vmatprep.subr.mxu0 0.0
      %1198 = vmatpush1.msra.mxu0 0.0
      %1199 = vmatprep.subr.mxu0 0.0
      %1200 = vmatpush1.msra.mxu0 0.0
      %1201 = vmatprep.subr.mxu0 0.0
      %1202 = vmatpush1.msra.mxu0 0.0
      %1203 = vmatprep.subr.mxu0 0.0
      %1204 = vmatpush1.msra.mxu0 0.0
      %1205 = vmatprep.subr.mxu0 0.0
      %1206 = vmatpush1.msra.mxu0 0.0
      %1207 = vmatprep.subr.mxu0 0.0
      %1208 = vmatpush1.msra.mxu0 0.0
      %1209 = vmatprep.subr.mxu0 0.0
      %1210 = vmatpush1.msra.mxu0 0.0
      %1211 = vmatprep.subr.mxu0 0.0
      %1212 = vmatpush1.msra.mxu0 0.0
      %1213 = vmatprep.subr.mxu0 0.0
      %1214 = vmatpush1.msra.mxu0 0.0
      %1215 = vmatprep.subr.mxu0 0.0
      %1216 = vmatpush1.msra.mxu0 0.0
      %1217 = vmatprep.subr.mxu0 0.0
      %1218 = vmatpush1.msra.mxu0 0.0
      %1219 = vmatprep.subr.mxu0 0.0
      %1220 = vmatpush1.msra.mxu0 0.0
      %1221 = vmatprep.subr.mxu0 0.0
      %1222 = vmatpush1.msra.mxu0 0.0
      %1223 = vmatprep.subr.mxu0 0.0
      %1224 = vmatpush1.msra.mxu0 0.0
      %1225 = vmatprep.subr.mxu0 0.0
      %1226 = vmatpush1.msra.mxu0 0.0
      %1227 = vmatprep.subr.mxu0 0.0
      %1228 = vmatpush1.msra.mxu0 0.0
      %1229 = vmatprep.subr.mxu0 0.0
      %1230 = vmatpush1.msra.mxu0 0.0
      %1231 = vmatprep.subr.mxu0 0.0
      %1232 = vmatpush1.msra.mxu0 0.0
      %1233 = vmatprep.subr.mxu0 0.0
      %1234 = vmatpush1.msra.mxu0 0.0
      %1235 = vmatprep.mubr.f32.mxu0 0.0
      %1236 = vmatmul.mubr.f32.gmra.mrb[0].mxu0 %v820
      %v1237 = vpop.f32.mrb[0].mxu0
      %v1238 = vadd.f32 0.0, %v1237
      %v1239 = vpop.f32.mrb[0].mxu0
      %1240 = vmatprep.mubr.f32.mxu0 0.0
      %1241 = vmatmul.mubr.f32.gmra.mrb[0].mxu0 %v823
      %v1242 = vpop.f32.mrb[0].mxu0
      %v1243 = vadd.f32 0.0, %v1242
      %v1244 = vpop.f32.mrb[0].mxu0
      %1245 = vmatprep.mubr.f32.mxu0 0.0
      %1246 = vmatmul.mubr.f32.gmra.mrb[0].mxu0 %v826
      %v1247 = vpop.f32.mrb[0].mxu0
      %v1248 = vadd.f32 0.0, %v1247
      %v1249 = vpop.f32.mrb[0].mxu0
      %1250 = vmatprep.mubr.f32.mxu0 0.0
      %1251 = vmatmul.mubr.f32.gmra.mrb[0].mxu0 %v829
      %v1252 = vpop.f32.mrb[0].mxu0
      %v1253 = vadd.f32 0.0, %v1252
      %v1254 = vpop.f32.mrb[0].mxu0
      %1255 = vdwg.mxu0
      %1256 = vmatprep.subr.mxu0 0.0
      %1257 = vmatpush1.msra.mxu0 %v795
      %1258 = vmatprep.subr.mxu0 0.0
      %1259 = vmatpush1.msra.mxu0 %v797
      %1260 = vmatprep.subr.mxu0 0.0
      %1261 = vmatpush1.msra.mxu0 %v799
      %1262 = vmatprep.subr.mxu0 0.0
      %1263 = vmatpush1.msra.mxu0 %v801
      %1264 = vmatprep.subr.mxu0 0.0
      %1265 = vmatpush1.msra.mxu0 0.0
      %1266 = vmatprep.subr.mxu0 0.0
      %1267 = vmatpush1.msra.mxu0 0.0
      %1268 = vmatprep.subr.mxu0 0.0
      %1269 = vmatpush1.msra.mxu0 0.0
      %1270 = vmatprep.subr.mxu0 0.0
      %1271 = vmatpush1.msra.mxu0 0.0
      %1272 = vmatprep.subr.mxu0 0.0
      %1273 = vmatpush1.msra.mxu0 0.0
      %1274 = vmatprep.subr.mxu0 0.0
      %1275 = vmatpush1.msra.mxu0 0.0
      %1276 = vmatprep.subr.mxu0 0.0
      %1277 = vmatpush1.msra.mxu0 0.0
      %1278 = vmatprep.subr.mxu0 0.0
      %1279 = vmatpush1.msra.mxu0 0.0
      %1280 = vmatprep.subr.mxu0 0.0
      %1281 = vmatpush1.msra.mxu0 0.0
      %1282 = vmatprep.subr.mxu0 0.0
      %1283 = vmatpush1.msra.mxu0 0.0
      %1284 = vmatprep.subr.mxu0 0.0
      %1285 = vmatpush1.msra.mxu0 0.0
      %1286 = vmatprep.subr.mxu0 0.0
      %1287 = vmatpush1.msra.mxu0 0.0
      %1288 = vmatprep.subr.mxu0 0.0
      %1289 = vmatpush1.msra.mxu0 0.0
      %1290 = vmatprep.subr.mxu0 0.0
      %1291 = vmatpush1.msra.mxu0 0.0
      %1292 = vmatprep.subr.mxu0 0.0
      %1293 = vmatpush1.msra.mxu0 0.0
      %1294 = vmatprep.subr.mxu0 0.0
      %1295 = vmatpush1.msra.mxu0 0.0
      %1296 = vmatprep.subr.mxu0 0.0
      %1297 = vmatpush1.msra.mxu0 0.0
      %1298 = vmatprep.subr.mxu0 0.0
      %1299 = vmatpush1.msra.mxu0 0.0
      %1300 = vmatprep.subr.mxu0 0.0
      %1301 = vmatpush1.msra.mxu0 0.0
      %1302 = vmatprep.subr.mxu0 0.0
      %1303 = vmatpush1.msra.mxu0 0.0
      %1304 = vmatprep.subr.mxu0 0.0
      %1305 = vmatpush1.msra.mxu0 0.0
      %1306 = vmatprep.subr.mxu0 0.0
      %1307 = vmatpush1.msra.mxu0 0.0
      %1308 = vmatprep.subr.mxu0 0.0
      %1309 = vmatpush1.msra.mxu0 0.0
      %1310 = vmatprep.subr.mxu0 0.0
      %1311 = vmatpush1.msra.mxu0 0.0
      %1312 = vmatprep.subr.mxu0 0.0
      %1313 = vmatpush1.msra.mxu0 0.0
      %1314 = vmatprep.subr.mxu0 0.0
      %1315 = vmatpush1.msra.mxu0 0.0
      %1316 = vmatprep.subr.mxu0 0.0
      %1317 = vmatpush1.msra.mxu0 0.0
      %1318 = vmatprep.subr.mxu0 0.0
      %1319 = vmatpush1.msra.mxu0 0.0
      %1320 = vmatprep.mubr.f32.mxu0 0.0
      %1321 = vmatmul.mubr.f32.gmra.mrb[0].mxu0 %v820
      %v1322 = vpop.f32.mrb[0].mxu0
      %v1323 = vadd.f32 0.0, %v1322
      %v1324 = vpop.f32.mrb[0].mxu0
      %1325 = vmatprep.mubr.f32.mxu0 0.0
      %1326 = vmatmul.mubr.f32.gmra.mrb[0].mxu0 %v823
      %v1327 = vpop.f32.mrb[0].mxu0
      %v1328 = vadd.f32 0.0, %v1327
      %v1329 = vpop.f32.mrb[0].mxu0
      %1330 = vmatprep.mubr.f32.mxu0 0.0
      %1331 = vmatmul.mubr.f32.gmra.mrb[0].mxu0 %v826
      %v1332 = vpop.f32.mrb[0].mxu0
      %v1333 = vadd.f32 0.0, %v1332
      %v1334 = vpop.f32.mrb[0].mxu0
      %1335 = vmatprep.mubr.f32.mxu0 0.0
      %1336 = vmatmul.mubr.f32.gmra.mrb[0].mxu0 %v829
      %v1337 = vpop.f32.mrb[0].mxu0
      %v1338 = vadd.f32 0.0, %v1337
      %v1339 = vpop.f32.mrb[0].mxu0
      %1340 = vdwg.mxu0
      %1341 = vmatprep.subr.mxu0 0.0
      %1342 = vmatpush1.msra.mxu0 %v803
      %1343 = vmatprep.subr.mxu0 0.0
      %1344 = vmatpush1.msra.mxu0 %v805
      %1345 = vmatprep.subr.mxu0 0.0
      %1346 = vmatpush1.msra.mxu0 %v807
      %1347 = vmatprep.subr.mxu0 0.0
      %1348 = vmatpush1.msra.mxu0 %v809
      %1349 = vmatprep.subr.mxu0 0.0
      %1350 = vmatpush1.msra.mxu0 0.0
      %1351 = vmatprep.subr.mxu0 0.0
      %1352 = vmatpush1.msra.mxu0 0.0
      %1353 = vmatprep.subr.mxu0 0.0
      %1354 = vmatpush1.msra.mxu0 0.0
      %1355 = vmatprep.subr.mxu0 0.0
      %1356 = vmatpush1.msra.mxu0 0.0
      %1357 = vmatprep.subr.mxu0 0.0
      %1358 = vmatpush1.msra.mxu0 0.0
      %1359 = vmatprep.subr.mxu0 0.0
      %1360 = vmatpush1.msra.mxu0 0.0
      %1361 = vmatprep.subr.mxu0 0.0
      %1362 = vmatpush1.msra.mxu0 0.0
      %1363 = vmatprep.subr.mxu0 0.0
      %1364 = vmatpush1.msra.mxu0 0.0
      %1365 = vmatprep.subr.mxu0 0.0
      %1366 = vmatpush1.msra.mxu0 0.0
      %1367 = vmatprep.subr.mxu0 0.0
      %1368 = vmatpush1.msra.mxu0 0.0
      %1369 = vmatprep.subr.mxu0 0.0
      %1370 = vmatpush1.msra.mxu0 0.0
      %1371 = vmatprep.subr.mxu0 0.0
      %1372 = vmatpush1.msra.mxu0 0.0
      %1373 = vmatprep.subr.mxu0 0.0
      %1374 = vmatpush1.msra.mxu0 0.0
      %1375 = vmatprep.subr.mxu0 0.0
      %1376 = vmatpush1.msra.mxu0 0.0
      %1377 = vmatprep.subr.mxu0 0.0
      %1378 = vmatpush1.msra.mxu0 0.0
      %1379 = vmatprep.subr.mxu0 0.0
      %1380 = vmatpush1.msra.mxu0 0.0
      %1381 = vmatprep.subr.mxu0 0.0
      %1382 = vmatpush1.msra.mxu0 0.0
      %1383 = vmatprep.subr.mxu0 0.0
      %1384 = vmatpush1.msra.mxu0 0.0
      %1385 = vmatprep.subr.mxu0 0.0
      %1386 = vmatpush1.msra.mxu0 0.0
      %1387 = vmatprep.subr.mxu0 0.0
      %1388 = vmatpush1.msra.mxu0 0.0
      %1389 = vmatprep.subr.mxu0 0.0
      %1390 = vmatpush1.msra.mxu0 0.0
      %1391 = vmatprep.subr.mxu0 0.0
      %1392 = vmatpush1.msra.mxu0 0.0
      %1393 = vmatprep.subr.mxu0 0.0
      %1394 = vmatpush1.msra.mxu0 0.0
      %1395 = vmatprep.subr.mxu0 0.0
      %1396 = vmatpush1.msra.mxu0 0.0
      %1397 = vmatprep.subr.mxu0 0.0
      %1398 = vmatpush1.msra.mxu0 0.0
      %1399 = vmatprep.subr.mxu0 0.0
      %1400 = vmatpush1.msra.mxu0 0.0
      %1401 = vmatprep.subr.mxu0 0.0
      %1402 = vmatpush1.msra.mxu0 0.0
      %1403 = vmatprep.subr.mxu0 0.0
      %1404 = vmatpush1.msra.mxu0 0.0
      %1405 = vmatprep.mubr.f32.mxu0 0.0
      %1406 = vmatmul.mubr.f32.gmra.mrb[0].mxu0 %v820
      %v1407 = vpop.f32.mrb[0].mxu0
      %v1408 = vadd.f32 0.0, %v1407
      %v1409 = vpop.f32.mrb[0].mxu0
      %1410 = vmatprep.mubr.f32.mxu0 0.0
      %1411 = vmatmul.mubr.f32.gmra.mrb[0].mxu0 %v823
      %v1412 = vpop.f32.mrb[0].mxu0
      %v1413 = vadd.f32 0.0, %v1412
      %v1414 = vpop.f32.mrb[0].mxu0
      %1415 = vmatprep.mubr.f32.mxu0 0.0
      %1416 = vmatmul.mubr.f32.gmra.mrb[0].mxu0 %v826
      %v1417 = vpop.f32.mrb[0].mxu0
      %v1418 = vadd.f32 0.0, %v1417
      %v1419 = vpop.f32.mrb[0].mxu0
      %1420 = vmatprep.mubr.f32.mxu0 0.0
      %1421 = vmatmul.mubr.f32.gmra.mrb[0].mxu0 %v829
      %v1422 = vpop.f32.mrb[0].mxu0
      %v1423 = vadd.f32 0.0, %v1422
      %v1424 = vpop.f32.mrb[0].mxu0
      %1425 = vdwg.mxu0
      %1426 = vmatprep.subr.mxu0 0.0
      %1427 = vmatpush1.msra.mxu0 %v811
      %1428 = vmatprep.subr.mxu0 0.0
      %1429 = vmatpush1.msra.mxu0 %v813
      %1430 = vmatprep.subr.mxu0 0.0
      %1431 = vmatpush1.msra.mxu0 %v815
      %1432 = vmatprep.subr.mxu0 0.0
      %1433 = vmatpush1.msra.mxu0 %v817
      %1434 = vmatprep.subr.mxu0 0.0
      %1435 = vmatpush1.msra.mxu0 0.0
      %1436 = vmatprep.subr.mxu0 0.0
      %1437 = vmatpush1.msra.mxu0 0.0
      %1438 = vmatprep.subr.mxu0 0.0
      %1439 = vmatpush1.msra.mxu0 0.0
      %1440 = vmatprep.subr.mxu0 0.0
      %1441 = vmatpush1.msra.mxu0 0.0
      %1442 = vmatprep.subr.mxu0 0.0
      %1443 = vmatpush1.msra.mxu0 0.0
      %1444 = vmatprep.subr.mxu0 0.0
      %1445 = vmatpush1.msra.mxu0 0.0
      %1446 = vmatprep.subr.mxu0 0.0
      %1447 = vmatpush1.msra.mxu0 0.0
      %1448 = vmatprep.subr.mxu0 0.0
      %1449 = vmatpush1.msra.mxu0 0.0
      %1450 = vmatprep.subr.mxu0 0.0
      %1451 = vmatpush1.msra.mxu0 0.0
      %1452 = vmatprep.subr.mxu0 0.0
      %1453 = vmatpush1.msra.mxu0 0.0
      %1454 = vmatprep.subr.mxu0 0.0
      %1455 = vmatpush1.msra.mxu0 0.0
      %1456 = vmatprep.subr.mxu0 0.0
      %1457 = vmatpush1.msra.mxu0 0.0
      %1458 = vmatprep.subr.mxu0 0.0
      %1459 = vmatpush1.msra.mxu0 0.0
      %1460 = vmatprep.subr.mxu0 0.0
      %1461 = vmatpush1.msra.mxu0 0.0
      %1462 = vmatprep.subr.mxu0 0.0
      %1463 = vmatpush1.msra.mxu0 0.0
      %1464 = vmatprep.subr.mxu0 0.0
      %1465 = vmatpush1.msra.mxu0 0.0
      %1466 = vmatprep.subr.mxu0 0.0
      %1467 = vmatpush1.msra.mxu0 0.0
      %1468 = vmatprep.subr.mxu0 0.0
      %1469 = vmatpush1.msra.mxu0 0.0
      %1470 = vmatprep.subr.mxu0 0.0
      %1471 = vmatpush1.msra.mxu0 0.0
      %1472 = vmatprep.subr.mxu0 0.0
      %1473 = vmatpush1.msra.mxu0 0.0
      %1474 = vmatprep.subr.mxu0 0.0
      %1475 = vmatpush1.msra.mxu0 0.0
      %1476 = vmatprep.subr.mxu0 0.0
      %1477 = vmatpush1.msra.mxu0 0.0
      %1478 = vmatprep.subr.mxu0 0.0
      %1479 = vmatpush1.msra.mxu0 0.0
      %1480 = vmatprep.subr.mxu0 0.0
      %1481 = vmatpush1.msra.mxu0 0.0
      %1482 = vmatprep.subr.mxu0 0.0
      %1483 = vmatpush1.msra.mxu0 0.0
      %1484 = vmatprep.subr.mxu0 0.0
      %1485 = vmatpush1.msra.mxu0 0.0
      %1486 = vmatprep.subr.mxu0 0.0
      %1487 = vmatpush1.msra.mxu0 0.0
      %1488 = vmatprep.subr.mxu0 0.0
      %1489 = vmatpush1.msra.mxu0 0.0
      %1490 = vmatprep.mubr.f32.mxu0 0.0
      %1491 = vmatmul.mubr.f32.gmra.mrb[0].mxu0 %v820
      %v1492 = vpop.f32.mrb[0].mxu0
      %v1493 = vadd.f32 0.0, %v1492
      %v1494 = vpop.f32.mrb[0].mxu0
      %1495 = vmatprep.mubr.f32.mxu0 0.0
      %1496 = vmatmul.mubr.f32.gmra.mrb[0].mxu0 %v823
      %v1497 = vpop.f32.mrb[0].mxu0
      %v1498 = vadd.f32 0.0, %v1497
      %v1499 = vpop.f32.mrb[0].mxu0
      %1500 = vmatprep.mubr.f32.mxu0 0.0
      %1501 = vmatmul.mubr.f32.gmra.mrb[0].mxu0 %v826
      %v1502 = vpop.f32.mrb[0].mxu0
      %v1503 = vadd.f32 0.0, %v1502
      %v1504 = vpop.f32.mrb[0].mxu0
      %1505 = vmatprep.mubr.f32.mxu0 0.0
      %1506 = vmatmul.mubr.f32.gmra.mrb[0].mxu0 %v829
      %v1507 = vpop.f32.mrb[0].mxu0
      %v1508 = vadd.f32 0.0, %v1507
      %v1509 = vpop.f32.mrb[0].mxu0
      %1510 = vdwg.mxu0
      %v1512 = vcombine.high %v441, %v441
      %v1514 = vunpack.c.l.s4 1966171168
      %v1515 = vunpack.c.0.s8 %v1514
      %v1516 = vlaneseq
      %v1517 = vshrl.u32 %v1516, 7
      %v1518 = vsub.s32 %v1515, %v1517
      %v1519 = vrot.slane %v441, %v1518
      %v1521 = vunpack.c.l.s4 1966171168
      %v1522 = vunpack.c.0.s8 %v1521
      %v1523 = vlaneseq
      %v1524 = vshrl.u32 %v1523, 7
      %v1525 = vsub.s32 %v1522, %v1524
      %v1526 = vrot.slane %v1512, %v1525
      %v1527 = vcombine.high %v1519, %v1519
      %v1528 = vcombine.high %v1526, %v1526
      %v1530 = vunpack.c.l.s4 1966171168
      %v1531 = vunpack.c.0.s8 %v1530
      %v1532 = vlaneseq
      %v1533 = vshrl.u32 %v1532, 7
      %v1534 = vsub.s32 %v1531, %v1533
      %v1535 = vrot.slane %v1519, %v1534
      %v1537 = vunpack.c.l.s4 1966171168
      %v1538 = vunpack.c.0.s8 %v1537
      %v1539 = vlaneseq
      %v1540 = vshrl.u32 %v1539, 7
      %v1541 = vsub.s32 %v1538, %v1540
      %v1542 = vrot.slane %v1526, %v1541
      %v1544 = vunpack.c.l.s4 1966171168
      %v1545 = vunpack.c.0.s8 %v1544
      %v1546 = vlaneseq
      %v1547 = vshrl.u32 %v1546, 7
      %v1548 = vsub.s32 %v1545, %v1547
      %v1549 = vrot.slane %v1527, %v1548
      %v1551 = vunpack.c.l.s4 1966171168
      %v1552 = vunpack.c.0.s8 %v1551
      %v1553 = vlaneseq
      %v1554 = vshrl.u32 %v1553, 7
      %v1555 = vsub.s32 %v1552, %v1554
      %v1556 = vrot.slane %v1528, %v1555
      %v1557 = vcombine.high %v1535, %v1535
      %v1558 = vcombine.high %v1542, %v1542
      %v1559 = vcombine.high %v1549, %v1549
      %v1560 = vcombine.high %v1556, %v1556
      %v1561 = vlaneseq
      %v1562 = vshrl.u32 %v1561, 7
      %v1563 = vsub.s32 0, %v1562
      %v1564 = vrot.slane %v1535, %v1563
      %v1565 = vlaneseq
      %v1566 = vshrl.u32 %v1565, 7
      %v1567 = vsub.s32 0, %v1566
      %v1568 = vrot.slane %v1549, %v1567
      %v1569 = vlaneseq
      %v1570 = vshrl.u32 %v1569, 7
      %v1571 = vsub.s32 0, %v1570
      %v1572 = vrot.slane %v1557, %v1571
      %v1573 = vlaneseq
      %v1574 = vshrl.u32 %v1573, 7
      %v1575 = vsub.s32 0, %v1574
      %v1576 = vrot.slane %v1559, %v1575
      %v1577 = vlaneseq
      %v1578 = vshrl.u32 %v1577, 7
      %v1579 = vsub.s32 0, %v1578
      %v1580 = vrot.slane %v1542, %v1579
      %v1581 = vlaneseq
      %v1582 = vshrl.u32 %v1581, 7
      %v1583 = vsub.s32 0, %v1582
      %v1584 = vrot.slane %v1556, %v1583
      %v1585 = vlaneseq
      %v1586 = vshrl.u32 %v1585, 7
      %v1587 = vsub.s32 0, %v1586
      %v1588 = vrot.slane %v1558, %v1587
      %v1589 = vlaneseq
      %v1590 = vshrl.u32 %v1589, 7
      %v1591 = vsub.s32 0, %v1590
      %v1592 = vrot.slane %v1560, %v1591
      %v1601 = vmul.f32 %v448, %v1564
      %v1602 = vmul.f32 %v452, %v1564
      %v1603 = vmul.f32 %v456, %v1564
      %v1604 = vmul.f32 %v460, %v1564
      %v1605 = vmul.f32 %v467, %v1568
      %v1606 = vmul.f32 %v471, %v1568
      %v1607 = vmul.f32 %v475, %v1568
      %v1608 = vmul.f32 %v479, %v1568
      %v1609 = vmul.f32 %v486, %v1572
      %v1610 = vmul.f32 %v490, %v1572
      %v1611 = vmul.f32 %v494, %v1572
      %v1612 = vmul.f32 %v498, %v1572
      %v1613 = vmul.f32 %v505, %v1576
      %v1614 = vmul.f32 %v509, %v1576
      %v1615 = vmul.f32 %v513, %v1576
      %v1616 = vmul.f32 %v517, %v1576
      %v1617 = vmul.f32 %v524, %v1580
      %v1618 = vmul.f32 %v528, %v1580
      %v1619 = vmul.f32 %v532, %v1580
      %v1620 = vmul.f32 %v536, %v1580
      %v1621 = vmul.f32 %v543, %v1584
      %v1622 = vmul.f32 %v547, %v1584
      %v1623 = vmul.f32 %v551, %v1584
      %v1624 = vmul.f32 %v555, %v1584
      %v1625 = vmul.f32 %v562, %v1588
      %v1626 = vmul.f32 %v566, %v1588
      %v1627 = vmul.f32 %v570, %v1588
      %v1628 = vmul.f32 %v574, %v1588
      %v1629 = vmul.f32 %v581, %v1592
      %v1630 = vmul.f32 %v585, %v1592
      %v1631 = vmul.f32 %v589, %v1592
      %v1632 = vmul.f32 %v593, %v1592
      %v1633 = vmul.f32 %v898, %v1601
      %v1634 = vmul.f32 %v903, %v1602
      %v1635 = vmul.f32 %v908, %v1603
      %v1636 = vmul.f32 %v913, %v1604
      %v1637 = vmul.f32 %v983, %v1605
      %v1638 = vmul.f32 %v988, %v1606
      %v1639 = vmul.f32 %v993, %v1607
      %v1640 = vmul.f32 %v998, %v1608
      %v1641 = vmul.f32 %v1068, %v1609
      %v1642 = vmul.f32 %v1073, %v1610
      %v1643 = vmul.f32 %v1078, %v1611
      %v1644 = vmul.f32 %v1083, %v1612
      %v1645 = vmul.f32 %v1153, %v1613
      %v1646 = vmul.f32 %v1158, %v1614
      %v1647 = vmul.f32 %v1163, %v1615
      %v1648 = vmul.f32 %v1168, %v1616
      %v1649 = vmul.f32 %v1238, %v1617
      %v1650 = vmul.f32 %v1243, %v1618
      %v1651 = vmul.f32 %v1248, %v1619
      %v1652 = vmul.f32 %v1253, %v1620
      %v1653 = vmul.f32 %v1323, %v1621
      %v1654 = vmul.f32 %v1328, %v1622
      %v1655 = vmul.f32 %v1333, %v1623
      %v1656 = vmul.f32 %v1338, %v1624
      %v1657 = vmul.f32 %v1408, %v1625
      %v1658 = vmul.f32 %v1413, %v1626
      %v1659 = vmul.f32 %v1418, %v1627
      %v1660 = vmul.f32 %v1423, %v1628
      %v1661 = vmul.f32 %v1493, %v1629
      %v1662 = vmul.f32 %v1498, %v1630
      %v1663 = vmul.f32 %v1503, %v1631
      %v1664 = vmul.f32 %v1508, %v1632
      %v1665 = vlaneseq
      %v1666 = vshrl.u32 %v1665, 7
      %v1667 = vsub.s32 0, %v1666
      %v1668 = vrot.slane %v439, %v1667
      %1670 = vbcast.lane.b32.xlu0 %v1668, 256
      %v1671 = vpop.permute.xlu0 %1670
      %s1673 = sor.u32 256, 8
      %1674 = vbcast.lane.b32.xlu0 %v1668, %s1673
      %v1675 = vpop.permute.xlu0 %1674
      %s1677 = sor.u32 256, 16
      %1678 = vbcast.lane.b32.xlu0 %v1668, %s1677
      %v1679 = vpop.permute.xlu0 %1678
      %s1681 = sor.u32 256, 24
      %1682 = vbcast.lane.b32.xlu0 %v1668, %s1681
      %v1683 = vpop.permute.xlu0 %1682
      %v1684 = vlaneseq
      %v1685 = vshrl.u32 %v1684, 7
      %v1686 = vsub.s32 1, %v1685
      %v1687 = vrot.slane %v439, %v1686
      %1689 = vbcast.lane.b32.xlu0 %v1687, 256
      %v1690 = vpop.permute.xlu0 %1689
      %s1692 = sor.u32 256, 8
      %1693 = vbcast.lane.b32.xlu0 %v1687, %s1692
      %v1694 = vpop.permute.xlu0 %1693
      %s1696 = sor.u32 256, 16
      %1697 = vbcast.lane.b32.xlu0 %v1687, %s1696
      %v1698 = vpop.permute.xlu0 %1697
      %s1700 = sor.u32 256, 24
      %1701 = vbcast.lane.b32.xlu0 %v1687, %s1700
      %v1702 = vpop.permute.xlu0 %1701
      %v1703 = vlaneseq
      %v1704 = vshrl.u32 %v1703, 7
      %v1705 = vsub.s32 2, %v1704
      %v1706 = vrot.slane %v439, %v1705
      %1708 = vbcast.lane.b32.xlu0 %v1706, 256
      %v1709 = vpop.permute.xlu0 %1708
      %s1711 = sor.u32 256, 8
      %1712 = vbcast.lane.b32.xlu0 %v1706, %s1711
      %v1713 = vpop.permute.xlu0 %1712
      %s1715 = sor.u32 256, 16
      %1716 = vbcast.lane.b32.xlu0 %v1706, %s1715
      %v1717 = vpop.permute.xlu0 %1716
      %s1719 = sor.u32 256, 24
      %1720 = vbcast.lane.b32.xlu0 %v1706, %s1719
      %v1721 = vpop.permute.xlu0 %1720
      %v1722 = vlaneseq
      %v1723 = vshrl.u32 %v1722, 7
      %v1724 = vsub.s32 3, %v1723
      %v1725 = vrot.slane %v439, %v1724
      %1727 = vbcast.lane.b32.xlu0 %v1725, 256
      %v1728 = vpop.permute.xlu0 %1727
      %s1730 = sor.u32 256, 8
      %1731 = vbcast.lane.b32.xlu0 %v1725, %s1730
      %v1732 = vpop.permute.xlu0 %1731
      %s1734 = sor.u32 256, 16
      %1735 = vbcast.lane.b32.xlu0 %v1725, %s1734
      %v1736 = vpop.permute.xlu0 %1735
      %s1738 = sor.u32 256, 24
      %1739 = vbcast.lane.b32.xlu0 %v1725, %s1738
      %v1740 = vpop.permute.xlu0 %1739
      %v1741 = vlaneseq
      %v1742 = vshrl.u32 %v1741, 7
      %v1743 = vsub.s32 4, %v1742
      %v1744 = vrot.slane %v439, %v1743
      %1746 = vbcast.lane.b32.xlu0 %v1744, 256
      %v1747 = vpop.permute.xlu0 %1746
      %s1749 = sor.u32 256, 8
      %1750 = vbcast.lane.b32.xlu0 %v1744, %s1749
      %v1751 = vpop.permute.xlu0 %1750
      %s1753 = sor.u32 256, 16
      %1754 = vbcast.lane.b32.xlu0 %v1744, %s1753
      %v1755 = vpop.permute.xlu0 %1754
      %s1757 = sor.u32 256, 24
      %1758 = vbcast.lane.b32.xlu0 %v1744, %s1757
      %v1759 = vpop.permute.xlu0 %1758
      %v1760 = vlaneseq
      %v1761 = vshrl.u32 %v1760, 7
      %v1762 = vsub.s32 5, %v1761
      %v1763 = vrot.slane %v439, %v1762
      %1765 = vbcast.lane.b32.xlu0 %v1763, 256
      %v1766 = vpop.permute.xlu0 %1765
      %s1768 = sor.u32 256, 8
      %1769 = vbcast.lane.b32.xlu0 %v1763, %s1768
      %v1770 = vpop.permute.xlu0 %1769
      %s1772 = sor.u32 256, 16
      %1773 = vbcast.lane.b32.xlu0 %v1763, %s1772
      %v1774 = vpop.permute.xlu0 %1773
      %s1776 = sor.u32 256, 24
      %1777 = vbcast.lane.b32.xlu0 %v1763, %s1776
      %v1778 = vpop.permute.xlu0 %1777
      %v1779 = vlaneseq
      %v1780 = vshrl.u32 %v1779, 7
      %v1781 = vsub.s32 6, %v1780
      %v1782 = vrot.slane %v439, %v1781
      %1784 = vbcast.lane.b32.xlu0 %v1782, 256
      %v1785 = vpop.permute.xlu0 %1784
      %s1787 = sor.u32 256, 8
      %1788 = vbcast.lane.b32.xlu0 %v1782, %s1787
      %v1789 = vpop.permute.xlu0 %1788
      %s1791 = sor.u32 256, 16
      %1792 = vbcast.lane.b32.xlu0 %v1782, %s1791
      %v1793 = vpop.permute.xlu0 %1792
      %s1795 = sor.u32 256, 24
      %1796 = vbcast.lane.b32.xlu0 %v1782, %s1795
      %v1797 = vpop.permute.xlu0 %1796
      %v1798 = vlaneseq
      %v1799 = vshrl.u32 %v1798, 7
      %v1800 = vsub.s32 7, %v1799
      %v1801 = vrot.slane %v439, %v1800
      %1803 = vbcast.lane.b32.xlu0 %v1801, 256
      %v1804 = vpop.permute.xlu0 %1803
      %s1806 = sor.u32 256, 8
      %1807 = vbcast.lane.b32.xlu0 %v1801, %s1806
      %v1808 = vpop.permute.xlu0 %1807
      %s1810 = sor.u32 256, 16
      %1811 = vbcast.lane.b32.xlu0 %v1801, %s1810
      %v1812 = vpop.permute.xlu0 %1811
      %s1814 = sor.u32 256, 24
      %1815 = vbcast.lane.b32.xlu0 %v1801, %s1814
      %v1816 = vpop.permute.xlu0 %1815
      %v1817 = vmul.f32 %v1633, %v1671
      %v1818 = vmul.f32 %v1634, %v1675
      %v1819 = vmul.f32 %v1635, %v1679
      %v1820 = vmul.f32 %v1636, %v1683
      %v1821 = vmul.f32 %v1637, %v1690
      %v1822 = vmul.f32 %v1638, %v1694
      %v1823 = vmul.f32 %v1639, %v1698
      %v1824 = vmul.f32 %v1640, %v1702
      %v1825 = vmul.f32 %v1641, %v1709
      %v1826 = vmul.f32 %v1642, %v1713
      %v1827 = vmul.f32 %v1643, %v1717
      %v1828 = vmul.f32 %v1644, %v1721
      %v1829 = vmul.f32 %v1645, %v1728
      %v1830 = vmul.f32 %v1646, %v1732
      %v1831 = vmul.f32 %v1647, %v1736
      %v1832 = vmul.f32 %v1648, %v1740
      %v1833 = vmul.f32 %v1649, %v1747
      %v1834 = vmul.f32 %v1650, %v1751
      %v1835 = vmul.f32 %v1651, %v1755
      %v1836 = vmul.f32 %v1652, %v1759
      %v1837 = vmul.f32 %v1653, %v1766
      %v1838 = vmul.f32 %v1654, %v1770
      %v1839 = vmul.f32 %v1655, %v1774
      %v1840 = vmul.f32 %v1656, %v1778
      %v1841 = vmul.f32 %v1657, %v1785
      %v1842 = vmul.f32 %v1658, %v1789
      %v1843 = vmul.f32 %v1659, %v1793
      %v1844 = vmul.f32 %v1660, %v1797
      %v1845 = vmul.f32 %v1661, %v1804
      %v1846 = vmul.f32 %v1662, %v1808
      %v1847 = vmul.f32 %v1663, %v1812
      %v1848 = vmul.f32 %v1664, %v1816
      %1849 = vst.msk [vmem:[#allocation3] sm:$0xff] %vm818, %v627
      %1850 = vst.msk [vmem:[#allocation3 + $0x8] sm:$0xff] %vm818, %v629
      %1851 = vst.msk [vmem:[#allocation3 + $0x10] sm:$0xff] %vm818, %v631
      %1852 = vst.msk [vmem:[#allocation3 + $0x18] sm:$0xff] %vm818, %v633
      %1853 = vst.msk [vmem:[#allocation3 + $0x20] sm:$0xff] %vm818, %v635
      %1854 = vst.msk [vmem:[#allocation3 + $0x28] sm:$0xff] %vm818, %v637
      %1855 = vst.msk [vmem:[#allocation3 + $0x30] sm:$0xff] %vm818, %v639
      %1856 = vst.msk [vmem:[#allocation3 + $0x38] sm:$0xff] %vm818, %v641
      %1857 = vst.msk [vmem:[#allocation3 + $0x40] sm:$0xff] %vm818, %v643
      %1858 = vst.msk [vmem:[#allocation3 + $0x48] sm:$0xff] %vm818, %v645
      %1859 = vst.msk [vmem:[#allocation3 + $0x50] sm:$0xff] %vm818, %v647
      %1860 = vst.msk [vmem:[#allocation3 + $0x58] sm:$0xff] %vm818, %v649
      %1861 = vst.msk [vmem:[#allocation3 + $0x60] sm:$0xff] %vm818, %v651
      %1862 = vst.msk [vmem:[#allocation3 + $0x68] sm:$0xff] %vm818, %v653
      %1863 = vst.msk [vmem:[#allocation3 + $0x70] sm:$0xff] %vm818, %v655
      %1864 = vst.msk [vmem:[#allocation3 + $0x78] sm:$0xff] %vm818, %v657
      %1865 = vst.msk [vmem:[#allocation3 + $0x80] sm:$0xff] %vm818, %v659
      %1866 = vst.msk [vmem:[#allocation3 + $0x88] sm:$0xff] %vm818, %v661
      %1867 = vst.msk [vmem:[#allocation3 + $0x90] sm:$0xff] %vm818, %v663
      %1868 = vst.msk [vmem:[#allocation3 + $0x98] sm:$0xff] %vm818, %v665
      %1869 = vst.msk [vmem:[#allocation3 + $0xa0] sm:$0xff] %vm818, %v667
      %1870 = vst.msk [vmem:[#allocation3 + $0xa8] sm:$0xff] %vm818, %v669
      %1871 = vst.msk [vmem:[#allocation3 + $0xb0] sm:$0xff] %vm818, %v671
      %1872 = vst.msk [vmem:[#allocation3 + $0xb8] sm:$0xff] %vm818, %v673
      %1873 = vst.msk [vmem:[#allocation3 + $0xc0] sm:$0xff] %vm818, %v675
      %1874 = vst.msk [vmem:[#allocation3 + $0xc8] sm:$0xff] %vm818, %v677
      %1875 = vst.msk [vmem:[#allocation3 + $0xd0] sm:$0xff] %vm818, %v679
      %1876 = vst.msk [vmem:[#allocation3 + $0xd8] sm:$0xff] %vm818, %v681
      %1877 = vst.msk [vmem:[#allocation3 + $0xe0] sm:$0xff] %vm818, %v683
      %1878 = vst.msk [vmem:[#allocation3 + $0xe8] sm:$0xff] %vm818, %v685
      %1879 = vst.msk [vmem:[#allocation3 + $0xf0] sm:$0xff] %vm818, %v687
      %1880 = vst.msk [vmem:[#allocation3 + $0xf8] sm:$0xff] %vm818, %v689
      %1881 = vst.msk [vmem:[#allocation4] sm:$0xff] %vm818, %v1817
      %1882 = vst.msk [vmem:[#allocation4 + $0x8] sm:$0xff] %vm818, %v1818
      %1883 = vst.msk [vmem:[#allocation4 + $0x10] sm:$0xff] %vm818, %v1819
      %1884 = vst.msk [vmem:[#allocation4 + $0x18] sm:$0xff] %vm818, %v1820
      %1885 = vst.msk [vmem:[#allocation4 + $0x20] sm:$0xff] %vm818, %v1821
      %1886 = vst.msk [vmem:[#allocation4 + $0x28] sm:$0xff] %vm818, %v1822
      %1887 = vst.msk [vmem:[#allocation4 + $0x30] sm:$0xff] %vm818, %v1823
      %1888 = vst.msk [vmem:[#allocation4 + $0x38] sm:$0xff] %vm818, %v1824
      %1889 = vst.msk [vmem:[#allocation4 + $0x40] sm:$0xff] %vm818, %v1825
      %1890 = vst.msk [vmem:[#allocation4 + $0x48] sm:$0xff] %vm818, %v1826
      %1891 = vst.msk [vmem:[#allocation4 + $0x50] sm:$0xff] %vm818, %v1827
      %1892 = vst.msk [vmem:[#allocation4 + $0x58] sm:$0xff] %vm818, %v1828
      %1893 = vst.msk [vmem:[#allocation4 + $0x60] sm:$0xff] %vm818, %v1829
      %1894 = vst.msk [vmem:[#allocation4 + $0x68] sm:$0xff] %vm818, %v1830
      %1895 = vst.msk [vmem:[#allocation4 + $0x70] sm:$0xff] %vm818, %v1831
      %1896 = vst.msk [vmem:[#allocation4 + $0x78] sm:$0xff] %vm818, %v1832
      %1897 = vst.msk [vmem:[#allocation4 + $0x80] sm:$0xff] %vm818, %v1833
      %1898 = vst.msk [vmem:[#allocation4 + $0x88] sm:$0xff] %vm818, %v1834
      %1899 = vst.msk [vmem:[#allocation4 + $0x90] sm:$0xff] %vm818, %v1835
      %1900 = vst.msk [vmem:[#allocation4 + $0x98] sm:$0xff] %vm818, %v1836
      %1901 = vst.msk [vmem:[#allocation4 + $0xa0] sm:$0xff] %vm818, %v1837
      %1902 = vst.msk [vmem:[#allocation4 + $0xa8] sm:$0xff] %vm818, %v1838
      %1903 = vst.msk [vmem:[#allocation4 + $0xb0] sm:$0xff] %vm818, %v1839
      %1904 = vst.msk [vmem:[#allocation4 + $0xb8] sm:$0xff] %vm818, %v1840
      %1905 = vst.msk [vmem:[#allocation4 + $0xc0] sm:$0xff] %vm818, %v1841
      %1906 = vst.msk [vmem:[#allocation4 + $0xc8] sm:$0xff] %vm818, %v1842
      %1907 = vst.msk [vmem:[#allocation4 + $0xd0] sm:$0xff] %vm818, %v1843
      %1908 = vst.msk [vmem:[#allocation4 + $0xd8] sm:$0xff] %vm818, %v1844
      %1909 = vst.msk [vmem:[#allocation4 + $0xe0] sm:$0xff] %vm818, %v1845
      %1910 = vst.msk [vmem:[#allocation4 + $0xe8] sm:$0xff] %vm818, %v1846
      %1911 = vst.msk [vmem:[#allocation4 + $0xf0] sm:$0xff] %vm818, %v1847
      %1912 = vst.msk [vmem:[#allocation4 + $0xf8] sm:$0xff] %vm818, %v1848
      %v1913 = vld [vmem:[#allocation2] sm:$0xff]
      %v1914 = vld [vmem:[#allocation2 + $0x8] sm:$0xff]
      %v1915 = vld [vmem:[#allocation2 + $0x10] sm:$0xff]
      %v1916 = vld [vmem:[#allocation2 + $0x18] sm:$0xff]
      %v1917 = vld [vmem:[#allocation3] sm:$0xff]
      %v1918 = vld [vmem:[#allocation3 + $0x8] sm:$0xff]
      %v1919 = vld [vmem:[#allocation3 + $0x10] sm:$0xff]
      %v1920 = vld [vmem:[#allocation3 + $0x18] sm:$0xff]
      %v1921 = vmul.f32 %v1917, %v1913
      %v1922 = vmul.f32 %v1918, %v1914
      %v1923 = vmul.f32 %v1919, %v1915
      %v1924 = vmul.f32 %v1920, %v1916
      %v1925 = vld [vmem:[#allocation4] sm:$0xff]
      %v1926 = vld [vmem:[#allocation4 + $0x8] sm:$0xff]
      %v1927 = vld [vmem:[#allocation4 + $0x10] sm:$0xff]
      %v1928 = vld [vmem:[#allocation4 + $0x18] sm:$0xff]
      %v1929 = vadd.f32 %v1921, %v1925
      %v1930 = vadd.f32 %v1922, %v1926
      %v1931 = vadd.f32 %v1923, %v1927
      %v1932 = vadd.f32 %v1924, %v1928
      %v1933 = vld [vmem:[%s394] sm:$0x1]
      %v1934 = vlaneseq
      %v1935 = vshrl.u32 %v1934, 7
      %v1936 = vsub.s32 0, %v1935
      %v1937 = vrot.slane %v1933, %v1936
      %v1938 = vmul.f32 %v1929, %v1937
      %v1939 = vmul.f32 %v1930, %v1937
      %v1940 = vmul.f32 %v1931, %v1937
      %v1941 = vmul.f32 %v1932, %v1937
      %v1942 = vsel %vm818, %v1938, 0.0
      %1943 = vadd.xlane.f32.xlu0 %v1942
      %v1944 = vpop.xlane.xlu0 %1943
      %v1945 = vsel %vm818, %v1939, 0.0
      %1946 = vadd.xlane.f32.xlu0 %v1945
      %v1947 = vpop.xlane.xlu0 %1946
      %v1948 = vsel %vm818, %v1940, 0.0
      %1949 = vadd.xlane.f32.xlu0 %v1948
      %v1950 = vpop.xlane.xlu0 %1949
      %v1951 = vsel %vm818, %v1941, 0.0
      %1952 = vadd.xlane.f32.xlu0 %v1951
      %v1953 = vpop.xlane.xlu0 %1952
      %v1958 = vlaneseq
      %v1959 = vshrl.u32 %v1958, 7
      %v1960 = vsub.s32 %v426, %v1959
      %v1961 = vrot.slane %v1944, %v1960
      %v1962 = vadd.s32 %v426, 4294967288
      %v1963 = vlaneseq
      %v1964 = vshrl.u32 %v1963, 7
      %v1965 = vsub.s32 %v1962, %v1964
      %v1966 = vrot.slane %v1947, %v1965
      %vm1967 = vcmask 130112
      %v1968 = vsel %vm1967, %v1966, %v1961
      %v1969 = vadd.s32 %v426, 4294967280
      %v1970 = vlaneseq
      %v1971 = vshrl.u32 %v1970, 7
      %v1972 = vsub.s32 %v1969, %v1971
      %v1973 = vrot.slane %v1950, %v1972
      %vm1974 = vcmask 195712
      %v1975 = vsel %vm1974, %v1973, %v1968
      %v1976 = vadd.s32 %v426, 4294967272
      %v1977 = vlaneseq
      %v1978 = vshrl.u32 %v1977, 7
      %v1979 = vsub.s32 %v1976, %v1978
      %v1980 = vrot.slane %v1953, %v1979
      %vm1981 = vcmask 261312
      %v1982 = vsel %vm1981, %v1980, %v1975
      %vm1984 = vcmask 253952
      %1985 = vst.msk [vmem:[#allocation5] sm:$0x1] %vm1984, %v1982
      %s1986 = scalar_lea.vmem [#allocation3], 32
      %v1987 = vld [vmem:[%s1986] sm:$0xff]
      %v1988 = vld [vmem:[%s1986 + $0x8] sm:$0xff]
      %v1989 = vld [vmem:[%s1986 + $0x10] sm:$0xff]
      %v1990 = vld [vmem:[%s1986 + $0x18] sm:$0xff]
      %v1991 = vmul.f32 %v1987, %v1929
      %v1992 = vmul.f32 %v1988, %v1930
      %v1993 = vmul.f32 %v1989, %v1931
      %v1994 = vmul.f32 %v1990, %v1932
      %s1995 = scalar_lea.vmem [#allocation4], 32
      %v1996 = vld [vmem:[%s1995] sm:$0xff]
      %v1997 = vld [vmem:[%s1995 + $0x8] sm:$0xff]
      %v1998 = vld [vmem:[%s1995 + $0x10] sm:$0xff]
      %v1999 = vld [vmem:[%s1995 + $0x18] sm:$0xff]
      %v2000 = vadd.f32 %v1991, %v1996
      %v2001 = vadd.f32 %v1992, %v1997
      %v2002 = vadd.f32 %v1993, %v1998
      %v2003 = vadd.f32 %v1994, %v1999
      %v2004 = vld [vmem:[%s394 + $0x1] sm:$0x1]
      %v2005 = vlaneseq
      %v2006 = vshrl.u32 %v2005, 7
      %v2007 = vsub.s32 0, %v2006
      %v2008 = vrot.slane %v2004, %v2007
      %v2009 = vmul.f32 %v2000, %v2008
      %v2010 = vmul.f32 %v2001, %v2008
      %v2011 = vmul.f32 %v2002, %v2008
      %v2012 = vmul.f32 %v2003, %v2008
      %v2013 = vsel %vm818, %v2009, 0.0
      %2014 = vadd.xlane.f32.xlu0 %v2013
      %v2015 = vpop.xlane.xlu0 %2014
      %v2016 = vsel %vm818, %v2010, 0.0
      %2017 = vadd.xlane.f32.xlu0 %v2016
      %v2018 = vpop.xlane.xlu0 %2017
      %v2019 = vsel %vm818, %v2011, 0.0
      %2020 = vadd.xlane.f32.xlu0 %v2019
      %v2021 = vpop.xlane.xlu0 %2020
      %v2022 = vsel %vm818, %v2012, 0.0
      %2023 = vadd.xlane.f32.xlu0 %v2022
      %v2024 = vpop.xlane.xlu0 %2023
      %v2029 = vlaneseq
      %v2030 = vshrl.u32 %v2029, 7
      %v2031 = vsub.s32 %v426, %v2030
      %v2032 = vrot.slane %v2015, %v2031
      %v2033 = vlaneseq
      %v2034 = vshrl.u32 %v2033, 7
      %v2035 = vsub.s32 %v1962, %v2034
      %v2036 = vrot.slane %v2018, %v2035
      %v2037 = vsel %vm1967, %v2036, %v2032
      %v2038 = vlaneseq
      %v2039 = vshrl.u32 %v2038, 7
      %v2040 = vsub.s32 %v1969, %v2039
      %v2041 = vrot.slane %v2021, %v2040
      %v2042 = vsel %vm1974, %v2041, %v2037
      %v2043 = vlaneseq
      %v2044 = vshrl.u32 %v2043, 7
      %v2045 = vsub.s32 %v1976, %v2044
      %v2046 = vrot.slane %v2024, %v2045
      %v2047 = vsel %vm1981, %v2046, %v2042
      %2049 = vst.msk [vmem:[#allocation5 + $0x1] sm:$0x1] %vm1984, %v2047
      %s2050 = scalar_lea.vmem [#allocation3], 64
      %v2051 = vld [vmem:[%s2050] sm:$0xff]
      %v2052 = vld [vmem:[%s2050 + $0x8] sm:$0xff]
      %v2053 = vld [vmem:[%s2050 + $0x10] sm:$0xff]
      %v2054 = vld [vmem:[%s2050 + $0x18] sm:$0xff]
      %v2055 = vmul.f32 %v2051, %v2000
      %v2056 = vmul.f32 %v2052, %v2001
      %v2057 = vmul.f32 %v2053, %v2002
      %v2058 = vmul.f32 %v2054, %v2003
      %s2059 = scalar_lea.vmem [#allocation4], 64
      %v2060 = vld [vmem:[%s2059] sm:$0xff]
      %v2061 = vld [vmem:[%s2059 + $0x8] sm:$0xff]
      %v2062 = vld [vmem:[%s2059 + $0x10] sm:$0xff]
      %v2063 = vld [vmem:[%s2059 + $0x18] sm:$0xff]
      %v2064 = vadd.f32 %v2055, %v2060
      %v2065 = vadd.f32 %v2056, %v2061
      %v2066 = vadd.f32 %v2057, %v2062
      %v2067 = vadd.f32 %v2058, %v2063
      %v2068 = vld [vmem:[%s394 + $0x2] sm:$0x1]
      %v2069 = vlaneseq
      %v2070 = vshrl.u32 %v2069, 7
      %v2071 = vsub.s32 0, %v2070
      %v2072 = vrot.slane %v2068, %v2071
      %v2073 = vmul.f32 %v2064, %v2072
      %v2074 = vmul.f32 %v2065, %v2072
      %v2075 = vmul.f32 %v2066, %v2072
      %v2076 = vmul.f32 %v2067, %v2072
      %v2077 = vsel %vm818, %v2073, 0.0
      %2078 = vadd.xlane.f32.xlu0 %v2077
      %v2079 = vpop.xlane.xlu0 %2078
      %v2080 = vsel %vm818, %v2074, 0.0
      %2081 = vadd.xlane.f32.xlu0 %v2080
      %v2082 = vpop.xlane.xlu0 %2081
      %v2083 = vsel %vm818, %v2075, 0.0
      %2084 = vadd.xlane.f32.xlu0 %v2083
      %v2085 = vpop.xlane.xlu0 %2084
      %v2086 = vsel %vm818, %v2076, 0.0
      %2087 = vadd.xlane.f32.xlu0 %v2086
      %v2088 = vpop.xlane.xlu0 %2087
      %v2093 = vlaneseq
      %v2094 = vshrl.u32 %v2093, 7
      %v2095 = vsub.s32 %v426, %v2094
      %v2096 = vrot.slane %v2079, %v2095
      %v2097 = vlaneseq
      %v2098 = vshrl.u32 %v2097, 7
      %v2099 = vsub.s32 %v1962, %v2098
      %v2100 = vrot.slane %v2082, %v2099
      %v2101 = vsel %vm1967, %v2100, %v2096
      %v2102 = vlaneseq
      %v2103 = vshrl.u32 %v2102, 7
      %v2104 = vsub.s32 %v1969, %v2103
      %v2105 = vrot.slane %v2085, %v2104
      %v2106 = vsel %vm1974, %v2105, %v2101
      %v2107 = vlaneseq
      %v2108 = vshrl.u32 %v2107, 7
      %v2109 = vsub.s32 %v1976, %v2108
      %v2110 = vrot.slane %v2088, %v2109
      %v2111 = vsel %vm1981, %v2110, %v2106
      %2113 = vst.msk [vmem:[#allocation5 + $0x2] sm:$0x1] %vm1984, %v2111
      %s2114 = scalar_lea.vmem [#allocation3], 96
      %v2115 = vld [vmem:[%s2114] sm:$0xff]
      %v2116 = vld [vmem:[%s2114 + $0x8] sm:$0xff]
      %v2117 = vld [vmem:[%s2114 + $0x10] sm:$0xff]
      %v2118 = vld [vmem:[%s2114 + $0x18] sm:$0xff]
      %v2119 = vmul.f32 %v2115, %v2064
      %v2120 = vmul.f32 %v2116, %v2065
      %v2121 = vmul.f32 %v2117, %v2066
      %v2122 = vmul.f32 %v2118, %v2067
      %s2123 = scalar_lea.vmem [#allocation4], 96
      %v2124 = vld [vmem:[%s2123] sm:$0xff]
      %v2125 = vld [vmem:[%s2123 + $0x8] sm:$0xff]
      %v2126 = vld [vmem:[%s2123 + $0x10] sm:$0xff]
      %v2127 = vld [vmem:[%s2123 + $0x18] sm:$0xff]
      %v2128 = vadd.f32 %v2119, %v2124
      %v2129 = vadd.f32 %v2120, %v2125
      %v2130 = vadd.f32 %v2121, %v2126
      %v2131 = vadd.f32 %v2122, %v2127
      %v2132 = vld [vmem:[%s394 + $0x3] sm:$0x1]
      %v2133 = vlaneseq
      %v2134 = vshrl.u32 %v2133, 7
      %v2135 = vsub.s32 0, %v2134
      %v2136 = vrot.slane %v2132, %v2135
      %v2137 = vmul.f32 %v2128, %v2136
      %v2138 = vmul.f32 %v2129, %v2136
      %v2139 = vmul.f32 %v2130, %v2136
      %v2140 = vmul.f32 %v2131, %v2136
      %v2141 = vsel %vm818, %v2137, 0.0
      %2142 = vadd.xlane.f32.xlu0 %v2141
      %v2143 = vpop.xlane.xlu0 %2142
      %v2144 = vsel %vm818, %v2138, 0.0
      %2145 = vadd.xlane.f32.xlu0 %v2144
      %v2146 = vpop.xlane.xlu0 %2145
      %v2147 = vsel %vm818, %v2139, 0.0
      %2148 = vadd.xlane.f32.xlu0 %v2147
      %v2149 = vpop.xlane.xlu0 %2148
      %v2150 = vsel %vm818, %v2140, 0.0
      %2151 = vadd.xlane.f32.xlu0 %v2150
      %v2152 = vpop.xlane.xlu0 %2151
      %v2157 = vlaneseq
      %v2158 = vshrl.u32 %v2157, 7
      %v2159 = vsub.s32 %v426, %v2158
      %v2160 = vrot.slane %v2143, %v2159
      %v2161 = vlaneseq
      %v2162 = vshrl.u32 %v2161, 7
      %v2163 = vsub.s32 %v1962, %v2162
      %v2164 = vrot.slane %v2146, %v2163
      %v2165 = vsel %vm1967, %v2164, %v2160
      %v2166 = vlaneseq
      %v2167 = vshrl.u32 %v2166, 7
      %v2168 = vsub.s32 %v1969, %v2167
      %v2169 = vrot.slane %v2149, %v2168
      %v2170 = vsel %vm1974, %v2169, %v2165
      %v2171 = vlaneseq
      %v2172 = vshrl.u32 %v2171, 7
      %v2173 = vsub.s32 %v1976, %v2172
      %v2174 = vrot.slane %v2152, %v2173
      %v2175 = vsel %vm1981, %v2174, %v2170
      %2177 = vst.msk [vmem:[#allocation5 + $0x3] sm:$0x1] %vm1984, %v2175
      %s2178 = scalar_lea.vmem [#allocation3], 128
      %v2179 = vld [vmem:[%s2178] sm:$0xff]
      %v2180 = vld [vmem:[%s2178 + $0x8] sm:$0xff]
      %v2181 = vld [vmem:[%s2178 + $0x10] sm:$0xff]
      %v2182 = vld [vmem:[%s2178 + $0x18] sm:$0xff]
      %v2183 = vmul.f32 %v2179, %v2128
      %v2184 = vmul.f32 %v2180, %v2129
      %v2185 = vmul.f32 %v2181, %v2130
      %v2186 = vmul.f32 %v2182, %v2131
      %s2187 = scalar_lea.vmem [#allocation4], 128
      %v2188 = vld [vmem:[%s2187] sm:$0xff]
      %v2189 = vld [vmem:[%s2187 + $0x8] sm:$0xff]
      %v2190 = vld [vmem:[%s2187 + $0x10] sm:$0xff]
      %v2191 = vld [vmem:[%s2187 + $0x18] sm:$0xff]
      %v2192 = vadd.f32 %v2183, %v2188
      %v2193 = vadd.f32 %v2184, %v2189
      %v2194 = vadd.f32 %v2185, %v2190
      %v2195 = vadd.f32 %v2186, %v2191
      %v2196 = vld [vmem:[%s394 + $0x4] sm:$0x1]
      %v2197 = vlaneseq
      %v2198 = vshrl.u32 %v2197, 7
      %v2199 = vsub.s32 0, %v2198
      %v2200 = vrot.slane %v2196, %v2199
      %v2201 = vmul.f32 %v2192, %v2200
      %v2202 = vmul.f32 %v2193, %v2200
      %v2203 = vmul.f32 %v2194, %v2200
      %v2204 = vmul.f32 %v2195, %v2200
      %v2205 = vsel %vm818, %v2201, 0.0
      %2206 = vadd.xlane.f32.xlu0 %v2205
      %v2207 = vpop.xlane.xlu0 %2206
      %v2208 = vsel %vm818, %v2202, 0.0
      %2209 = vadd.xlane.f32.xlu0 %v2208
      %v2210 = vpop.xlane.xlu0 %2209
      %v2211 = vsel %vm818, %v2203, 0.0
      %2212 = vadd.xlane.f32.xlu0 %v2211
      %v2213 = vpop.xlane.xlu0 %2212
      %v2214 = vsel %vm818, %v2204, 0.0
      %2215 = vadd.xlane.f32.xlu0 %v2214
      %v2216 = vpop.xlane.xlu0 %2215
      %v2221 = vlaneseq
      %v2222 = vshrl.u32 %v2221, 7
      %v2223 = vsub.s32 %v426, %v2222
      %v2224 = vrot.slane %v2207, %v2223
      %v2225 = vlaneseq
      %v2226 = vshrl.u32 %v2225, 7
      %v2227 = vsub.s32 %v1962, %v2226
      %v2228 = vrot.slane %v2210, %v2227
      %v2229 = vsel %vm1967, %v2228, %v2224
      %v2230 = vlaneseq
      %v2231 = vshrl.u32 %v2230, 7
      %v2232 = vsub.s32 %v1969, %v2231
      %v2233 = vrot.slane %v2213, %v2232
      %v2234 = vsel %vm1974, %v2233, %v2229
      %v2235 = vlaneseq
      %v2236 = vshrl.u32 %v2235, 7
      %v2237 = vsub.s32 %v1976, %v2236
      %v2238 = vrot.slane %v2216, %v2237
      %v2239 = vsel %vm1981, %v2238, %v2234
      %2241 = vst.msk [vmem:[#allocation5 + $0x4] sm:$0x1] %vm1984, %v2239
      %s2242 = scalar_lea.vmem [#allocation3], 160
      %v2243 = vld [vmem:[%s2242] sm:$0xff]
      %v2244 = vld [vmem:[%s2242 + $0x8] sm:$0xff]
      %v2245 = vld [vmem:[%s2242 + $0x10] sm:$0xff]
      %v2246 = vld [vmem:[%s2242 + $0x18] sm:$0xff]
      %v2247 = vmul.f32 %v2243, %v2192
      %v2248 = vmul.f32 %v2244, %v2193
      %v2249 = vmul.f32 %v2245, %v2194
      %v2250 = vmul.f32 %v2246, %v2195
      %s2251 = scalar_lea.vmem [#allocation4], 160
      %v2252 = vld [vmem:[%s2251] sm:$0xff]
      %v2253 = vld [vmem:[%s2251 + $0x8] sm:$0xff]
      %v2254 = vld [vmem:[%s2251 + $0x10] sm:$0xff]
      %v2255 = vld [vmem:[%s2251 + $0x18] sm:$0xff]
      %v2256 = vadd.f32 %v2247, %v2252
      %v2257 = vadd.f32 %v2248, %v2253
      %v2258 = vadd.f32 %v2249, %v2254
      %v2259 = vadd.f32 %v2250, %v2255
      %v2260 = vld [vmem:[%s394 + $0x5] sm:$0x1]
      %v2261 = vlaneseq
      %v2262 = vshrl.u32 %v2261, 7
      %v2263 = vsub.s32 0, %v2262
      %v2264 = vrot.slane %v2260, %v2263
      %v2265 = vmul.f32 %v2256, %v2264
      %v2266 = vmul.f32 %v2257, %v2264
      %v2267 = vmul.f32 %v2258, %v2264
      %v2268 = vmul.f32 %v2259, %v2264
      %v2269 = vsel %vm818, %v2265, 0.0
      %2270 = vadd.xlane.f32.xlu0 %v2269
      %v2271 = vpop.xlane.xlu0 %2270
      %v2272 = vsel %vm818, %v2266, 0.0
      %2273 = vadd.xlane.f32.xlu0 %v2272
      %v2274 = vpop.xlane.xlu0 %2273
      %v2275 = vsel %vm818, %v2267, 0.0
      %2276 = vadd.xlane.f32.xlu0 %v2275
      %v2277 = vpop.xlane.xlu0 %2276
      %v2278 = vsel %vm818, %v2268, 0.0
      %2279 = vadd.xlane.f32.xlu0 %v2278
      %v2280 = vpop.xlane.xlu0 %2279
      %v2285 = vlaneseq
      %v2286 = vshrl.u32 %v2285, 7
      %v2287 = vsub.s32 %v426, %v2286
      %v2288 = vrot.slane %v2271, %v2287
      %v2289 = vlaneseq
      %v2290 = vshrl.u32 %v2289, 7
      %v2291 = vsub.s32 %v1962, %v2290
      %v2292 = vrot.slane %v2274, %v2291
      %v2293 = vsel %vm1967, %v2292, %v2288
      %v2294 = vlaneseq
      %v2295 = vshrl.u32 %v2294, 7
      %v2296 = vsub.s32 %v1969, %v2295
      %v2297 = vrot.slane %v2277, %v2296
      %v2298 = vsel %vm1974, %v2297, %v2293
      %v2299 = vlaneseq
      %v2300 = vshrl.u32 %v2299, 7
      %v2301 = vsub.s32 %v1976, %v2300
      %v2302 = vrot.slane %v2280, %v2301
      %v2303 = vsel %vm1981, %v2302, %v2298
      %2305 = vst.msk [vmem:[#allocation5 + $0x5] sm:$0x1] %vm1984, %v2303
      %s2306 = scalar_lea.vmem [#allocation3], 192
      %v2307 = vld [vmem:[%s2306] sm:$0xff]
      %v2308 = vld [vmem:[%s2306 + $0x8] sm:$0xff]
      %v2309 = vld [vmem:[%s2306 + $0x10] sm:$0xff]
      %v2310 = vld [vmem:[%s2306 + $0x18] sm:$0xff]
      %v2311 = vmul.f32 %v2307, %v2256
      %v2312 = vmul.f32 %v2308, %v2257
      %v2313 = vmul.f32 %v2309, %v2258
      %v2314 = vmul.f32 %v2310, %v2259
      %s2315 = scalar_lea.vmem [#allocation4], 192
      %v2316 = vld [vmem:[%s2315] sm:$0xff]
      %v2317 = vld [vmem:[%s2315 + $0x8] sm:$0xff]
      %v2318 = vld [vmem:[%s2315 + $0x10] sm:$0xff]
      %v2319 = vld [vmem:[%s2315 + $0x18] sm:$0xff]
      %v2320 = vadd.f32 %v2311, %v2316
      %v2321 = vadd.f32 %v2312, %v2317
      %v2322 = vadd.f32 %v2313, %v2318
      %v2323 = vadd.f32 %v2314, %v2319
      %v2324 = vld [vmem:[%s394 + $0x6] sm:$0x1]
      %v2325 = vlaneseq
      %v2326 = vshrl.u32 %v2325, 7
      %v2327 = vsub.s32 0, %v2326
      %v2328 = vrot.slane %v2324, %v2327
      %v2329 = vmul.f32 %v2320, %v2328
      %v2330 = vmul.f32 %v2321, %v2328
      %v2331 = vmul.f32 %v2322, %v2328
      %v2332 = vmul.f32 %v2323, %v2328
      %v2333 = vsel %vm818, %v2329, 0.0
      %2334 = vadd.xlane.f32.xlu0 %v2333
      %v2335 = vpop.xlane.xlu0 %2334
      %v2336 = vsel %vm818, %v2330, 0.0
      %2337 = vadd.xlane.f32.xlu0 %v2336
      %v2338 = vpop.xlane.xlu0 %2337
      %v2339 = vsel %vm818, %v2331, 0.0
      %2340 = vadd.xlane.f32.xlu0 %v2339
      %v2341 = vpop.xlane.xlu0 %2340
      %v2342 = vsel %vm818, %v2332, 0.0
      %2343 = vadd.xlane.f32.xlu0 %v2342
      %v2344 = vpop.xlane.xlu0 %2343
      %v2349 = vlaneseq
      %v2350 = vshrl.u32 %v2349, 7
      %v2351 = vsub.s32 %v426, %v2350
      %v2352 = vrot.slane %v2335, %v2351
      %v2353 = vlaneseq
      %v2354 = vshrl.u32 %v2353, 7
      %v2355 = vsub.s32 %v1962, %v2354
      %v2356 = vrot.slane %v2338, %v2355
      %v2357 = vsel %vm1967, %v2356, %v2352
      %v2358 = vlaneseq
      %v2359 = vshrl.u32 %v2358, 7
      %v2360 = vsub.s32 %v1969, %v2359
      %v2361 = vrot.slane %v2341, %v2360
      %v2362 = vsel %vm1974, %v2361, %v2357
      %v2363 = vlaneseq
      %v2364 = vshrl.u32 %v2363, 7
      %v2365 = vsub.s32 %v1976, %v2364
      %v2366 = vrot.slane %v2344, %v2365
      %v2367 = vsel %vm1981, %v2366, %v2362
      %2369 = vst.msk [vmem:[#allocation5 + $0x6] sm:$0x1] %vm1984, %v2367
      %s2370 = scalar_lea.vmem [#allocation3], 224
      %v2371 = vld [vmem:[%s2370] sm:$0xff]
      %v2372 = vld [vmem:[%s2370 + $0x8] sm:$0xff]
      %v2373 = vld [vmem:[%s2370 + $0x10] sm:$0xff]
      %v2374 = vld [vmem:[%s2370 + $0x18] sm:$0xff]
      %v2375 = vmul.f32 %v2371, %v2320
      %v2376 = vmul.f32 %v2372, %v2321
      %v2377 = vmul.f32 %v2373, %v2322
      %v2378 = vmul.f32 %v2374, %v2323
      %s2379 = scalar_lea.vmem [#allocation4], 224
      %v2380 = vld [vmem:[%s2379] sm:$0xff]
      %v2381 = vld [vmem:[%s2379 + $0x8] sm:$0xff]
      %v2382 = vld [vmem:[%s2379 + $0x10] sm:$0xff]
      %v2383 = vld [vmem:[%s2379 + $0x18] sm:$0xff]
      %v2384 = vadd.f32 %v2375, %v2380
      %v2385 = vadd.f32 %v2376, %v2381
      %v2386 = vadd.f32 %v2377, %v2382
      %v2387 = vadd.f32 %v2378, %v2383
      %v2388 = vld [vmem:[%s394 + $0x7] sm:$0x1]
      %v2389 = vlaneseq
      %v2390 = vshrl.u32 %v2389, 7
      %v2391 = vsub.s32 0, %v2390
      %v2392 = vrot.slane %v2388, %v2391
      %v2393 = vmul.f32 %v2384, %v2392
      %v2394 = vmul.f32 %v2385, %v2392
      %v2395 = vmul.f32 %v2386, %v2392
      %v2396 = vmul.f32 %v2387, %v2392
      %v2397 = vsel %vm818, %v2393, 0.0
      %2398 = vadd.xlane.f32.xlu0 %v2397
      %v2399 = vpop.xlane.xlu0 %2398
      %v2400 = vsel %vm818, %v2394, 0.0
      %2401 = vadd.xlane.f32.xlu0 %v2400
      %v2402 = vpop.xlane.xlu0 %2401
      %v2403 = vsel %vm818, %v2395, 0.0
      %2404 = vadd.xlane.f32.xlu0 %v2403
      %v2405 = vpop.xlane.xlu0 %2404
      %v2406 = vsel %vm818, %v2396, 0.0
      %2407 = vadd.xlane.f32.xlu0 %v2406
      %v2408 = vpop.xlane.xlu0 %2407
      %v2413 = vlaneseq
      %v2414 = vshrl.u32 %v2413, 7
      %v2415 = vsub.s32 %v426, %v2414
      %v2416 = vrot.slane %v2399, %v2415
      %v2417 = vlaneseq
      %v2418 = vshrl.u32 %v2417, 7
      %v2419 = vsub.s32 %v1962, %v2418
      %v2420 = vrot.slane %v2402, %v2419
      %v2421 = vsel %vm1967, %v2420, %v2416
      %v2422 = vlaneseq
      %v2423 = vshrl.u32 %v2422, 7
      %v2424 = vsub.s32 %v1969, %v2423
      %v2425 = vrot.slane %v2405, %v2424
      %v2426 = vsel %vm1974, %v2425, %v2421
      %v2427 = vlaneseq
      %v2428 = vshrl.u32 %v2427, 7
      %v2429 = vsub.s32 %v1976, %v2428
      %v2430 = vrot.slane %v2408, %v2429
      %v2431 = vsel %vm1981, %v2430, %v2426
      %2433 = vst.msk [vmem:[#allocation5 + $0x7] sm:$0x1] %vm1984, %v2431
      %2434 = vst.msk [vmem:[#allocation2] sm:$0xff] %vm818, %v2384
      %2435 = vst.msk [vmem:[#allocation2 + $0x8] sm:$0xff] %vm818, %v2385
      %2436 = vst.msk [vmem:[#allocation2 + $0x10] sm:$0xff] %vm818, %v2386
      %2437 = vst.msk [vmem:[#allocation2 + $0x18] sm:$0xff] %vm818, %v2387
      %v2438 = vld [vmem:[#allocation5] sm:$0xff]
      %v2439 = vld [vmem:[%s6] sm:$0x1]
      %v2441 = vlaneseq
      %v2442 = vshrl.u32 %v2441, 7
      %v2443 = vsub.s32 0, %v2442
      %v2444 = vrot.slane %v2439, %v2443
      %v2446 = vmul.f32 %v439, %v2444
      %v2447 = vadd.f32 %v2438, %v2446
      %2448 = vst.msk [vmem:[%s402] sm:$0xff] %vm818, %v2447
      %p2449 = scmp.lt.s32.totalorder %s22, 1
      %s2450 = scalar_select %p2449, %s22, 1
      %p2451 = scmp.lt.s32.totalorder %s23, 1
      %s2452 = scalar_select %p2451, %s23, 1
      %s2453 = smul.addr %s2450, 2
      %s2454 = sadd.s32 %s2452, %s2453
      %s2455 = smul.addr %s2454, 8
      %s2456 = scalar_lea.vmem %s7, %s2455
      // Predicated region
      $region53: #{mamba_forward.14} parent=47 // pred_check
        %p2457 = pneg %p225
      $region54: #{mamba_forward.14} parent=47 // pred_check_branch
        %2459 = sbr.rel (%p2457) target = $region56
      $region55: #{mamba_forward.14} parent=47 // pred_region
        _
      $region56: #{mamba_forward.14} parent=47 // pred_fallthru
        _
    $region48: #{mamba_forward.14} parent=5 // pred_fallthru
      _
    %p2460 = scmp.le.s32.totalorder 2, %s13
    // Predicated region
    $region57: #{mamba_forward.14} parent=5 // pred_check
      %p2461 = pneg %p2460
    $region58: #{mamba_forward.14} parent=5 // pred_check_branch
      %2463 = sbr.rel (%p2461) target = $region60
    $region59: #{mamba_forward.14} parent=5 // pred_region
      %s2464 = ssub.s32 %s13, 2
      // Predicated region
      $region61: #{mamba_forward.14} parent=59 // pred_check
        %p2465 = pneg %p231
      $region62: #{mamba_forward.14} parent=59 // pred_check_branch
        %2467 = sbr.rel (%p2465) target = $region64
      $region63: #{mamba_forward.14} parent=59 // pred_region
        %p2468 = scmp.lt.s32.totalorder %s24, 1
        %s2469 = scalar_select %p2468, %s24, 1
        %p2470 = scmp.lt.s32.totalorder %s25, 1
        %s2471 = scalar_select %p2470, %s25, 1
        %s2472 = smul.addr %s2469, 2
        %s2473 = sadd.s32 %s2471, %s2472
        %s2474 = smul.addr %s2473, 8
        %s2475 = scalar_lea.vmem %s7, %s2474
      $region64: #{mamba_forward.14} parent=59 // pred_fallthru
        _
    $region60: #{mamba_forward.14} parent=5 // pred_fallthru
      _
  $region6: #{mamba_forward.14} parent=0 // loop_footer
    %s17 = sadd.s32 1, %s13
  $region7: #{mamba_forward.14} parent=0 // loop_footer_branch
    %12 = sbr.rel target = $region3
  $region8: #{mamba_forward.14} parent=0 // loop_exit
    _

</llo_original>
